<compile_context>
chip_gen: v5e
topology: v5e:2x2
jax: 0.10.0
libtpu: 0.0.40
codegen_flags: <defaults>
</compile_context>

<pallas_src>
import math

import jax
import jax.numpy as jnp
from jax.experimental import pallas as pl
from jax.experimental.pallas import tpu as pltpu

LANE = 128
MXU_DTYPE = jnp.bfloat16      # matmul-input dtype; accumulation stays f32
NEG_BIG = -1e30               # f32-safe "minus infinity" for padded logits


def _round_up(x, m):
    return ((x + m - 1) // m) * m


def _cdiv(a, b):
    return -(-a // b)


# ---------------------------------------------------------------------------
# Model construction: params as a flat [w0, b0, w1, b1, ...] list (w: (in,out),
# b: (1,out), f32) plus static "plans" describing the op sequence.
#   op = ("linear", k)    -> h = h @ w_k + b_k
#   op = ("res", k1, k2)  -> h = relu(h + (relu(h @ w_k1 + b_k1) @ w_k2 + b_k2))
# ---------------------------------------------------------------------------
def build_res_autoencoder(key, input_dim, latent_dim, hidden_features):
    params = []
    counter = [0]
    keys = iter(jax.random.split(key, 64))

    def add_linear(fi, fo):
        kw, kb = jax.random.split(next(keys))
        w = jax.random.normal(kw, (fi, fo), jnp.float32) * (1.0 / math.sqrt(fi))
        b = jax.random.normal(kb, (1, fo), jnp.float32) * 0.01
        params.extend([w, b])
        idx = counter[0]
        counter[0] += 1
        return idx

    # ---- encoder ----
    enc_plan = [("linear", add_linear(input_dim, hidden_features[0]))]
    for i, h in enumerate(hidden_features):
        enc_plan.append(("res", add_linear(h, h), add_linear(h, h)))
        if i < len(hidden_features) - 1:
            nxt = hidden_features[i + 1]
            if nxt != h:
                enc_plan.append(("linear", add_linear(h, nxt)))
        else:
            enc_plan.append(("linear", add_linear(h, latent_dim)))

    # ---- decoder ----
    rev = hidden_features[::-1]
    dec_plan = [("linear", add_linear(latent_dim, rev[0]))]
    for i, h in enumerate(rev):
        dec_plan.append(("res", add_linear(h, h), add_linear(h, h)))
        if i < len(rev) - 1:
            nxt = rev[i + 1]
            if nxt != h:
                dec_plan.append(("linear", add_linear(h, nxt)))
        else:
            dec_plan.append(("linear", add_linear(h, input_dim)))

    return params, enc_plan, dec_plan


# ---------------------------------------------------------------------------
# Kernel
# ---------------------------------------------------------------------------
def _make_kernel(enc_plan, dec_plan, n_linear, mxu_dtype):
    def kernel(x_ref, *refs):
        w_refs = refs[:n_linear]
        bias_ref = refs[n_linear]          # (n_linear, fo_max) f32 slab
        latent_ref = refs[n_linear + 1]
        recon_ref = refs[n_linear + 2]

        def linear(h, k):
            w = w_refs[k][...]                                   # (fi_p, fo_p) bf16
            b = bias_ref[k:k + 1, :][:, :w.shape[1]]             # (1, fo_p) f32
            return jnp.dot(h.astype(mxu_dtype), w,
                           preferred_element_type=jnp.float32) + b

        def run_plan(h, plan):
            for op in plan:
                if op[0] == "linear":
                    h = linear(h, op[1])
                else:  # residual block: relu(x + fc2(relu(fc1(x))))
                    t = jnp.maximum(linear(h, op[1]), 0.0)
                    t = linear(t, op[2])
                    h = jnp.maximum(h + t, 0.0)
            return h

        def softmax_rows(h):
            # Padded logit columns already hold NEG_BIG (baked into the final
            # layers' bias padding) -> exp underflows to exactly 0, so no mask
            # is needed and the normalization is exact.
            m = jnp.max(h, axis=1, keepdims=True)
            e = jnp.exp(h - m)
            return e / jnp.sum(e, axis=1, keepdims=True)

        x = x_ref[...]  # f32 activation tile
        latent = softmax_rows(run_plan(x, enc_plan))
        recon = softmax_rows(run_plan(latent, dec_plan))

        latent_ref[...] = latent
        recon_ref[...] = recon

    return kernel


# ---------------------------------------------------------------------------
# Wrapper: lane-padding, bias slab, batch tiling, pallas_call
# ---------------------------------------------------------------------------
def _pick_vmem_limit(frac=0.75, fallback=48 * 1024 * 1024):
    # Generation-aware VMEM cap: ~96 MiB on v5e/v6e (128 MiB VMEM), ~48 MiB on
    # v7x (64 MiB). Fallback when the query is unavailable (e.g. interpret).
    try:
        cap = int(pltpu.get_tpu_info().vmem_capacity_bytes)
        return int(cap * frac)
    except Exception:
        return fallback


def _pick_batch_tile(batch, tile_batch):
    # Big lane-dense tile, multiple of 16 sublanes (bf16 packing), but keep
    # >= 4 grid steps (>= 2 per v7x TensorCore) when the batch allows it.
    tb = min(_round_up(tile_batch, 16), max(16, _round_up(_cdiv(batch, 4), 16)))
    return tb


def res_autoencoder_forward(x, params, enc_plan, dec_plan, input_dim, latent_dim,
                            *, tile_batch=512, mxu_dtype=MXU_DTYPE):
    B = x.shape[0]
    assert x.shape[1] == input_dim

    inp_p = _round_up(input_dim, LANE)
    lat_p = _round_up(latent_dim, LANE)

    ws, bs = params[0::2], params[1::2]
    n_linear = len(ws)

    # Weights: zero-padded to lane multiples, bf16 for the MXU. Zero pad
    # rows/cols keep padded activation columns irrelevant downstream.
    padded_ws, real_fo = [], []
    for w in ws:
        fi, fo = w.shape
        fi_p, fo_p = _round_up(fi, LANE), _round_up(fo, LANE)
        wp = jnp.zeros((fi_p, fo_p), mxu_dtype).at[:fi, :fo].set(w.astype(mxu_dtype))
        padded_ws.append(wp)
        real_fo.append(fo)

    # Biases: one packed f32 slab (n_linear, fo_max). Hidden-layer pad columns
    # are 0; the two softmax-feeding final linears get NEG_BIG pad columns so
    # padded softmax logits arrive pre-masked (mask-free softmax in-kernel).
    fo_max = max(int(w.shape[1]) for w in padded_ws)
    softmax_linears = {enc_plan[-1][1], dec_plan[-1][1]}
    bias_rows = []
    for k, b in enumerate(bs):
        fill = NEG_BIG if k in softmax_linears else 0.0
        row = jnp.full((fo_max,), fill, jnp.float32).at[:real_fo[k]].set(
            b.reshape(-1).astype(jnp.float32))
        bias_rows.append(row)
    bias_slab = jnp.stack(bias_rows, axis=0)                     # (n_linear, fo_max)

    # Batch tiling (padded so the grid divides evenly; pad rows sliced off).
    tb = _pick_batch_tile(B, tile_batch)
    b_pad = _round_up(B, tb)
    grid = (b_pad // tb,)
    xp = jnp.zeros((b_pad, inp_p), jnp.float32).at[:B, :input_dim].set(x)

    kernel = _make_kernel(enc_plan, dec_plan, n_linear, mxu_dtype)

    flops = 2 * b_pad * sum(int(w.shape[0]) * int(w.shape[1]) for w in padded_ws)
    bytes_accessed = (int(xp.size) * 4
                      + sum(int(w.size) * w.dtype.itemsize for w in padded_ws)
                      + int(bias_slab.size) * 4
                      + b_pad * (lat_p + inp_p) * 4)
    transcendentals = b_pad * (lat_p + inp_p)       # exp in the two softmaxes
    vmem_limit = _pick_vmem_limit()

    def call(single_buffer_consts):
        const_kw = {}
        if single_buffer_consts and hasattr(pl, "Buffered"):
            # Constant-index blocks never change: single-buffer them so the
            # pipeline does not double their VMEM residency (v7x: 64 MiB).
            const_kw = dict(pipeline_mode=pl.Buffered(1))

        in_specs = [pl.BlockSpec((tb, inp_p), lambda i: (i, 0))]        # streamed
        in_specs += [pl.BlockSpec(tuple(int(s) for s in w.shape),
                                  lambda i: (0, 0), **const_kw)         # resident
                     for w in padded_ws]
        in_specs.append(pl.BlockSpec(tuple(int(s) for s in bias_slab.shape),
                                     lambda i: (0, 0), **const_kw))     # resident
        out_specs = (
            pl.BlockSpec((tb, lat_p), lambda i: (i, 0)),
            pl.BlockSpec((tb, inp_p), lambda i: (i, 0)),
        )
        return pl.pallas_call(
            kernel,
            out_shape=(
                jax.ShapeDtypeStruct((b_pad, lat_p), jnp.float32),
                jax.ShapeDtypeStruct((b_pad, inp_p), jnp.float32),
            ),
            grid=grid,
            in_specs=in_specs,
            out_specs=out_specs,
            compiler_params=pltpu.CompilerParams(
                dimension_semantics=("parallel",),      # shard grid over TCs
                vmem_limit_bytes=vmem_limit,
            ),
            cost_estimate=pl.CostEstimate(
                flops=flops, transcendentals=transcendentals,
                bytes_accessed=bytes_accessed),
        )(xp, *padded_ws, bias_slab)

    try:
        latent_p, recon_p = call(True)
    except Exception:
        # TODO(synk): pipeline_mode=pl.Buffered(1) unsupported on this jax
        # build; fall back to default double-buffered resident weights.
        latent_p, recon_p = call(False)

    return latent_p[:B, :latent_dim], recon_p[:B, :input_dim]


# ---------------------------------------------------------------------------
# Pure-JAX reference mirroring the kernel math (same bf16 MXU-input casts)
# ---------------------------------------------------------------------------
def reference_forward(x, params, enc_plan, dec_plan, mxu_dtype=MXU_DTYPE):
    ws, bs = params[0::2], params[1::2]

    def lin(h, k):
        return jnp.dot(h.astype(mxu_dtype), ws[k].astype(mxu_dtype),
                       preferred_element_type=jnp.float32) + bs[k]

    def run(h, plan):
        for op in plan:
            if op[0] == "linear":
                h = lin(h, op[1])
            else:
                t = jax.nn.relu(lin(h, op[1]))
                t = lin(t, op[2])
                h = jax.nn.relu(h + t)
        return h

    latent = jax.nn.softmax(run(x, enc_plan), axis=1)
    recon = jax.nn.softmax(run(latent, dec_plan), axis=1)
    return latent, recon


if __name__ == "__main__":
    INPUT_DIM = 32
    LATENT_DIM = 16
    HIDDEN = [64, 48]
    B = 200   # not a multiple of the tile -> exercises batch padding

    key = jax.random.PRNGKey(0)
    kx, kp = jax.random.split(key)
    x = jax.random.normal(kx, (B, INPUT_DIM), jnp.float32)
    params, enc_plan, dec_plan = build_res_autoencoder(kp, INPUT_DIM, LATENT_DIM, HIDDEN)

    latent, recon = jax.block_until_ready(
        res_autoencoder_forward(x, params, enc_plan, dec_plan,
                                INPUT_DIM, LATENT_DIM))

    lat_ref, rec_ref = reference_forward(x, params, enc_plan, dec_plan)

    assert latent.shape == (B, LATENT_DIM) and recon.shape == (B, INPUT_DIM)
    # softmax rows must be proper distributions (exact normalization in-kernel)
    assert jnp.allclose(jnp.sum(latent, axis=1), 1.0, atol=1e-3), \
        float(jnp.max(jnp.abs(jnp.sum(latent, axis=1) - 1.0)))
    assert jnp.allclose(jnp.sum(recon, axis=1), 1.0, atol=1e-3), \
        float(jnp.max(jnp.abs(jnp.sum(recon, axis=1) - 1.0)))
    # match the reference (tolerance accounts for MXU vs XLA accumulation order)
    assert jnp.allclose(latent, lat_ref, atol=3e-3, rtol=2e-2), \
        float(jnp.max(jnp.abs(latent - lat_ref)))
    assert jnp.allclose(recon, rec_ref, atol=3e-3, rtol=2e-2), \
        float(jnp.max(jnp.abs(recon - rec_ref)))

    print("KERNEL_OK")
</pallas_src>

<mosaic_0001>
module attributes {stable_mosaic.version = 11 : i64} {
  func.func @kernel(%arg0: i32, %arg1: memref<64x128xf32, #tpu.memory_space<vmem>>, %arg2: memref<128x128xbf16, #tpu.memory_space<vmem>>, %arg3: memref<128x128xbf16, #tpu.memory_space<vmem>>, %arg4: memref<128x128xbf16, #tpu.memory_space<vmem>>, %arg5: memref<128x128xbf16, #tpu.memory_space<vmem>>, %arg6: memref<128x128xbf16, #tpu.memory_space<vmem>>, %arg7: memref<128x128xbf16, #tpu.memory_space<vmem>>, %arg8: memref<128x128xbf16, #tpu.memory_space<vmem>>, %arg9: memref<128x128xbf16, #tpu.memory_space<vmem>>, %arg10: memref<128x128xbf16, #tpu.memory_space<vmem>>, %arg11: memref<128x128xbf16, #tpu.memory_space<vmem>>, %arg12: memref<128x128xbf16, #tpu.memory_space<vmem>>, %arg13: memref<128x128xbf16, #tpu.memory_space<vmem>>, %arg14: memref<128x128xbf16, #tpu.memory_space<vmem>>, %arg15: memref<128x128xbf16, #tpu.memory_space<vmem>>, %arg16: memref<14x128xf32, #tpu.memory_space<vmem>>, %arg17: memref<64x128xf32, #tpu.memory_space<vmem>>, %arg18: memref<64x128xf32, #tpu.memory_space<vmem>>) attributes {dimension_semantics = [#tpu.dimension_semantics<parallel>], iteration_bounds = array<i64: 4>, scalar_prefetch = 0 : i64, scratch_operands = 0 : i64, tpu.core_type = #tpu.core_type<tc>, window_params = [{transform_indices = @transform_0, window_bounds = array<i64: 64, 128>}, {pipeline_mode = #tpu.pipeline_mode<synchronous>, transform_indices = @transform_1, window_bounds = array<i64: 128, 128>}, {pipeline_mode = #tpu.pipeline_mode<synchronous>, transform_indices = @transform_2, window_bounds = array<i64: 128, 128>}, {pipeline_mode = #tpu.pipeline_mode<synchronous>, transform_indices = @transform_3, window_bounds = array<i64: 128, 128>}, {pipeline_mode = #tpu.pipeline_mode<synchronous>, transform_indices = @transform_4, window_bounds = array<i64: 128, 128>}, {pipeline_mode = #tpu.pipeline_mode<synchronous>, transform_indices = @transform_5, window_bounds = array<i64: 128, 128>}, {pipeline_mode = #tpu.pipeline_mode<synchronous>, transform_indices = @transform_6, window_bounds = array<i64: 128, 128>}, {pipeline_mode = #tpu.pipeline_mode<synchronous>, transform_indices = @transform_7, window_bounds = array<i64: 128, 128>}, {pipeline_mode = #tpu.pipeline_mode<synchronous>, transform_indices = @transform_8, window_bounds = array<i64: 128, 128>}, {pipeline_mode = #tpu.pipeline_mode<synchronous>, transform_indices = @transform_9, window_bounds = array<i64: 128, 128>}, {pipeline_mode = #tpu.pipeline_mode<synchronous>, transform_indices = @transform_10, window_bounds = array<i64: 128, 128>}, {pipeline_mode = #tpu.pipeline_mode<synchronous>, transform_indices = @transform_11, window_bounds = array<i64: 128, 128>}, {pipeline_mode = #tpu.pipeline_mode<synchronous>, transform_indices = @transform_12, window_bounds = array<i64: 128, 128>}, {pipeline_mode = #tpu.pipeline_mode<synchronous>, transform_indices = @transform_13, window_bounds = array<i64: 128, 128>}, {pipeline_mode = #tpu.pipeline_mode<synchronous>, transform_indices = @transform_14, window_bounds = array<i64: 128, 128>}, {pipeline_mode = #tpu.pipeline_mode<synchronous>, transform_indices = @transform_15, window_bounds = array<i64: 14, 128>}, {transform_indices = @transform_16, window_bounds = array<i64: 64, 128>}, {transform_indices = @transform_17, window_bounds = array<i64: 64, 128>}]} {
    %c0 = arith.constant 0 : index
    %c0_0 = arith.constant 0 : index
    %0 = vector.load %arg1[%c0, %c0_0] : memref<64x128xf32, #tpu.memory_space<vmem>>, vector<64x128xf32>
    %c0_1 = arith.constant 0 : index
    %c0_2 = arith.constant 0 : index
    %1 = vector.load %arg2[%c0_1, %c0_2] : memref<128x128xbf16, #tpu.memory_space<vmem>>, vector<128x128xbf16>
    %c0_3 = arith.constant 0 : index
    %c0_4 = arith.constant 0 : index
    %2 = vector.load %arg16[%c0_3, %c0_4] : memref<14x128xf32, #tpu.memory_space<vmem>>, vector<1x128xf32>
    %3 = arith.truncf %0 : vector<64x128xf32> to vector<64x128xbf16>
    %cst = arith.constant dense<0.000000e+00> : vector<64x128xf32>
    %4 = tpu.matmul %3, %1, %cst {dimension_numbers = #tpu.dot_dimension_numbers<[1], [0], [0], [1], [0, 0, 1, 1], [], []>} : vector<64x128xbf16>, vector<128x128xbf16>, vector<64x128xf32> -> vector<64x128xf32>
    %5 = vector.broadcast %2 : vector<1x128xf32> to vector<64x128xf32>
    %6 = arith.addf %4, %5 : vector<64x128xf32>
    %c0_5 = arith.constant 0 : index
    %c0_6 = arith.constant 0 : index
    %7 = vector.load %arg3[%c0_5, %c0_6] : memref<128x128xbf16, #tpu.memory_space<vmem>>, vector<128x128xbf16>
    %c1 = arith.constant 1 : index
    %c0_7 = arith.constant 0 : index
    %8 = vector.load %arg16[%c1, %c0_7] : memref<14x128xf32, #tpu.memory_space<vmem>>, vector<1x128xf32>
    %9 = arith.truncf %6 : vector<64x128xf32> to vector<64x128xbf16>
    %cst_8 = arith.constant dense<0.000000e+00> : vector<64x128xf32>
    %10 = tpu.matmul %9, %7, %cst_8 {dimension_numbers = #tpu.dot_dimension_numbers<[1], [0], [0], [1], [0, 0, 1, 1], [], []>} : vector<64x128xbf16>, vector<128x128xbf16>, vector<64x128xf32> -> vector<64x128xf32>
    %11 = vector.broadcast %8 : vector<1x128xf32> to vector<64x128xf32>
    %12 = arith.addf %10, %11 : vector<64x128xf32>
    %cst_9 = arith.constant 0.000000e+00 : f32
    %13 = vector.broadcast %cst_9 : f32 to vector<64x128xf32>
    %14 = arith.maximumf %12, %13 : vector<64x128xf32>
    %c0_10 = arith.constant 0 : index
    %c0_11 = arith.constant 0 : index
    %15 = vector.load %arg4[%c0_10, %c0_11] : memref<128x128xbf16, #tpu.memory_space<vmem>>, vector<128x128xbf16>
    %c2 = arith.constant 2 : index
    %c0_12 = arith.constant 0 : index
    %16 = vector.load %arg16[%c2, %c0_12] : memref<14x128xf32, #tpu.memory_space<vmem>>, vector<1x128xf32>
    %17 = arith.truncf %14 : vector<64x128xf32> to vector<64x128xbf16>
    %cst_13 = arith.constant dense<0.000000e+00> : vector<64x128xf32>
    %18 = tpu.matmul %17, %15, %cst_13 {dimension_numbers = #tpu.dot_dimension_numbers<[1], [0], [0], [1], [0, 0, 1, 1], [], []>} : vector<64x128xbf16>, vector<128x128xbf16>, vector<64x128xf32> -> vector<64x128xf32>
    %19 = vector.broadcast %16 : vector<1x128xf32> to vector<64x128xf32>
    %20 = arith.addf %18, %19 : vector<64x128xf32>
    %21 = arith.addf %6, %20 : vector<64x128xf32>
    %cst_14 = arith.constant 0.000000e+00 : f32
    %22 = vector.broadcast %cst_14 : f32 to vector<64x128xf32>
    %23 = arith.maximumf %21, %22 : vector<64x128xf32>
    %c0_15 = arith.constant 0 : index
    %c0_16 = arith.constant 0 : index
    %24 = vector.load %arg5[%c0_15, %c0_16] : memref<128x128xbf16, #tpu.memory_space<vmem>>, vector<128x128xbf16>
    %c3 = arith.constant 3 : index
    %c0_17 = arith.constant 0 : index
    %25 = vector.load %arg16[%c3, %c0_17] : memref<14x128xf32, #tpu.memory_space<vmem>>, vector<1x128xf32>
    %26 = arith.truncf %23 : vector<64x128xf32> to vector<64x128xbf16>
    %cst_18 = arith.constant dense<0.000000e+00> : vector<64x128xf32>
    %27 = tpu.matmul %26, %24, %cst_18 {dimension_numbers = #tpu.dot_dimension_numbers<[1], [0], [0], [1], [0, 0, 1, 1], [], []>} : vector<64x128xbf16>, vector<128x128xbf16>, vector<64x128xf32> -> vector<64x128xf32>
    %28 = vector.broadcast %25 : vector<1x128xf32> to vector<64x128xf32>
    %29 = arith.addf %27, %28 : vector<64x128xf32>
    %c0_19 = arith.constant 0 : index
    %c0_20 = arith.constant 0 : index
    %30 = vector.load %arg6[%c0_19, %c0_20] : memref<128x128xbf16, #tpu.memory_space<vmem>>, vector<128x128xbf16>
    %c4 = arith.constant 4 : index
    %c0_21 = arith.constant 0 : index
    %31 = vector.load %arg16[%c4, %c0_21] : memref<14x128xf32, #tpu.memory_space<vmem>>, vector<1x128xf32>
    %32 = arith.truncf %29 : vector<64x128xf32> to vector<64x128xbf16>
    %cst_22 = arith.constant dense<0.000000e+00> : vector<64x128xf32>
    %33 = tpu.matmul %32, %30, %cst_22 {dimension_numbers = #tpu.dot_dimension_numbers<[1], [0], [0], [1], [0, 0, 1, 1], [], []>} : vector<64x128xbf16>, vector<128x128xbf16>, vector<64x128xf32> -> vector<64x128xf32>
    %34 = vector.broadcast %31 : vector<1x128xf32> to vector<64x128xf32>
    %35 = arith.addf %33, %34 : vector<64x128xf32>
    %cst_23 = arith.constant 0.000000e+00 : f32
    %36 = vector.broadcast %cst_23 : f32 to vector<64x128xf32>
    %37 = arith.maximumf %35, %36 : vector<64x128xf32>
    %c0_24 = arith.constant 0 : index
    %c0_25 = arith.constant 0 : index
    %38 = vector.load %arg7[%c0_24, %c0_25] : memref<128x128xbf16, #tpu.memory_space<vmem>>, vector<128x128xbf16>
    %c5 = arith.constant 5 : index
    %c0_26 = arith.constant 0 : index
    %39 = vector.load %arg16[%c5, %c0_26] : memref<14x128xf32, #tpu.memory_space<vmem>>, vector<1x128xf32>
    %40 = arith.truncf %37 : vector<64x128xf32> to vector<64x128xbf16>
    %cst_27 = arith.constant dense<0.000000e+00> : vector<64x128xf32>
    %41 = tpu.matmul %40, %38, %cst_27 {dimension_numbers = #tpu.dot_dimension_numbers<[1], [0], [0], [1], [0, 0, 1, 1], [], []>} : vector<64x128xbf16>, vector<128x128xbf16>, vector<64x128xf32> -> vector<64x128xf32>
    %42 = vector.broadcast %39 : vector<1x128xf32> to vector<64x128xf32>
    %43 = arith.addf %41, %42 : vector<64x128xf32>
    %44 = arith.addf %29, %43 : vector<64x128xf32>
    %cst_28 = arith.constant 0.000000e+00 : f32
    %45 = vector.broadcast %cst_28 : f32 to vector<64x128xf32>
    %46 = arith.maximumf %44, %45 : vector<64x128xf32>
    %c0_29 = arith.constant 0 : index
    %c0_30 = arith.constant 0 : index
    %47 = vector.load %arg8[%c0_29, %c0_30] : memref<128x128xbf16, #tpu.memory_space<vmem>>, vector<128x128xbf16>
    %c6 = arith.constant 6 : index
    %c0_31 = arith.constant 0 : index
    %48 = vector.load %arg16[%c6, %c0_31] : memref<14x128xf32, #tpu.memory_space<vmem>>, vector<1x128xf32>
    %49 = arith.truncf %46 : vector<64x128xf32> to vector<64x128xbf16>
    %cst_32 = arith.constant dense<0.000000e+00> : vector<64x128xf32>
    %50 = tpu.matmul %49, %47, %cst_32 {dimension_numbers = #tpu.dot_dimension_numbers<[1], [0], [0], [1], [0, 0, 1, 1], [], []>} : vector<64x128xbf16>, vector<128x128xbf16>, vector<64x128xf32> -> vector<64x128xf32>
    %51 = vector.broadcast %48 : vector<1x128xf32> to vector<64x128xf32>
    %52 = arith.addf %50, %51 : vector<64x128xf32>
    %cst_33 = arith.constant dense<0xFF800000> : vector<64xf32>
    %53 = vector.multi_reduction <maximumf>, %52, %cst_33 [1] : vector<64x128xf32> to vector<64xf32>
    %54 = vector.shape_cast %53 : vector<64xf32> to vector<64x1xf32>
    %55 = vector.broadcast %54 : vector<64x1xf32> to vector<64x128xf32>
    %56 = arith.subf %52, %55 : vector<64x128xf32>
    %57 = math.exp %56 : vector<64x128xf32>
    %cst_34 = arith.constant dense<0.000000e+00> : vector<64xf32>
    %58 = vector.multi_reduction <add>, %57, %cst_34 [1] : vector<64x128xf32> to vector<64xf32>
    %59 = vector.shape_cast %58 : vector<64xf32> to vector<64x1xf32>
    %60 = vector.broadcast %59 : vector<64x1xf32> to vector<64x128xf32>
    %61 = arith.divf %57, %60 : vector<64x128xf32>
    %c0_35 = arith.constant 0 : index
    %c0_36 = arith.constant 0 : index
    %62 = vector.load %arg9[%c0_35, %c0_36] : memref<128x128xbf16, #tpu.memory_space<vmem>>, vector<128x128xbf16>
    %c7 = arith.constant 7 : index
    %c0_37 = arith.constant 0 : index
    %63 = vector.load %arg16[%c7, %c0_37] : memref<14x128xf32, #tpu.memory_space<vmem>>, vector<1x128xf32>
    %64 = arith.truncf %61 : vector<64x128xf32> to vector<64x128xbf16>
    %cst_38 = arith.constant dense<0.000000e+00> : vector<64x128xf32>
    %65 = tpu.matmul %64, %62, %cst_38 {dimension_numbers = #tpu.dot_dimension_numbers<[1], [0], [0], [1], [0, 0, 1, 1], [], []>} : vector<64x128xbf16>, vector<128x128xbf16>, vector<64x128xf32> -> vector<64x128xf32>
    %66 = vector.broadcast %63 : vector<1x128xf32> to vector<64x128xf32>
    %67 = arith.addf %65, %66 : vector<64x128xf32>
    %c0_39 = arith.constant 0 : index
    %c0_40 = arith.constant 0 : index
    %68 = vector.load %arg10[%c0_39, %c0_40] : memref<128x128xbf16, #tpu.memory_space<vmem>>, vector<128x128xbf16>
    %c8 = arith.constant 8 : index
    %c0_41 = arith.constant 0 : index
    %69 = vector.load %arg16[%c8, %c0_41] : memref<14x128xf32, #tpu.memory_space<vmem>>, vector<1x128xf32>
    %70 = arith.truncf %67 : vector<64x128xf32> to vector<64x128xbf16>
    %cst_42 = arith.constant dense<0.000000e+00> : vector<64x128xf32>
    %71 = tpu.matmul %70, %68, %cst_42 {dimension_numbers = #tpu.dot_dimension_numbers<[1], [0], [0], [1], [0, 0, 1, 1], [], []>} : vector<64x128xbf16>, vector<128x128xbf16>, vector<64x128xf32> -> vector<64x128xf32>
    %72 = vector.broadcast %69 : vector<1x128xf32> to vector<64x128xf32>
    %73 = arith.addf %71, %72 : vector<64x128xf32>
    %cst_43 = arith.constant 0.000000e+00 : f32
    %74 = vector.broadcast %cst_43 : f32 to vector<64x128xf32>
    %75 = arith.maximumf %73, %74 : vector<64x128xf32>
    %c0_44 = arith.constant 0 : index
    %c0_45 = arith.constant 0 : index
    %76 = vector.load %arg11[%c0_44, %c0_45] : memref<128x128xbf16, #tpu.memory_space<vmem>>, vector<128x128xbf16>
    %c9 = arith.constant 9 : index
    %c0_46 = arith.constant 0 : index
    %77 = vector.load %arg16[%c9, %c0_46] : memref<14x128xf32, #tpu.memory_space<vmem>>, vector<1x128xf32>
    %78 = arith.truncf %75 : vector<64x128xf32> to vector<64x128xbf16>
    %cst_47 = arith.constant dense<0.000000e+00> : vector<64x128xf32>
    %79 = tpu.matmul %78, %76, %cst_47 {dimension_numbers = #tpu.dot_dimension_numbers<[1], [0], [0], [1], [0, 0, 1, 1], [], []>} : vector<64x128xbf16>, vector<128x128xbf16>, vector<64x128xf32> -> vector<64x128xf32>
    %80 = vector.broadcast %77 : vector<1x128xf32> to vector<64x128xf32>
    %81 = arith.addf %79, %80 : vector<64x128xf32>
    %82 = arith.addf %67, %81 : vector<64x128xf32>
    %cst_48 = arith.constant 0.000000e+00 : f32
    %83 = vector.broadcast %cst_48 : f32 to vector<64x128xf32>
    %84 = arith.maximumf %82, %83 : vector<64x128xf32>
    %c0_49 = arith.constant 0 : index
    %c0_50 = arith.constant 0 : index
    %85 = vector.load %arg12[%c0_49, %c0_50] : memref<128x128xbf16, #tpu.memory_space<vmem>>, vector<128x128xbf16>
    %c10 = arith.constant 10 : index
    %c0_51 = arith.constant 0 : index
    %86 = vector.load %arg16[%c10, %c0_51] : memref<14x128xf32, #tpu.memory_space<vmem>>, vector<1x128xf32>
    %87 = arith.truncf %84 : vector<64x128xf32> to vector<64x128xbf16>
    %cst_52 = arith.constant dense<0.000000e+00> : vector<64x128xf32>
    %88 = tpu.matmul %87, %85, %cst_52 {dimension_numbers = #tpu.dot_dimension_numbers<[1], [0], [0], [1], [0, 0, 1, 1], [], []>} : vector<64x128xbf16>, vector<128x128xbf16>, vector<64x128xf32> -> vector<64x128xf32>
    %89 = vector.broadcast %86 : vector<1x128xf32> to vector<64x128xf32>
    %90 = arith.addf %88, %89 : vector<64x128xf32>
    %c0_53 = arith.constant 0 : index
    %c0_54 = arith.constant 0 : index
    %91 = vector.load %arg13[%c0_53, %c0_54] : memref<128x128xbf16, #tpu.memory_space<vmem>>, vector<128x128xbf16>
    %c11 = arith.constant 11 : index
    %c0_55 = arith.constant 0 : index
    %92 = vector.load %arg16[%c11, %c0_55] : memref<14x128xf32, #tpu.memory_space<vmem>>, vector<1x128xf32>
    %93 = arith.truncf %90 : vector<64x128xf32> to vector<64x128xbf16>
    %cst_56 = arith.constant dense<0.000000e+00> : vector<64x128xf32>
    %94 = tpu.matmul %93, %91, %cst_56 {dimension_numbers = #tpu.dot_dimension_numbers<[1], [0], [0], [1], [0, 0, 1, 1], [], []>} : vector<64x128xbf16>, vector<128x128xbf16>, vector<64x128xf32> -> vector<64x128xf32>
    %95 = vector.broadcast %92 : vector<1x128xf32> to vector<64x128xf32>
    %96 = arith.addf %94, %95 : vector<64x128xf32>
    %cst_57 = arith.constant 0.000000e+00 : f32
    %97 = vector.broadcast %cst_57 : f32 to vector<64x128xf32>
    %98 = arith.maximumf %96, %97 : vector<64x128xf32>
    %c0_58 = arith.constant 0 : index
    %c0_59 = arith.constant 0 : index
    %99 = vector.load %arg14[%c0_58, %c0_59] : memref<128x128xbf16, #tpu.memory_space<vmem>>, vector<128x128xbf16>
    %c12 = arith.constant 12 : index
    %c0_60 = arith.constant 0 : index
    %100 = vector.load %arg16[%c12, %c0_60] : memref<14x128xf32, #tpu.memory_space<vmem>>, vector<1x128xf32>
    %101 = arith.truncf %98 : vector<64x128xf32> to vector<64x128xbf16>
    %cst_61 = arith.constant dense<0.000000e+00> : vector<64x128xf32>
    %102 = tpu.matmul %101, %99, %cst_61 {dimension_numbers = #tpu.dot_dimension_numbers<[1], [0], [0], [1], [0, 0, 1, 1], [], []>} : vector<64x128xbf16>, vector<128x128xbf16>, vector<64x128xf32> -> vector<64x128xf32>
    %103 = vector.broadcast %100 : vector<1x128xf32> to vector<64x128xf32>
    %104 = arith.addf %102, %103 : vector<64x128xf32>
    %105 = arith.addf %90, %104 : vector<64x128xf32>
    %cst_62 = arith.constant 0.000000e+00 : f32
    %106 = vector.broadcast %cst_62 : f32 to vector<64x128xf32>
    %107 = arith.maximumf %105, %106 : vector<64x128xf32>
    %c0_63 = arith.constant 0 : index
    %c0_64 = arith.constant 0 : index
    %108 = vector.load %arg15[%c0_63, %c0_64] : memref<128x128xbf16, #tpu.memory_space<vmem>>, vector<128x128xbf16>
    %c13 = arith.constant 13 : index
    %c0_65 = arith.constant 0 : index
    %109 = vector.load %arg16[%c13, %c0_65] : memref<14x128xf32, #tpu.memory_space<vmem>>, vector<1x128xf32>
    %110 = arith.truncf %107 : vector<64x128xf32> to vector<64x128xbf16>
    %cst_66 = arith.constant dense<0.000000e+00> : vector<64x128xf32>
    %111 = tpu.matmul %110, %108, %cst_66 {dimension_numbers = #tpu.dot_dimension_numbers<[1], [0], [0], [1], [0, 0, 1, 1], [], []>} : vector<64x128xbf16>, vector<128x128xbf16>, vector<64x128xf32> -> vector<64x128xf32>
    %112 = vector.broadcast %109 : vector<1x128xf32> to vector<64x128xf32>
    %113 = arith.addf %111, %112 : vector<64x128xf32>
    %cst_67 = arith.constant dense<0xFF800000> : vector<64xf32>
    %114 = vector.multi_reduction <maximumf>, %113, %cst_67 [1] : vector<64x128xf32> to vector<64xf32>
    %115 = vector.shape_cast %114 : vector<64xf32> to vector<64x1xf32>
    %116 = vector.broadcast %115 : vector<64x1xf32> to vector<64x128xf32>
    %117 = arith.subf %113, %116 : vector<64x128xf32>
    %118 = math.exp %117 : vector<64x128xf32>
    %cst_68 = arith.constant dense<0.000000e+00> : vector<64xf32>
    %119 = vector.multi_reduction <add>, %118, %cst_68 [1] : vector<64x128xf32> to vector<64xf32>
    %120 = vector.shape_cast %119 : vector<64xf32> to vector<64x1xf32>
    %121 = vector.broadcast %120 : vector<64x1xf32> to vector<64x128xf32>
    %122 = arith.divf %118, %121 : vector<64x128xf32>
    %c0_69 = arith.constant 0 : index
    %c0_70 = arith.constant 0 : index
    %123 = vector.load %arg17[%c0_69, %c0_70] : memref<64x128xf32, #tpu.memory_space<vmem>>, vector<64x128xf32>
    tpu.vector_store %arg17[%c0_69, %c0_70], %61 {strides = array<i32>} : memref<64x128xf32, #tpu.memory_space<vmem>>, vector<64x128xf32>,
    %c0_71 = arith.constant 0 : index
    %c0_72 = arith.constant 0 : index
    %124 = vector.load %arg18[%c0_71, %c0_72] : memref<64x128xf32, #tpu.memory_space<vmem>>, vector<64x128xf32>
    tpu.vector_store %arg18[%c0_71, %c0_72], %122 {strides = array<i32>} : memref<64x128xf32, #tpu.memory_space<vmem>>, vector<64x128xf32>,
    return
  }
  func.func @transform_0(%arg0: i32) -> (i32, i32) {
    %c0_i32 = arith.constant 0 : i32
    %c0_i32_0 = arith.constant 0 : i32
    return %arg0, %c0_i32 : i32, i32
  }
  func.func @transform_1(%arg0: i32) -> (i32, i32) {
    %c0_i32 = arith.constant 0 : i32
    %c0_i32_0 = arith.constant 0 : i32
    %c0_i32_1 = arith.constant 0 : i32
    return %c0_i32, %c0_i32_0 : i32, i32
  }
  func.func @transform_2(%arg0: i32) -> (i32, i32) {
    %c0_i32 = arith.constant 0 : i32
    %c0_i32_0 = arith.constant 0 : i32
    %c0_i32_1 = arith.constant 0 : i32
    return %c0_i32, %c0_i32_0 : i32, i32
  }
  func.func @transform_3(%arg0: i32) -> (i32, i32) {
    %c0_i32 = arith.constant 0 : i32
    %c0_i32_0 = arith.constant 0 : i32
    %c0_i32_1 = arith.constant 0 : i32
    return %c0_i32, %c0_i32_0 : i32, i32
  }
  func.func @transform_4(%arg0: i32) -> (i32, i32) {
    %c0_i32 = arith.constant 0 : i32
    %c0_i32_0 = arith.constant 0 : i32
    %c0_i32_1 = arith.constant 0 : i32
    return %c0_i32, %c0_i32_0 : i32, i32
  }
  func.func @transform_5(%arg0: i32) -> (i32, i32) {
    %c0_i32 = arith.constant 0 : i32
    %c0_i32_0 = arith.constant 0 : i32
    %c0_i32_1 = arith.constant 0 : i32
    return %c0_i32, %c0_i32_0 : i32, i32
  }
  func.func @transform_6(%arg0: i32) -> (i32, i32) {
    %c0_i32 = arith.constant 0 : i32
    %c0_i32_0 = arith.constant 0 : i32
    %c0_i32_1 = arith.constant 0 : i32
    return %c0_i32, %c0_i32_0 : i32, i32
  }
  func.func @transform_7(%arg0: i32) -> (i32, i32) {
    %c0_i32 = arith.constant 0 : i32
    %c0_i32_0 = arith.constant 0 : i32
    %c0_i32_1 = arith.constant 0 : i32
    return %c0_i32, %c0_i32_0 : i32, i32
  }
  func.func @transform_8(%arg0: i32) -> (i32, i32) {
    %c0_i32 = arith.constant 0 : i32
    %c0_i32_0 = arith.constant 0 : i32
    %c0_i32_1 = arith.constant 0 : i32
    return %c0_i32, %c0_i32_0 : i32, i32
  }
  func.func @transform_9(%arg0: i32) -> (i32, i32) {
    %c0_i32 = arith.constant 0 : i32
    %c0_i32_0 = arith.constant 0 : i32
    %c0_i32_1 = arith.constant 0 : i32
    return %c0_i32, %c0_i32_0 : i32, i32
  }
  func.func @transform_10(%arg0: i32) -> (i32, i32) {
    %c0_i32 = arith.constant 0 : i32
    %c0_i32_0 = arith.constant 0 : i32
    %c0_i32_1 = arith.constant 0 : i32
    return %c0_i32, %c0_i32_0 : i32, i32
  }
  func.func @transform_11(%arg0: i32) -> (i32, i32) {
    %c0_i32 = arith.constant 0 : i32
    %c0_i32_0 = arith.constant 0 : i32
    %c0_i32_1 = arith.constant 0 : i32
    return %c0_i32, %c0_i32_0 : i32, i32
  }
  func.func @transform_12(%arg0: i32) -> (i32, i32) {
    %c0_i32 = arith.constant 0 : i32
    %c0_i32_0 = arith.constant 0 : i32
    %c0_i32_1 = arith.constant 0 : i32
    return %c0_i32, %c0_i32_0 : i32, i32
  }
  func.func @transform_13(%arg0: i32) -> (i32, i32) {
    %c0_i32 = arith.constant 0 : i32
    %c0_i32_0 = arith.constant 0 : i32
    %c0_i32_1 = arith.constant 0 : i32
    return %c0_i32, %c0_i32_0 : i32, i32
  }
  func.func @transform_14(%arg0: i32) -> (i32, i32) {
    %c0_i32 = arith.constant 0 : i32
    %c0_i32_0 = arith.constant 0 : i32
    %c0_i32_1 = arith.constant 0 : i32
    return %c0_i32, %c0_i32_0 : i32, i32
  }
  func.func @transform_15(%arg0: i32) -> (i32, i32) {
    %c0_i32 = arith.constant 0 : i32
    %c0_i32_0 = arith.constant 0 : i32
    %c0_i32_1 = arith.constant 0 : i32
    return %c0_i32, %c0_i32_0 : i32, i32
  }
  func.func @transform_16(%arg0: i32) -> (i32, i32) {
    %c0_i32 = arith.constant 0 : i32
    %c0_i32_0 = arith.constant 0 : i32
    return %arg0, %c0_i32 : i32, i32
  }
  func.func @transform_17(%arg0: i32) -> (i32, i32) {
    %c0_i32 = arith.constant 0 : i32
    %c0_i32_0 = arith.constant 0 : i32
    return %arg0, %c0_i32 : i32, i32
  }
}

module attributes {stable_mosaic.version = 11 : i64} {
  func.func @kernel(%arg0: i32, %arg1: memref<64x128xf32, #tpu.memory_space<vmem>>, %arg2: memref<128x128xbf16, #tpu.memory_space<vmem>>, %arg3: memref<128x128xbf16, #tpu.memory_space<vmem>>, %arg4: memref<128x128xbf16, #tpu.memory_space<vmem>>, %arg5: memref<128x128xbf16, #tpu.memory_space<vmem>>, %arg6: memref<128x128xbf16, #tpu.memory_space<vmem>>, %arg7: memref<128x128xbf16, #tpu.memory_space<vmem>>, %arg8: memref<128x128xbf16, #tpu.memory_space<vmem>>, %arg9: memref<128x128xbf16, #tpu.memory_space<vmem>>, %arg10: memref<128x128xbf16, #tpu.memory_space<vmem>>, %arg11: memref<128x128xbf16, #tpu.memory_space<vmem>>, %arg12: memref<128x128xbf16, #tpu.memory_space<vmem>>, %arg13: memref<128x128xbf16, #tpu.memory_space<vmem>>, %arg14: memref<128x128xbf16, #tpu.memory_space<vmem>>, %arg15: memref<128x128xbf16, #tpu.memory_space<vmem>>, %arg16: memref<14x128xf32, #tpu.memory_space<vmem>>, %arg17: memref<64x128xf32, #tpu.memory_space<vmem>>, %arg18: memref<64x128xf32, #tpu.memory_space<vmem>>) attributes {dimension_semantics = [#tpu.dimension_semantics<parallel>], iteration_bounds = array<i64: 4>, scalar_prefetch = 0 : i64, scratch_operands = 0 : i64, tpu.core_type = #tpu.core_type<tc>, window_params = [{transform_indices = @transform_0, window_bounds = array<i64: 64, 128>}, {pipeline_mode = #tpu.pipeline_mode<synchronous>, transform_indices = @transform_1, window_bounds = array<i64: 128, 128>}, {pipeline_mode = #tpu.pipeline_mode<synchronous>, transform_indices = @transform_2, window_bounds = array<i64: 128, 128>}, {pipeline_mode = #tpu.pipeline_mode<synchronous>, transform_indices = @transform_3, window_bounds = array<i64: 128, 128>}, {pipeline_mode = #tpu.pipeline_mode<synchronous>, transform_indices = @transform_4, window_bounds = array<i64: 128, 128>}, {pipeline_mode = #tpu.pipeline_mode<synchronous>, transform_indices = @transform_5, window_bounds = array<i64: 128, 128>}, {pipeline_mode = #tpu.pipeline_mode<synchronous>, transform_indices = @transform_6, window_bounds = array<i64: 128, 128>}, {pipeline_mode = #tpu.pipeline_mode<synchronous>, transform_indices = @transform_7, window_bounds = array<i64: 128, 128>}, {pipeline_mode = #tpu.pipeline_mode<synchronous>, transform_indices = @transform_8, window_bounds = array<i64: 128, 128>}, {pipeline_mode = #tpu.pipeline_mode<synchronous>, transform_indices = @transform_9, window_bounds = array<i64: 128, 128>}, {pipeline_mode = #tpu.pipeline_mode<synchronous>, transform_indices = @transform_10, window_bounds = array<i64: 128, 128>}, {pipeline_mode = #tpu.pipeline_mode<synchronous>, transform_indices = @transform_11, window_bounds = array<i64: 128, 128>}, {pipeline_mode = #tpu.pipeline_mode<synchronous>, transform_indices = @transform_12, window_bounds = array<i64: 128, 128>}, {pipeline_mode = #tpu.pipeline_mode<synchronous>, transform_indices = @transform_13, window_bounds = array<i64: 128, 128>}, {pipeline_mode = #tpu.pipeline_mode<synchronous>, transform_indices = @transform_14, window_bounds = array<i64: 128, 128>}, {pipeline_mode = #tpu.pipeline_mode<synchronous>, transform_indices = @transform_15, window_bounds = array<i64: 14, 128>}, {transform_indices = @transform_16, window_bounds = array<i64: 64, 128>}, {transform_indices = @transform_17, window_bounds = array<i64: 64, 128>}]} {
    %c0 = arith.constant 0 : index
    %c0_0 = arith.constant 0 : index
    %0 = vector.load %arg1[%c0, %c0_0] : memref<64x128xf32, #tpu.memory_space<vmem>>, vector<64x128xf32>
    %c0_1 = arith.constant 0 : index
    %c0_2 = arith.constant 0 : index
    %1 = vector.load %arg2[%c0_1, %c0_2] : memref<128x128xbf16, #tpu.memory_space<vmem>>, vector<128x128xbf16>
    %c0_3 = arith.constant 0 : index
    %c0_4 = arith.constant 0 : index
    %2 = vector.load %arg16[%c0_3, %c0_4] : memref<14x128xf32, #tpu.memory_space<vmem>>, vector<1x128xf32>
    %3 = arith.truncf %0 : vector<64x128xf32> to vector<64x128xbf16>
    %cst = arith.constant dense<0.000000e+00> : vector<64x128xf32>
    %4 = tpu.matmul %3, %1, %cst {dimension_numbers = #tpu.dot_dimension_numbers<[1], [0], [0], [1], [0, 0, 1, 1], [], []>} : vector<64x128xbf16>, vector<128x128xbf16>, vector<64x128xf32> -> vector<64x128xf32>
    %5 = vector.broadcast %2 : vector<1x128xf32> to vector<64x128xf32>
    %6 = arith.addf %4, %5 : vector<64x128xf32>
    %c0_5 = arith.constant 0 : index
    %c0_6 = arith.constant 0 : index
    %7 = vector.load %arg3[%c0_5, %c0_6] : memref<128x128xbf16, #tpu.memory_space<vmem>>, vector<128x128xbf16>
    %c1 = arith.constant 1 : index
    %c0_7 = arith.constant 0 : index
    %8 = vector.load %arg16[%c1, %c0_7] : memref<14x128xf32, #tpu.memory_space<vmem>>, vector<1x128xf32>
    %9 = arith.truncf %6 : vector<64x128xf32> to vector<64x128xbf16>
    %cst_8 = arith.constant dense<0.000000e+00> : vector<64x128xf32>
    %10 = tpu.matmul %9, %7, %cst_8 {dimension_numbers = #tpu.dot_dimension_numbers<[1], [0], [0], [1], [0, 0, 1, 1], [], []>} : vector<64x128xbf16>, vector<128x128xbf16>, vector<64x128xf32> -> vector<64x128xf32>
    %11 = vector.broadcast %8 : vector<1x128xf32> to vector<64x128xf32>
    %12 = arith.addf %10, %11 : vector<64x128xf32>
    %cst_9 = arith.constant 0.000000e+00 : f32
    %13 = vector.broadcast %cst_9 : f32 to vector<64x128xf32>
    %14 = arith.maximumf %12, %13 : vector<64x128xf32>
    %c0_10 = arith.constant 0 : index
    %c0_11 = arith.constant 0 : index
    %15 = vector.load %arg4[%c0_10, %c0_11] : memref<128x128xbf16, #tpu.memory_space<vmem>>, vector<128x128xbf16>
    %c2 = arith.constant 2 : index
    %c0_12 = arith.constant 0 : index
    %16 = vector.load %arg16[%c2, %c0_12] : memref<14x128xf32, #tpu.memory_space<vmem>>, vector<1x128xf32>
    %17 = arith.truncf %14 : vector<64x128xf32> to vector<64x128xbf16>
    %cst_13 = arith.constant dense<0.000000e+00> : vector<64x128xf32>
    %18 = tpu.matmul %17, %15, %cst_13 {dimension_numbers = #tpu.dot_dimension_numbers<[1], [0], [0], [1], [0, 0, 1, 1], [], []>} : vector<64x128xbf16>, vector<128x128xbf16>, vector<64x128xf32> -> vector<64x128xf32>
    %19 = vector.broadcast %16 : vector<1x128xf32> to vector<64x128xf32>
    %20 = arith.addf %18, %19 : vector<64x128xf32>
    %21 = arith.addf %6, %20 : vector<64x128xf32>
    %cst_14 = arith.constant 0.000000e+00 : f32
    %22 = vector.broadcast %cst_14 : f32 to vector<64x128xf32>
    %23 = arith.maximumf %21, %22 : vector<64x128xf32>
    %c0_15 = arith.constant 0 : index
    %c0_16 = arith.constant 0 : index
    %24 = vector.load %arg5[%c0_15, %c0_16] : memref<128x128xbf16, #tpu.memory_space<vmem>>, vector<128x128xbf16>
    %c3 = arith.constant 3 : index
    %c0_17 = arith.constant 0 : index
    %25 = vector.load %arg16[%c3, %c0_17] : memref<14x128xf32, #tpu.memory_space<vmem>>, vector<1x128xf32>
    %26 = arith.truncf %23 : vector<64x128xf32> to vector<64x128xbf16>
    %cst_18 = arith.constant dense<0.000000e+00> : vector<64x128xf32>
    %27 = tpu.matmul %26, %24, %cst_18 {dimension_numbers = #tpu.dot_dimension_numbers<[1], [0], [0], [1], [0, 0, 1, 1], [], []>} : vector<64x128xbf16>, vector<128x128xbf16>, vector<64x128xf32> -> vector<64x128xf32>
    %28 = vector.broadcast %25 : vector<1x128xf32> to vector<64x128xf32>
    %29 = arith.addf %27, %28 : vector<64x128xf32>
    %c0_19 = arith.constant 0 : index
    %c0_20 = arith.constant 0 : index
    %30 = vector.load %arg6[%c0_19, %c0_20] : memref<128x128xbf16, #tpu.memory_space<vmem>>, vector<128x128xbf16>
    %c4 = arith.constant 4 : index
    %c0_21 = arith.constant 0 : index
    %31 = vector.load %arg16[%c4, %c0_21] : memref<14x128xf32, #tpu.memory_space<vmem>>, vector<1x128xf32>
    %32 = arith.truncf %29 : vector<64x128xf32> to vector<64x128xbf16>
    %cst_22 = arith.constant dense<0.000000e+00> : vector<64x128xf32>
    %33 = tpu.matmul %32, %30, %cst_22 {dimension_numbers = #tpu.dot_dimension_numbers<[1], [0], [0], [1], [0, 0, 1, 1], [], []>} : vector<64x128xbf16>, vector<128x128xbf16>, vector<64x128xf32> -> vector<64x128xf32>
    %34 = vector.broadcast %31 : vector<1x128xf32> to vector<64x128xf32>
    %35 = arith.addf %33, %34 : vector<64x128xf32>
    %cst_23 = arith.constant 0.000000e+00 : f32
    %36 = vector.broadcast %cst_23 : f32 to vector<64x128xf32>
    %37 = arith.maximumf %35, %36 : vector<64x128xf32>
    %c0_24 = arith.constant 0 : index
    %c0_25 = arith.constant 0 : index
    %38 = vector.load %arg7[%c0_24, %c0_25] : memref<128x128xbf16, #tpu.memory_space<vmem>>, vector<128x128xbf16>
    %c5 = arith.constant 5 : index
    %c0_26 = arith.constant 0 : index
    %39 = vector.load %arg16[%c5, %c0_26] : memref<14x128xf32, #tpu.memory_space<vmem>>, vector<1x128xf32>
    %40 = arith.truncf %37 : vector<64x128xf32> to vector<64x128xbf16>
    %cst_27 = arith.constant dense<0.000000e+00> : vector<64x128xf32>
    %41 = tpu.matmul %40, %38, %cst_27 {dimension_numbers = #tpu.dot_dimension_numbers<[1], [0], [0], [1], [0, 0, 1, 1], [], []>} : vector<64x128xbf16>, vector<128x128xbf16>, vector<64x128xf32> -> vector<64x128xf32>
    %42 = vector.broadcast %39 : vector<1x128xf32> to vector<64x128xf32>
    %43 = arith.addf %41, %42 : vector<64x128xf32>
    %44 = arith.addf %29, %43 : vector<64x128xf32>
    %cst_28 = arith.constant 0.000000e+00 : f32
    %45 = vector.broadcast %cst_28 : f32 to vector<64x128xf32>
    %46 = arith.maximumf %44, %45 : vector<64x128xf32>
    %c0_29 = arith.constant 0 : index
    %c0_30 = arith.constant 0 : index
    %47 = vector.load %arg8[%c0_29, %c0_30] : memref<128x128xbf16, #tpu.memory_space<vmem>>, vector<128x128xbf16>
    %c6 = arith.constant 6 : index
    %c0_31 = arith.constant 0 : index
    %48 = vector.load %arg16[%c6, %c0_31] : memref<14x128xf32, #tpu.memory_space<vmem>>, vector<1x128xf32>
    %49 = arith.truncf %46 : vector<64x128xf32> to vector<64x128xbf16>
    %cst_32 = arith.constant dense<0.000000e+00> : vector<64x128xf32>
    %50 = tpu.matmul %49, %47, %cst_32 {dimension_numbers = #tpu.dot_dimension_numbers<[1], [0], [0], [1], [0, 0, 1, 1], [], []>} : vector<64x128xbf16>, vector<128x128xbf16>, vector<64x128xf32> -> vector<64x128xf32>
    %51 = vector.broadcast %48 : vector<1x128xf32> to vector<64x128xf32>
    %52 = arith.addf %50, %51 : vector<64x128xf32>
    %cst_33 = arith.constant dense<0xFF800000> : vector<64xf32>
    %53 = vector.multi_reduction <maximumf>, %52, %cst_33 [1] : vector<64x128xf32> to vector<64xf32>
    %54 = vector.shape_cast %53 : vector<64xf32> to vector<64x1xf32>
    %55 = vector.broadcast %54 : vector<64x1xf32> to vector<64x128xf32>
    %56 = arith.subf %52, %55 : vector<64x128xf32>
    %57 = math.exp %56 : vector<64x128xf32>
    %cst_34 = arith.constant dense<0.000000e+00> : vector<64xf32>
    %58 = vector.multi_reduction <add>, %57, %cst_34 [1] : vector<64x128xf32> to vector<64xf32>
    %59 = vector.shape_cast %58 : vector<64xf32> to vector<64x1xf32>
    %60 = vector.broadcast %59 : vector<64x1xf32> to vector<64x128xf32>
    %61 = arith.divf %57, %60 : vector<64x128xf32>
    %c0_35 = arith.constant 0 : index
    %c0_36 = arith.constant 0 : index
    %62 = vector.load %arg9[%c0_35, %c0_36] : memref<128x128xbf16, #tpu.memory_space<vmem>>, vector<128x128xbf16>
    %c7 = arith.constant 7 : index
    %c0_37 = arith.constant 0 : index
    %63 = vector.load %arg16[%c7, %c0_37] : memref<14x128xf32, #tpu.memory_space<vmem>>, vector<1x128xf32>
    %64 = arith.truncf %61 : vector<64x128xf32> to vector<64x128xbf16>
    %cst_38 = arith.constant dense<0.000000e+00> : vector<64x128xf32>
    %65 = tpu.matmul %64, %62, %cst_38 {dimension_numbers = #tpu.dot_dimension_numbers<[1], [0], [0], [1], [0, 0, 1, 1], [], []>} : vector<64x128xbf16>, vector<128x128xbf16>, vector<64x128xf32> -> vector<64x128xf32>
    %66 = vector.broadcast %63 : vector<1x128xf32> to vector<64x128xf32>
    %67 = arith.addf %65, %66 : vector<64x128xf32>
    %c0_39 = arith.constant 0 : index
    %c0_40 = arith.constant 0 : index
    %68 = vector.load %arg10[%c0_39, %c0_40] : memref<128x128xbf16, #tpu.memory_space<vmem>>, vector<128x128xbf16>
    %c8 = arith.constant 8 : index
    %c0_41 = arith.constant 0 : index
    %69 = vector.load %arg16[%c8, %c0_41] : memref<14x128xf32, #tpu.memory_space<vmem>>, vector<1x128xf32>
    %70 = arith.truncf %67 : vector<64x128xf32> to vector<64x128xbf16>
    %cst_42 = arith.constant dense<0.000000e+00> : vector<64x128xf32>
    %71 = tpu.matmul %70, %68, %cst_42 {dimension_numbers = #tpu.dot_dimension_numbers<[1], [0], [0], [1], [0, 0, 1, 1], [], []>} : vector<64x128xbf16>, vector<128x128xbf16>, vector<64x128xf32> -> vector<64x128xf32>
    %72 = vector.broadcast %69 : vector<1x128xf32> to vector<64x128xf32>
    %73 = arith.addf %71, %72 : vector<64x128xf32>
    %cst_43 = arith.constant 0.000000e+00 : f32
    %74 = vector.broadcast %cst_43 : f32 to vector<64x128xf32>
    %75 = arith.maximumf %73, %74 : vector<64x128xf32>
    %c0_44 = arith.constant 0 : index
    %c0_45 = arith.constant 0 : index
    %76 = vector.load %arg11[%c0_44, %c0_45] : memref<128x128xbf16, #tpu.memory_space<vmem>>, vector<128x128xbf16>
    %c9 = arith.constant 9 : index
    %c0_46 = arith.constant 0 : index
    %77 = vector.load %arg16[%c9, %c0_46] : memref<14x128xf32, #tpu.memory_space<vmem>>, vector<1x128xf32>
    %78 = arith.truncf %75 : vector<64x128xf32> to vector<64x128xbf16>
    %cst_47 = arith.constant dense<0.000000e+00> : vector<64x128xf32>
    %79 = tpu.matmul %78, %76, %cst_47 {dimension_numbers = #tpu.dot_dimension_numbers<[1], [0], [0], [1], [0, 0, 1, 1], [], []>} : vector<64x128xbf16>, vector<128x128xbf16>, vector<64x128xf32> -> vector<64x128xf32>
    %80 = vector.broadcast %77 : vector<1x128xf32> to vector<64x128xf32>
    %81 = arith.addf %79, %80 : vector<64x128xf32>
    %82 = arith.addf %67, %81 : vector<64x128xf32>
    %cst_48 = arith.constant 0.000000e+00 : f32
    %83 = vector.broadcast %cst_48 : f32 to vector<64x128xf32>
    %84 = arith.maximumf %82, %83 : vector<64x128xf32>
    %c0_49 = arith.constant 0 : index
    %c0_50 = arith.constant 0 : index
    %85 = vector.load %arg12[%c0_49, %c0_50] : memref<128x128xbf16, #tpu.memory_space<vmem>>, vector<128x128xbf16>
    %c10 = arith.constant 10 : index
    %c0_51 = arith.constant 0 : index
    %86 = vector.load %arg16[%c10, %c0_51] : memref<14x128xf32, #tpu.memory_space<vmem>>, vector<1x128xf32>
    %87 = arith.truncf %84 : vector<64x128xf32> to vector<64x128xbf16>
    %cst_52 = arith.constant dense<0.000000e+00> : vector<64x128xf32>
    %88 = tpu.matmul %87, %85, %cst_52 {dimension_numbers = #tpu.dot_dimension_numbers<[1], [0], [0], [1], [0, 0, 1, 1], [], []>} : vector<64x128xbf16>, vector<128x128xbf16>, vector<64x128xf32> -> vector<64x128xf32>
    %89 = vector.broadcast %86 : vector<1x128xf32> to vector<64x128xf32>
    %90 = arith.addf %88, %89 : vector<64x128xf32>
    %c0_53 = arith.constant 0 : index
    %c0_54 = arith.constant 0 : index
    %91 = vector.load %arg13[%c0_53, %c0_54] : memref<128x128xbf16, #tpu.memory_space<vmem>>, vector<128x128xbf16>
    %c11 = arith.constant 11 : index
    %c0_55 = arith.constant 0 : index
    %92 = vector.load %arg16[%c11, %c0_55] : memref<14x128xf32, #tpu.memory_space<vmem>>, vector<1x128xf32>
    %93 = arith.truncf %90 : vector<64x128xf32> to vector<64x128xbf16>
    %cst_56 = arith.constant dense<0.000000e+00> : vector<64x128xf32>
    %94 = tpu.matmul %93, %91, %cst_56 {dimension_numbers = #tpu.dot_dimension_numbers<[1], [0], [0], [1], [0, 0, 1, 1], [], []>} : vector<64x128xbf16>, vector<128x128xbf16>, vector<64x128xf32> -> vector<64x128xf32>
    %95 = vector.broadcast %92 : vector<1x128xf32> to vector<64x128xf32>
    %96 = arith.addf %94, %95 : vector<64x128xf32>
    %cst_57 = arith.constant 0.000000e+00 : f32
    %97 = vector.broadcast %cst_57 : f32 to vector<64x128xf32>
    %98 = arith.maximumf %96, %97 : vector<64x128xf32>
    %c0_58 = arith.constant 0 : index
    %c0_59 = arith.constant 0 : index
    %99 = vector.load %arg14[%c0_58, %c0_59] : memref<128x128xbf16, #tpu.memory_space<vmem>>, vector<128x128xbf16>
    %c12 = arith.constant 12 : index
    %c0_60 = arith.constant 0 : index
    %100 = vector.load %arg16[%c12, %c0_60] : memref<14x128xf32, #tpu.memory_space<vmem>>, vector<1x128xf32>
    %101 = arith.truncf %98 : vector<64x128xf32> to vector<64x128xbf16>
    %cst_61 = arith.constant dense<0.000000e+00> : vector<64x128xf32>
    %102 = tpu.matmul %101, %99, %cst_61 {dimension_numbers = #tpu.dot_dimension_numbers<[1], [0], [0], [1], [0, 0, 1, 1], [], []>} : vector<64x128xbf16>, vector<128x128xbf16>, vector<64x128xf32> -> vector<64x128xf32>
    %103 = vector.broadcast %100 : vector<1x128xf32> to vector<64x128xf32>
    %104 = arith.addf %102, %103 : vector<64x128xf32>
    %105 = arith.addf %90, %104 : vector<64x128xf32>
    %cst_62 = arith.constant 0.000000e+00 : f32
    %106 = vector.broadcast %cst_62 : f32 to vector<64x128xf32>
    %107 = arith.maximumf %105, %106 : vector<64x128xf32>
    %c0_63 = arith.constant 0 : index
    %c0_64 = arith.constant 0 : index
    %108 = vector.load %arg15[%c0_63, %c0_64] : memref<128x128xbf16, #tpu.memory_space<vmem>>, vector<128x128xbf16>
    %c13 = arith.constant 13 : index
    %c0_65 = arith.constant 0 : index
    %109 = vector.load %arg16[%c13, %c0_65] : memref<14x128xf32, #tpu.memory_space<vmem>>, vector<1x128xf32>
    %110 = arith.truncf %107 : vector<64x128xf32> to vector<64x128xbf16>
    %cst_66 = arith.constant dense<0.000000e+00> : vector<64x128xf32>
    %111 = tpu.matmul %110, %108, %cst_66 {dimension_numbers = #tpu.dot_dimension_numbers<[1], [0], [0], [1], [0, 0, 1, 1], [], []>} : vector<64x128xbf16>, vector<128x128xbf16>, vector<64x128xf32> -> vector<64x128xf32>
    %112 = vector.broadcast %109 : vector<1x128xf32> to vector<64x128xf32>
    %113 = arith.addf %111, %112 : vector<64x128xf32>
    %cst_67 = arith.constant dense<0xFF800000> : vector<64xf32>
    %114 = vector.multi_reduction <maximumf>, %113, %cst_67 [1] : vector<64x128xf32> to vector<64xf32>
    %115 = vector.shape_cast %114 : vector<64xf32> to vector<64x1xf32>
    %116 = vector.broadcast %115 : vector<64x1xf32> to vector<64x128xf32>
    %117 = arith.subf %113, %116 : vector<64x128xf32>
    %118 = math.exp %117 : vector<64x128xf32>
    %cst_68 = arith.constant dense<0.000000e+00> : vector<64xf32>
    %119 = vector.multi_reduction <add>, %118, %cst_68 [1] : vector<64x128xf32> to vector<64xf32>
    %120 = vector.shape_cast %119 : vector<64xf32> to vector<64x1xf32>
    %121 = vector.broadcast %120 : vector<64x1xf32> to vector<64x128xf32>
    %122 = arith.divf %118, %121 : vector<64x128xf32>
    %c0_69 = arith.constant 0 : index
    %c0_70 = arith.constant 0 : index
    %123 = vector.load %arg17[%c0_69, %c0_70] : memref<64x128xf32, #tpu.memory_space<vmem>>, vector<64x128xf32>
    tpu.vector_store %arg17[%c0_69, %c0_70], %61 {strides = array<i32>} : memref<64x128xf32, #tpu.memory_space<vmem>>, vector<64x128xf32>,
    %c0_71 = arith.constant 0 : index
    %c0_72 = arith.constant 0 : index
    %124 = vector.load %arg18[%c0_71, %c0_72] : memref<64x128xf32, #tpu.memory_space<vmem>>, vector<64x128xf32>
    tpu.vector_store %arg18[%c0_71, %c0_72], %122 {strides = array<i32>} : memref<64x128xf32, #tpu.memory_space<vmem>>, vector<64x128xf32>,
    return
  }
  func.func @transform_0(%arg0: i32) -> (i32, i32) {
    %c0_i32 = arith.constant 0 : i32
    %c0_i32_0 = arith.constant 0 : i32
    return %arg0, %c0_i32 : i32, i32
  }
  func.func @transform_1(%arg0: i32) -> (i32, i32) {
    %c0_i32 = arith.constant 0 : i32
    %c0_i32_0 = arith.constant 0 : i32
    %c0_i32_1 = arith.constant 0 : i32
    return %c0_i32, %c0_i32_0 : i32, i32
  }
  func.func @transform_2(%arg0: i32) -> (i32, i32) {
    %c0_i32 = arith.constant 0 : i32
    %c0_i32_0 = arith.constant 0 : i32
    %c0_i32_1 = arith.constant 0 : i32
    return %c0_i32, %c0_i32_0 : i32, i32
  }
  func.func @transform_3(%arg0: i32) -> (i32, i32) {
    %c0_i32 = arith.constant 0 : i32
    %c0_i32_0 = arith.constant 0 : i32
    %c0_i32_1 = arith.constant 0 : i32
    return %c0_i32, %c0_i32_0 : i32, i32
  }
  func.func @transform_4(%arg0: i32) -> (i32, i32) {
    %c0_i32 = arith.constant 0 : i32
    %c0_i32_0 = arith.constant 0 : i32
    %c0_i32_1 = arith.constant 0 : i32
    return %c0_i32, %c0_i32_0 : i32, i32
  }
  func.func @transform_5(%arg0: i32) -> (i32, i32) {
    %c0_i32 = arith.constant 0 : i32
    %c0_i32_0 = arith.constant 0 : i32
    %c0_i32_1 = arith.constant 0 : i32
    return %c0_i32, %c0_i32_0 : i32, i32
  }
  func.func @transform_6(%arg0: i32) -> (i32, i32) {
    %c0_i32 = arith.constant 0 : i32
    %c0_i32_0 = arith.constant 0 : i32
    %c0_i32_1 = arith.constant 0 : i32
    return %c0_i32, %c0_i32_0 : i32, i32
  }
  func.func @transform_7(%arg0: i32) -> (i32, i32) {
    %c0_i32 = arith.constant 0 : i32
    %c0_i32_0 = arith.constant 0 : i32
    %c0_i32_1 = arith.constant 0 : i32
    return %c0_i32, %c0_i32_0 : i32, i32
  }
  func.func @transform_8(%arg0: i32) -> (i32, i32) {
    %c0_i32 = arith.constant 0 : i32
    %c0_i32_0 = arith.constant 0 : i32
    %c0_i32_1 = arith.constant 0 : i32
    return %c0_i32, %c0_i32_0 : i32, i32
  }
  func.func @transform_9(%arg0: i32) -> (i32, i32) {
    %c0_i32 = arith.constant 0 : i32
    %c0_i32_0 = arith.constant 0 : i32
    %c0_i32_1 = arith.constant 0 : i32
    return %c0_i32, %c0_i32_0 : i32, i32
  }
  func.func @transform_10(%arg0: i32) -> (i32, i32) {
    %c0_i32 = arith.constant 0 : i32
    %c0_i32_0 = arith.constant 0 : i32
    %c0_i32_1 = arith.constant 0 : i32
    return %c0_i32, %c0_i32_0 : i32, i32
  }
  func.func @transform_11(%arg0: i32) -> (i32, i32) {
    %c0_i32 = arith.constant 0 : i32
    %c0_i32_0 = arith.constant 0 : i32
    %c0_i32_1 = arith.constant 0 : i32
    return %c0_i32, %c0_i32_0 : i32, i32
  }
  func.func @transform_12(%arg0: i32) -> (i32, i32) {
    %c0_i32 = arith.constant 0 : i32
    %c0_i32_0 = arith.constant 0 : i32
    %c0_i32_1 = arith.constant 0 : i32
    return %c0_i32, %c0_i32_0 : i32, i32
  }
  func.func @transform_13(%arg0: i32) -> (i32, i32) {
    %c0_i32 = arith.constant 0 : i32
    %c0_i32_0 = arith.constant 0 : i32
    %c0_i32_1 = arith.constant 0 : i32
    return %c0_i32, %c0_i32_0 : i32, i32
  }
  func.func @transform_14(%arg0: i32) -> (i32, i32) {
    %c0_i32 = arith.constant 0 : i32
    %c0_i32_0 = arith.constant 0 : i32
    %c0_i32_1 = arith.constant 0 : i32
    return %c0_i32, %c0_i32_0 : i32, i32
  }
  func.func @transform_15(%arg0: i32) -> (i32, i32) {
    %c0_i32 = arith.constant 0 : i32
    %c0_i32_0 = arith.constant 0 : i32
    %c0_i32_1 = arith.constant 0 : i32
    return %c0_i32, %c0_i32_0 : i32, i32
  }
  func.func @transform_16(%arg0: i32) -> (i32, i32) {
    %c0_i32 = arith.constant 0 : i32
    %c0_i32_0 = arith.constant 0 : i32
    return %arg0, %c0_i32 : i32, i32
  }
  func.func @transform_17(%arg0: i32) -> (i32, i32) {
    %c0_i32 = arith.constant 0 : i32
    %c0_i32_0 = arith.constant 0 : i32
    return %arg0, %c0_i32 : i32, i32
  }
}

</mosaic_0001>

<llo_original>
// kernel: tpu_custom_call.1
$region0: #{tpu_custom_call.1}
  #allocation0 [shape = 'u32[]', space=smem, size = 0x4, offset = 0x4, fixed_abs, tag = 'smem constant byte address 0x4 - core index']
  #allocation1 [shape = 'u32[72,128]{1,0:T(1,128)}', space=vmem, size = 0x9000, scoped, tag = 'internal scratch']
  %s0 = inlined_call_operand.hbm [shape: f32[256,128], index: 0, kind: input, shape index: {}]
  %s1 = inlined_call_operand.hbm [shape: bf16[128,128], index: 1, kind: input, shape index: {}]
  %s2 = inlined_call_operand.hbm [shape: bf16[128,128], index: 2, kind: input, shape index: {}]
  %s3 = inlined_call_operand.hbm [shape: bf16[128,128], index: 3, kind: input, shape index: {}]
  %s4 = inlined_call_operand.hbm [shape: bf16[128,128], index: 4, kind: input, shape index: {}]
  %s5 = inlined_call_operand.hbm [shape: bf16[128,128], index: 5, kind: input, shape index: {}]
  %s6 = inlined_call_operand.hbm [shape: bf16[128,128], index: 6, kind: input, shape index: {}]
  %s7 = inlined_call_operand.hbm [shape: bf16[128,128], index: 7, kind: input, shape index: {}]
  %s8 = inlined_call_operand.hbm [shape: bf16[128,128], index: 8, kind: input, shape index: {}]
  %s9 = inlined_call_operand.hbm [shape: bf16[128,128], index: 9, kind: input, shape index: {}]
  %s10 = inlined_call_operand.hbm [shape: bf16[128,128], index: 10, kind: input, shape index: {}]
  %s11 = inlined_call_operand.hbm [shape: bf16[128,128], index: 11, kind: input, shape index: {}]
  %s12 = inlined_call_operand.hbm [shape: bf16[128,128], index: 12, kind: input, shape index: {}]
  %s13 = inlined_call_operand.hbm [shape: bf16[128,128], index: 13, kind: input, shape index: {}]
  %s14 = inlined_call_operand.hbm [shape: bf16[128,128], index: 14, kind: input, shape index: {}]
  %s15 = inlined_call_operand.hbm [shape: f32[14,128], index: 15, kind: input, shape index: {}]
  %s16 = inlined_call_operand.hbm [shape: f32[256,128], index: 16, kind: output, shape index: {0}]
  %s17 = inlined_call_operand.hbm [shape: f32[256,128], index: 17, kind: output, shape index: {1}]
  %18 = xla_tuple %s16, %s17
  %s19 = sld [smem:[#allocation0]]
  $region169: #{tpu_custom_call.1} parent=0
    _
  %s21 = ssub.s32 1, %s19
  %s22 = scalar_select 0, %s21, %s19
  $region1: #{tpu_custom_call.1} parent=0
    #allocation2 [shape = 'u8[65536]{0}', space=vmem, size = 0x10000, scoped, tag = 'input window, operand 0']
    #allocation3 [shape = 's32[2]{0}', space=sflag, size = 0x8, scoped, tag = 'scoped memory for tpu_custom_call.1']
    #allocation4 [shape = 's32[2]{0}', space=sflag, size = 0x8, scoped, tag = 'scoped memory for tpu_custom_call.1']
    #allocation5 [shape = 'u8[32768]{0}', space=vmem, size = 0x8000, scoped, tag = 'input window, operand 1, single buffered']
    #allocation6 [shape = 's32[1]{0}', space=sflag, size = 0x4, scoped, tag = 'scoped memory for tpu_custom_call.1']
    #allocation7 [shape = 'u8[32768]{0}', space=vmem, size = 0x8000, scoped, tag = 'input window, operand 2, single buffered']
    #allocation8 [shape = 'u8[32768]{0}', space=vmem, size = 0x8000, scoped, tag = 'input window, operand 3, single buffered']
    #allocation9 [shape = 's32[1]{0}', space=sflag, size = 0x4, scoped, tag = 'scoped memory for tpu_custom_call.1']
    #allocation10 [shape = 'u8[32768]{0}', space=vmem, size = 0x8000, scoped, tag = 'input window, operand 4, single buffered']
    #allocation11 [shape = 'u8[32768]{0}', space=vmem, size = 0x8000, scoped, tag = 'input window, operand 5, single buffered']
    #allocation12 [shape = 's32[1]{0}', space=sflag, size = 0x4, scoped, tag = 'scoped memory for tpu_custom_call.1']
    #allocation13 [shape = 'u8[32768]{0}', space=vmem, size = 0x8000, scoped, tag = 'input window, operand 6, single buffered']
    #allocation14 [shape = 'u8[32768]{0}', space=vmem, size = 0x8000, scoped, tag = 'input window, operand 7, single buffered']
    #allocation15 [shape = 's32[1]{0}', space=sflag, size = 0x4, scoped, tag = 'scoped memory for tpu_custom_call.1']
    #allocation16 [shape = 'u8[32768]{0}', space=vmem, size = 0x8000, scoped, tag = 'input window, operand 8, single buffered']
    #allocation17 [shape = 'u8[32768]{0}', space=vmem, size = 0x8000, scoped, tag = 'input window, operand 9, single buffered']
    #allocation18 [shape = 's32[1]{0}', space=sflag, size = 0x4, scoped, tag = 'scoped memory for tpu_custom_call.1']
    #allocation19 [shape = 'u8[32768]{0}', space=vmem, size = 0x8000, scoped, tag = 'input window, operand 10, single buffered']
    #allocation20 [shape = 'u8[32768]{0}', space=vmem, size = 0x8000, scoped, tag = 'input window, operand 11, single buffered']
    #allocation21 [shape = 's32[1]{0}', space=sflag, size = 0x4, scoped, tag = 'scoped memory for tpu_custom_call.1']
    #allocation22 [shape = 'u8[32768]{0}', space=vmem, size = 0x8000, scoped, tag = 'input window, operand 12, single buffered']
    #allocation23 [shape = 'u8[32768]{0}', space=vmem, size = 0x8000, scoped, tag = 'input window, operand 13, single buffered']
    #allocation24 [shape = 's32[1]{0}', space=sflag, size = 0x4, scoped, tag = 'scoped memory for tpu_custom_call.1']
    #allocation25 [shape = 'u8[32768]{0}', space=vmem, size = 0x8000, scoped, tag = 'input window, operand 14, single buffered']
    #allocation26 [shape = 'u8[8192]{0}', space=vmem, size = 0x2000, scoped, tag = 'input window, operand 15, single buffered']
    #allocation27 [shape = 's32[1]{0}', space=sflag, size = 0x4, scoped, tag = 'scoped memory for tpu_custom_call.1']
    #allocation28 [shape = 'u8[65536]{0}', space=vmem, size = 0x10000, scoped, tag = 'output window, operand 0']
    #allocation29 [shape = 'u8[65536]{0}', space=vmem, size = 0x10000, scoped, tag = 'output window, operand 1']
    #allocation30 [shape = 's32[2]{0}', space=sflag, size = 0x8, scoped, tag = 'scoped memory for tpu_custom_call.1']
    %23 = vsyncpa [#allocation3], 0
    %s24 = scalar_lea.sflag [#allocation3], 1
    %25 = vsyncpa %s24, 0
    %26 = vsyncpa [#allocation6], 0
    %27 = vsyncpa [#allocation9], 0
    %28 = vsyncpa [#allocation12], 0
    %29 = vsyncpa [#allocation15], 0
    %30 = vsyncpa [#allocation18], 0
    %31 = vsyncpa [#allocation21], 0
    %32 = vsyncpa [#allocation24], 0
    %33 = vsyncpa [#allocation27], 0
    %34 = vsyncpa [#allocation4], 0
    %s35 = scalar_lea.sflag [#allocation4], 1
    %36 = vsyncpa %s35, 0
    %37 = vsyncpa [#allocation30], 0
    %s38 = scalar_lea.sflag [#allocation30], 1
    %39 = vsyncpa %s38, 0
    loop: start=0, step=1, limit=6
    $region2: #{tpu_custom_call.1} parent=1 // loop_pre_header
      _
    $region3: #{tpu_custom_call.1} parent=1 // loop_header
      %s41 = sphi 0, %s45
      %p42 = scmp.ge.s32.totalorder %s41, 6
      %s51 = sphi 0, %s53
      %s54 = sphi 0, %s51
      %s55 = sphi 0, %s54
      %s71 = sphi 0, %s55
      %s75 = sphi 0, %s75
      %s77 = sphi 0, %s75
      %s78 = sphi 0, %s77
      %s92 = sphi 0, %s78
      %s96 = sphi 0, %s96
      %s98 = sphi 0, %s96
      %s99 = sphi 0, %s98
      %s113 = sphi 0, %s99
      %s117 = sphi 0, %s117
      %s119 = sphi 0, %s117
      %s120 = sphi 0, %s119
      %s134 = sphi 0, %s120
      %s138 = sphi 0, %s138
      %s140 = sphi 0, %s138
      %s141 = sphi 0, %s140
      %s155 = sphi 0, %s141
      %s159 = sphi 0, %s159
      %s161 = sphi 0, %s159
      %s162 = sphi 0, %s161
      %s176 = sphi 0, %s162
      %s180 = sphi 0, %s180
      %s182 = sphi 0, %s180
      %s183 = sphi 0, %s182
      %s197 = sphi 0, %s183
      %s201 = sphi 0, %s201
      %s203 = sphi 0, %s201
      %s204 = sphi 0, %s203
      %s218 = sphi 0, %s204
      %s222 = sphi 0, %s222
      %s224 = sphi 0, %s222
      %s225 = sphi 0, %s224
      %s239 = sphi 0, %s225
      %s243 = sphi 0, %s243
      %s245 = sphi 0, %s243
      %s246 = sphi 0, %s245
      %s260 = sphi 0, %s246
      %s264 = sphi 0, %s264
      %s266 = sphi 0, %s264
      %s267 = sphi 0, %s266
      %s281 = sphi 0, %s267
      %s285 = sphi 0, %s285
      %s287 = sphi 0, %s285
      %s288 = sphi 0, %s287
      %s302 = sphi 0, %s288
      %s306 = sphi 0, %s306
      %s308 = sphi 0, %s306
      %s309 = sphi 0, %s308
      %s323 = sphi 0, %s309
      %s327 = sphi 0, %s327
      %s329 = sphi 0, %s327
      %s330 = sphi 0, %s329
      %s344 = sphi 0, %s330
      %s348 = sphi 0, %s348
      %s350 = sphi 0, %s348
      %s351 = sphi 0, %s350
      %s365 = sphi 0, %s351
      %s369 = sphi 0, %s369
      %s371 = sphi 0, %s369
      %s372 = sphi 0, %s371
      %s386 = sphi 0, %s372
      %s392 = sphi 0, %s394
      %s395 = sphi 0, %s392
      %s396 = sphi 0, %s395
      %s412 = sphi 0, %s396
      %s418 = sphi 0, %s420
      %s421 = sphi 0, %s418
      %s422 = sphi 0, %s421
      %s438 = sphi 0, %s422
    $region4: #{tpu_custom_call.1} parent=1 // loop_header_branch
      %44 = sbr.rel (%p42) target = $region8
    $region5: #{tpu_custom_call.1} parent=1 // loop_body
      %s46 = ssub.s32 %s41, 1
      %s47 = ssub.s32 %s41, 2
      %s48 = sadd.s32 %s41, 1
      %s49 = ssub.s32 %s41, %s48
      %p50 = scmp.eq.s32.totalorder %s49, 0
      %s52 = sadd.s32 %s51, 1
      %s53 = scalar_select %p50, %s51, %s52
      %p56 = pneg %p50
      %p57 = scmp.eq.s32.totalorder %s41, 3
      %p58 = por %p56, %p57
      %p59 = scmp.ne.s32.totalorder %s51, %s54
      %p60 = scmp.eq.s32.totalorder %s41, 0
      %p61 = por %p59, %p60
      %p62 = scmp.ne.s32.totalorder %s51, %s54
      %p63 = scmp.eq.s32.totalorder %s46, 3
      %p64 = por %p62, %p63
      %p65 = scmp.ne.s32.totalorder %s54, %s55
      %p66 = scmp.eq.s32.totalorder %s46, 0
      %p67 = por %p65, %p66
      %p68 = scmp.ne.s32.totalorder %s54, %s55
      %p69 = scmp.eq.s32.totalorder %s47, 3
      %p70 = por %p68, %p69
      %p72 = scmp.ne.s32.totalorder %s55, %s71
      %p73 = scmp.eq.s32.totalorder %s47, 0
      %p74 = por %p72, %p73
      %s76 = sadd.s32 %s75, 1
      %p79 = scmp.eq.s32.totalorder %s41, 3
      %p80 = scmp.ne.s32.totalorder %s75, %s77
      %p81 = scmp.eq.s32.totalorder %s41, 0
      %p82 = por %p80, %p81
      %p83 = scmp.ne.s32.totalorder %s75, %s77
      %p84 = scmp.eq.s32.totalorder %s46, 3
      %p85 = por %p83, %p84
      %p86 = scmp.ne.s32.totalorder %s77, %s78
      %p87 = scmp.eq.s32.totalorder %s46, 0
      %p88 = por %p86, %p87
      %p89 = scmp.ne.s32.totalorder %s77, %s78
      %p90 = scmp.eq.s32.totalorder %s47, 3
      %p91 = por %p89, %p90
      %p93 = scmp.ne.s32.totalorder %s78, %s92
      %p94 = scmp.eq.s32.totalorder %s47, 0
      %p95 = por %p93, %p94
      %s97 = sadd.s32 %s96, 1
      %p100 = scmp.eq.s32.totalorder %s41, 3
      %p101 = scmp.ne.s32.totalorder %s96, %s98
      %p102 = scmp.eq.s32.totalorder %s41, 0
      %p103 = por %p101, %p102
      %p104 = scmp.ne.s32.totalorder %s96, %s98
      %p105 = scmp.eq.s32.totalorder %s46, 3
      %p106 = por %p104, %p105
      %p107 = scmp.ne.s32.totalorder %s98, %s99
      %p108 = scmp.eq.s32.totalorder %s46, 0
      %p109 = por %p107, %p108
      %p110 = scmp.ne.s32.totalorder %s98, %s99
      %p111 = scmp.eq.s32.totalorder %s47, 3
      %p112 = por %p110, %p111
      %p114 = scmp.ne.s32.totalorder %s99, %s113
      %p115 = scmp.eq.s32.totalorder %s47, 0
      %p116 = por %p114, %p115
      %s118 = sadd.s32 %s117, 1
      %p121 = scmp.eq.s32.totalorder %s41, 3
      %p122 = scmp.ne.s32.totalorder %s117, %s119
      %p123 = scmp.eq.s32.totalorder %s41, 0
      %p124 = por %p122, %p123
      %p125 = scmp.ne.s32.totalorder %s117, %s119
      %p126 = scmp.eq.s32.totalorder %s46, 3
      %p127 = por %p125, %p126
      %p128 = scmp.ne.s32.totalorder %s119, %s120
      %p129 = scmp.eq.s32.totalorder %s46, 0
      %p130 = por %p128, %p129
      %p131 = scmp.ne.s32.totalorder %s119, %s120
      %p132 = scmp.eq.s32.totalorder %s47, 3
      %p133 = por %p131, %p132
      %p135 = scmp.ne.s32.totalorder %s120, %s134
      %p136 = scmp.eq.s32.totalorder %s47, 0
      %p137 = por %p135, %p136
      %s139 = sadd.s32 %s138, 1
      %p142 = scmp.eq.s32.totalorder %s41, 3
      %p143 = scmp.ne.s32.totalorder %s138, %s140
      %p144 = scmp.eq.s32.totalorder %s41, 0
      %p145 = por %p143, %p144
      %p146 = scmp.ne.s32.totalorder %s138, %s140
      %p147 = scmp.eq.s32.totalorder %s46, 3
      %p148 = por %p146, %p147
      %p149 = scmp.ne.s32.totalorder %s140, %s141
      %p150 = scmp.eq.s32.totalorder %s46, 0
      %p151 = por %p149, %p150
      %p152 = scmp.ne.s32.totalorder %s140, %s141
      %p153 = scmp.eq.s32.totalorder %s47, 3
      %p154 = por %p152, %p153
      %p156 = scmp.ne.s32.totalorder %s141, %s155
      %p157 = scmp.eq.s32.totalorder %s47, 0
      %p158 = por %p156, %p157
      %s160 = sadd.s32 %s159, 1
      %p163 = scmp.eq.s32.totalorder %s41, 3
      %p164 = scmp.ne.s32.totalorder %s159, %s161
      %p165 = scmp.eq.s32.totalorder %s41, 0
      %p166 = por %p164, %p165
      %p167 = scmp.ne.s32.totalorder %s159, %s161
      %p168 = scmp.eq.s32.totalorder %s46, 3
      %p169 = por %p167, %p168
      %p170 = scmp.ne.s32.totalorder %s161, %s162
      %p171 = scmp.eq.s32.totalorder %s46, 0
      %p172 = por %p170, %p171
      %p173 = scmp.ne.s32.totalorder %s161, %s162
      %p174 = scmp.eq.s32.totalorder %s47, 3
      %p175 = por %p173, %p174
      %p177 = scmp.ne.s32.totalorder %s162, %s176
      %p178 = scmp.eq.s32.totalorder %s47, 0
      %p179 = por %p177, %p178
      %s181 = sadd.s32 %s180, 1
      %p184 = scmp.eq.s32.totalorder %s41, 3
      %p185 = scmp.ne.s32.totalorder %s180, %s182
      %p186 = scmp.eq.s32.totalorder %s41, 0
      %p187 = por %p185, %p186
      %p188 = scmp.ne.s32.totalorder %s180, %s182
      %p189 = scmp.eq.s32.totalorder %s46, 3
      %p190 = por %p188, %p189
      %p191 = scmp.ne.s32.totalorder %s182, %s183
      %p192 = scmp.eq.s32.totalorder %s46, 0
      %p193 = por %p191, %p192
      %p194 = scmp.ne.s32.totalorder %s182, %s183
      %p195 = scmp.eq.s32.totalorder %s47, 3
      %p196 = por %p194, %p195
      %p198 = scmp.ne.s32.totalorder %s183, %s197
      %p199 = scmp.eq.s32.totalorder %s47, 0
      %p200 = por %p198, %p199
      %s202 = sadd.s32 %s201, 1
      %p205 = scmp.eq.s32.totalorder %s41, 3
      %p206 = scmp.ne.s32.totalorder %s201, %s203
      %p207 = scmp.eq.s32.totalorder %s41, 0
      %p208 = por %p206, %p207
      %p209 = scmp.ne.s32.totalorder %s201, %s203
      %p210 = scmp.eq.s32.totalorder %s46, 3
      %p211 = por %p209, %p210
      %p212 = scmp.ne.s32.totalorder %s203, %s204
      %p213 = scmp.eq.s32.totalorder %s46, 0
      %p214 = por %p212, %p213
      %p215 = scmp.ne.s32.totalorder %s203, %s204
      %p216 = scmp.eq.s32.totalorder %s47, 3
      %p217 = por %p215, %p216
      %p219 = scmp.ne.s32.totalorder %s204, %s218
      %p220 = scmp.eq.s32.totalorder %s47, 0
      %p221 = por %p219, %p220
      %s223 = sadd.s32 %s222, 1
      %p226 = scmp.eq.s32.totalorder %s41, 3
      %p227 = scmp.ne.s32.totalorder %s222, %s224
      %p228 = scmp.eq.s32.totalorder %s41, 0
      %p229 = por %p227, %p228
      %p230 = scmp.ne.s32.totalorder %s222, %s224
      %p231 = scmp.eq.s32.totalorder %s46, 3
      %p232 = por %p230, %p231
      %p233 = scmp.ne.s32.totalorder %s224, %s225
      %p234 = scmp.eq.s32.totalorder %s46, 0
      %p235 = por %p233, %p234
      %p236 = scmp.ne.s32.totalorder %s224, %s225
      %p237 = scmp.eq.s32.totalorder %s47, 3
      %p238 = por %p236, %p237
      %p240 = scmp.ne.s32.totalorder %s225, %s239
      %p241 = scmp.eq.s32.totalorder %s47, 0
      %p242 = por %p240, %p241
      %s244 = sadd.s32 %s243, 1
      %p247 = scmp.eq.s32.totalorder %s41, 3
      %p248 = scmp.ne.s32.totalorder %s243, %s245
      %p249 = scmp.eq.s32.totalorder %s41, 0
      %p250 = por %p248, %p249
      %p251 = scmp.ne.s32.totalorder %s243, %s245
      %p252 = scmp.eq.s32.totalorder %s46, 3
      %p253 = por %p251, %p252
      %p254 = scmp.ne.s32.totalorder %s245, %s246
      %p255 = scmp.eq.s32.totalorder %s46, 0
      %p256 = por %p254, %p255
      %p257 = scmp.ne.s32.totalorder %s245, %s246
      %p258 = scmp.eq.s32.totalorder %s47, 3
      %p259 = por %p257, %p258
      %p261 = scmp.ne.s32.totalorder %s246, %s260
      %p262 = scmp.eq.s32.totalorder %s47, 0
      %p263 = por %p261, %p262
      %s265 = sadd.s32 %s264, 1
      %p268 = scmp.eq.s32.totalorder %s41, 3
      %p269 = scmp.ne.s32.totalorder %s264, %s266
      %p270 = scmp.eq.s32.totalorder %s41, 0
      %p271 = por %p269, %p270
      %p272 = scmp.ne.s32.totalorder %s264, %s266
      %p273 = scmp.eq.s32.totalorder %s46, 3
      %p274 = por %p272, %p273
      %p275 = scmp.ne.s32.totalorder %s266, %s267
      %p276 = scmp.eq.s32.totalorder %s46, 0
      %p277 = por %p275, %p276
      %p278 = scmp.ne.s32.totalorder %s266, %s267
      %p279 = scmp.eq.s32.totalorder %s47, 3
      %p280 = por %p278, %p279
      %p282 = scmp.ne.s32.totalorder %s267, %s281
      %p283 = scmp.eq.s32.totalorder %s47, 0
      %p284 = por %p282, %p283
      %s286 = sadd.s32 %s285, 1
      %p289 = scmp.eq.s32.totalorder %s41, 3
      %p290 = scmp.ne.s32.totalorder %s285, %s287
      %p291 = scmp.eq.s32.totalorder %s41, 0
      %p292 = por %p290, %p291
      %p293 = scmp.ne.s32.totalorder %s285, %s287
      %p294 = scmp.eq.s32.totalorder %s46, 3
      %p295 = por %p293, %p294
      %p296 = scmp.ne.s32.totalorder %s287, %s288
      %p297 = scmp.eq.s32.totalorder %s46, 0
      %p298 = por %p296, %p297
      %p299 = scmp.ne.s32.totalorder %s287, %s288
      %p300 = scmp.eq.s32.totalorder %s47, 3
      %p301 = por %p299, %p300
      %p303 = scmp.ne.s32.totalorder %s288, %s302
      %p304 = scmp.eq.s32.totalorder %s47, 0
      %p305 = por %p303, %p304
      %s307 = sadd.s32 %s306, 1
      %p310 = scmp.eq.s32.totalorder %s41, 3
      %p311 = scmp.ne.s32.totalorder %s306, %s308
      %p312 = scmp.eq.s32.totalorder %s41, 0
      %p313 = por %p311, %p312
      %p314 = scmp.ne.s32.totalorder %s306, %s308
      %p315 = scmp.eq.s32.totalorder %s46, 3
      %p316 = por %p314, %p315
      %p317 = scmp.ne.s32.totalorder %s308, %s309
      %p318 = scmp.eq.s32.totalorder %s46, 0
      %p319 = por %p317, %p318
      %p320 = scmp.ne.s32.totalorder %s308, %s309
      %p321 = scmp.eq.s32.totalorder %s47, 3
      %p322 = por %p320, %p321
      %p324 = scmp.ne.s32.totalorder %s309, %s323
      %p325 = scmp.eq.s32.totalorder %s47, 0
      %p326 = por %p324, %p325
      %s328 = sadd.s32 %s327, 1
      %p331 = scmp.eq.s32.totalorder %s41, 3
      %p332 = scmp.ne.s32.totalorder %s327, %s329
      %p333 = scmp.eq.s32.totalorder %s41, 0
      %p334 = por %p332, %p333
      %p335 = scmp.ne.s32.totalorder %s327, %s329
      %p336 = scmp.eq.s32.totalorder %s46, 3
      %p337 = por %p335, %p336
      %p338 = scmp.ne.s32.totalorder %s329, %s330
      %p339 = scmp.eq.s32.totalorder %s46, 0
      %p340 = por %p338, %p339
      %p341 = scmp.ne.s32.totalorder %s329, %s330
      %p342 = scmp.eq.s32.totalorder %s47, 3
      %p343 = por %p341, %p342
      %p345 = scmp.ne.s32.totalorder %s330, %s344
      %p346 = scmp.eq.s32.totalorder %s47, 0
      %p347 = por %p345, %p346
      %s349 = sadd.s32 %s348, 1
      %p352 = scmp.eq.s32.totalorder %s41, 3
      %p353 = scmp.ne.s32.totalorder %s348, %s350
      %p354 = scmp.eq.s32.totalorder %s41, 0
      %p355 = por %p353, %p354
      %p356 = scmp.ne.s32.totalorder %s348, %s350
      %p357 = scmp.eq.s32.totalorder %s46, 3
      %p358 = por %p356, %p357
      %p359 = scmp.ne.s32.totalorder %s350, %s351
      %p360 = scmp.eq.s32.totalorder %s46, 0
      %p361 = por %p359, %p360
      %p362 = scmp.ne.s32.totalorder %s350, %s351
      %p363 = scmp.eq.s32.totalorder %s47, 3
      %p364 = por %p362, %p363
      %p366 = scmp.ne.s32.totalorder %s351, %s365
      %p367 = scmp.eq.s32.totalorder %s47, 0
      %p368 = por %p366, %p367
      %s370 = sadd.s32 %s369, 1
      %p373 = scmp.eq.s32.totalorder %s41, 3
      %p374 = scmp.ne.s32.totalorder %s369, %s371
      %p375 = scmp.eq.s32.totalorder %s41, 0
      %p376 = por %p374, %p375
      %p377 = scmp.ne.s32.totalorder %s369, %s371
      %p378 = scmp.eq.s32.totalorder %s46, 3
      %p379 = por %p377, %p378
      %p380 = scmp.ne.s32.totalorder %s371, %s372
      %p381 = scmp.eq.s32.totalorder %s46, 0
      %p382 = por %p380, %p381
      %p383 = scmp.ne.s32.totalorder %s371, %s372
      %p384 = scmp.eq.s32.totalorder %s47, 3
      %p385 = por %p383, %p384
      %p387 = scmp.ne.s32.totalorder %s372, %s386
      %p388 = scmp.eq.s32.totalorder %s47, 0
      %p389 = por %p387, %p388
      %s390 = ssub.s32 %s41, %s48
      %p391 = scmp.eq.s32.totalorder %s390, 0
      %s393 = sadd.s32 %s392, 1
      %s394 = scalar_select %p391, %s392, %s393
      %p397 = pneg %p391
      %p398 = scmp.eq.s32.totalorder %s41, 3
      %p399 = por %p397, %p398
      %p400 = scmp.ne.s32.totalorder %s392, %s395
      %p401 = scmp.eq.s32.totalorder %s41, 0
      %p402 = por %p400, %p401
      %p403 = scmp.ne.s32.totalorder %s392, %s395
      %p404 = scmp.eq.s32.totalorder %s46, 3
      %p405 = por %p403, %p404
      %p406 = scmp.ne.s32.totalorder %s395, %s396
      %p407 = scmp.eq.s32.totalorder %s46, 0
      %p408 = por %p406, %p407
      %p409 = scmp.ne.s32.totalorder %s395, %s396
      %p410 = scmp.eq.s32.totalorder %s47, 3
      %p411 = por %p409, %p410
      %p413 = scmp.ne.s32.totalorder %s396, %s412
      %p414 = scmp.eq.s32.totalorder %s47, 0
      %p415 = por %p413, %p414
      %s416 = ssub.s32 %s41, %s48
      %p417 = scmp.eq.s32.totalorder %s416, 0
      %s419 = sadd.s32 %s418, 1
      %s420 = scalar_select %p417, %s418, %s419
      %p423 = pneg %p417
      %p424 = scmp.eq.s32.totalorder %s41, 3
      %p425 = por %p423, %p424
      %p426 = scmp.ne.s32.totalorder %s418, %s421
      %p427 = scmp.eq.s32.totalorder %s41, 0
      %p428 = por %p426, %p427
      %p429 = scmp.ne.s32.totalorder %s418, %s421
      %p430 = scmp.eq.s32.totalorder %s46, 3
      %p431 = por %p429, %p430
      %p432 = scmp.ne.s32.totalorder %s421, %s422
      %p433 = scmp.eq.s32.totalorder %s46, 0
      %p434 = por %p432, %p433
      %p435 = scmp.ne.s32.totalorder %s421, %s422
      %p436 = scmp.eq.s32.totalorder %s47, 3
      %p437 = por %p435, %p436
      %p439 = scmp.ne.s32.totalorder %s422, %s438
      %p440 = scmp.eq.s32.totalorder %s47, 0
      %p441 = por %p439, %p440
      %p442 = scmp.le.s32.totalorder 1, %s41
      %p443 = scmp.lt.s32.totalorder %s41, 5
      %p444 = pnand %p442, %p443
      %p445 = pneg %p444
      // Predicated region
      $region9: #{tpu_custom_call.1} parent=5 // pred_check
        _
      $region10: #{tpu_custom_call.1} parent=5 // pred_check_branch
        %447 = sbr.rel (%p444) target = $region12
      $region11: #{tpu_custom_call.1} parent=5 // pred_region
        %s448 = ssub.s32 %s41, 1
        // Predicated region
        $region13: #{tpu_custom_call.1} parent=11 // pred_check
          %p449 = pneg %p88
        $region14: #{tpu_custom_call.1} parent=11 // pred_check_branch
          %451 = sbr.rel (%p449) target = $region16
        $region15: #{tpu_custom_call.1} parent=11 // pred_region
          %453 = vsyncadd [#allocation6], 0
          %s454 = sshll.u32 %s1, 4
          %s455 = int_to_ptr.hbm [resolvable:$true] %s454
          %s456 = sshll.u32 [#allocation5], 4
          %s457 = int_to_ptr.vmem [resolvable:$true] %s456
          %462 = dma.hbm_to_vmem [thread:$0]  %s455, 1024, %s457, [#allocation6], 64, 64, 4
        $region16: #{tpu_custom_call.1} parent=11 // pred_fallthru
          _
        // Predicated region
        $region17: #{tpu_custom_call.1} parent=11 // pred_check
          %p463 = pneg %p109
        $region18: #{tpu_custom_call.1} parent=11 // pred_check_branch
          %465 = sbr.rel (%p463) target = $region20
        $region19: #{tpu_custom_call.1} parent=11 // pred_region
          %467 = vsyncadd [#allocation6], 0
          %s468 = sshll.u32 %s2, 4
          %s469 = int_to_ptr.hbm [resolvable:$true] %s468
          %s470 = sshll.u32 [#allocation7], 4
          %s471 = int_to_ptr.vmem [resolvable:$true] %s470
          %476 = dma.hbm_to_vmem [thread:$0]  %s469, 1024, %s471, [#allocation6], 64, 64, 4
        $region20: #{tpu_custom_call.1} parent=11 // pred_fallthru
          _
        // Predicated region
        $region21: #{tpu_custom_call.1} parent=11 // pred_check
          %p477 = pneg %p130
        $region22: #{tpu_custom_call.1} parent=11 // pred_check_branch
          %479 = sbr.rel (%p477) target = $region24
        $region23: #{tpu_custom_call.1} parent=11 // pred_region
          %481 = vsyncadd [#allocation9], 0
          %s482 = sshll.u32 %s3, 4
          %s483 = int_to_ptr.hbm [resolvable:$true] %s482
          %s484 = sshll.u32 [#allocation8], 4
          %s485 = int_to_ptr.vmem [resolvable:$true] %s484
          %490 = dma.hbm_to_vmem [thread:$0]  %s483, 1024, %s485, [#allocation9], 64, 64, 4
        $region24: #{tpu_custom_call.1} parent=11 // pred_fallthru
          _
        // Predicated region
        $region25: #{tpu_custom_call.1} parent=11 // pred_check
          %p491 = pneg %p151
        $region26: #{tpu_custom_call.1} parent=11 // pred_check_branch
          %493 = sbr.rel (%p491) target = $region28
        $region27: #{tpu_custom_call.1} parent=11 // pred_region
          %495 = vsyncadd [#allocation9], 0
          %s496 = sshll.u32 %s4, 4
          %s497 = int_to_ptr.hbm [resolvable:$true] %s496
          %s498 = sshll.u32 [#allocation10], 4
          %s499 = int_to_ptr.vmem [resolvable:$true] %s498
          %504 = dma.hbm_to_vmem [thread:$0]  %s497, 1024, %s499, [#allocation9], 64, 64, 4
        $region28: #{tpu_custom_call.1} parent=11 // pred_fallthru
          _
        // Predicated region
        $region29: #{tpu_custom_call.1} parent=11 // pred_check
          %p505 = pneg %p172
        $region30: #{tpu_custom_call.1} parent=11 // pred_check_branch
          %507 = sbr.rel (%p505) target = $region32
        $region31: #{tpu_custom_call.1} parent=11 // pred_region
          %509 = vsyncadd [#allocation12], 0
          %s510 = sshll.u32 %s5, 4
          %s511 = int_to_ptr.hbm [resolvable:$true] %s510
          %s512 = sshll.u32 [#allocation11], 4
          %s513 = int_to_ptr.vmem [resolvable:$true] %s512
          %518 = dma.hbm_to_vmem [thread:$0]  %s511, 1024, %s513, [#allocation12], 64, 64, 4
        $region32: #{tpu_custom_call.1} parent=11 // pred_fallthru
          _
        // Predicated region
        $region33: #{tpu_custom_call.1} parent=11 // pred_check
          %p519 = pneg %p193
        $region34: #{tpu_custom_call.1} parent=11 // pred_check_branch
          %521 = sbr.rel (%p519) target = $region36
        $region35: #{tpu_custom_call.1} parent=11 // pred_region
          %523 = vsyncadd [#allocation12], 0
          %s524 = sshll.u32 %s6, 4
          %s525 = int_to_ptr.hbm [resolvable:$true] %s524
          %s526 = sshll.u32 [#allocation13], 4
          %s527 = int_to_ptr.vmem [resolvable:$true] %s526
          %532 = dma.hbm_to_vmem [thread:$0]  %s525, 1024, %s527, [#allocation12], 64, 64, 4
        $region36: #{tpu_custom_call.1} parent=11 // pred_fallthru
          _
        // Predicated region
        $region37: #{tpu_custom_call.1} parent=11 // pred_check
          %p533 = pneg %p214
        $region38: #{tpu_custom_call.1} parent=11 // pred_check_branch
          %535 = sbr.rel (%p533) target = $region40
        $region39: #{tpu_custom_call.1} parent=11 // pred_region
          %537 = vsyncadd [#allocation15], 0
          %s538 = sshll.u32 %s7, 4
          %s539 = int_to_ptr.hbm [resolvable:$true] %s538
          %s540 = sshll.u32 [#allocation14], 4
          %s541 = int_to_ptr.vmem [resolvable:$true] %s540
          %546 = dma.hbm_to_vmem [thread:$0]  %s539, 1024, %s541, [#allocation15], 64, 64, 4
        $region40: #{tpu_custom_call.1} parent=11 // pred_fallthru
          _
        // Predicated region
        $region41: #{tpu_custom_call.1} parent=11 // pred_check
          %p547 = pneg %p235
        $region42: #{tpu_custom_call.1} parent=11 // pred_check_branch
          %549 = sbr.rel (%p547) target = $region44
        $region43: #{tpu_custom_call.1} parent=11 // pred_region
          %551 = vsyncadd [#allocation15], 0
          %s552 = sshll.u32 %s8, 4
          %s553 = int_to_ptr.hbm [resolvable:$true] %s552
          %s554 = sshll.u32 [#allocation16], 4
          %s555 = int_to_ptr.vmem [resolvable:$true] %s554
          %560 = dma.hbm_to_vmem [thread:$0]  %s553, 1024, %s555, [#allocation15], 64, 64, 4
        $region44: #{tpu_custom_call.1} parent=11 // pred_fallthru
          _
        // Predicated region
        $region45: #{tpu_custom_call.1} parent=11 // pred_check
          %p561 = pneg %p256
        $region46: #{tpu_custom_call.1} parent=11 // pred_check_branch
          %563 = sbr.rel (%p561) target = $region48
        $region47: #{tpu_custom_call.1} parent=11 // pred_region
          %565 = vsyncadd [#allocation18], 0
          %s566 = sshll.u32 %s9, 4
          %s567 = int_to_ptr.hbm [resolvable:$true] %s566
          %s568 = sshll.u32 [#allocation17], 4
          %s569 = int_to_ptr.vmem [resolvable:$true] %s568
          %574 = dma.hbm_to_vmem [thread:$0]  %s567, 1024, %s569, [#allocation18], 64, 64, 4
        $region48: #{tpu_custom_call.1} parent=11 // pred_fallthru
          _
        // Predicated region
        $region49: #{tpu_custom_call.1} parent=11 // pred_check
          %p575 = pneg %p277
        $region50: #{tpu_custom_call.1} parent=11 // pred_check_branch
          %577 = sbr.rel (%p575) target = $region52
        $region51: #{tpu_custom_call.1} parent=11 // pred_region
          %579 = vsyncadd [#allocation18], 0
          %s580 = sshll.u32 %s10, 4
          %s581 = int_to_ptr.hbm [resolvable:$true] %s580
          %s582 = sshll.u32 [#allocation19], 4
          %s583 = int_to_ptr.vmem [resolvable:$true] %s582
          %588 = dma.hbm_to_vmem [thread:$0]  %s581, 1024, %s583, [#allocation18], 64, 64, 4
        $region52: #{tpu_custom_call.1} parent=11 // pred_fallthru
          _
        // Predicated region
        $region53: #{tpu_custom_call.1} parent=11 // pred_check
          %p589 = pneg %p298
        $region54: #{tpu_custom_call.1} parent=11 // pred_check_branch
          %591 = sbr.rel (%p589) target = $region56
        $region55: #{tpu_custom_call.1} parent=11 // pred_region
          %593 = vsyncadd [#allocation21], 0
          %s594 = sshll.u32 %s11, 4
          %s595 = int_to_ptr.hbm [resolvable:$true] %s594
          %s596 = sshll.u32 [#allocation20], 4
          %s597 = int_to_ptr.vmem [resolvable:$true] %s596
          %602 = dma.hbm_to_vmem [thread:$0]  %s595, 1024, %s597, [#allocation21], 64, 64, 4
        $region56: #{tpu_custom_call.1} parent=11 // pred_fallthru
          _
        // Predicated region
        $region57: #{tpu_custom_call.1} parent=11 // pred_check
          %p603 = pneg %p319
        $region58: #{tpu_custom_call.1} parent=11 // pred_check_branch
          %605 = sbr.rel (%p603) target = $region60
        $region59: #{tpu_custom_call.1} parent=11 // pred_region
          %607 = vsyncadd [#allocation21], 0
          %s608 = sshll.u32 %s12, 4
          %s609 = int_to_ptr.hbm [resolvable:$true] %s608
          %s610 = sshll.u32 [#allocation22], 4
          %s611 = int_to_ptr.vmem [resolvable:$true] %s610
          %616 = dma.hbm_to_vmem [thread:$0]  %s609, 1024, %s611, [#allocation21], 64, 64, 4
        $region60: #{tpu_custom_call.1} parent=11 // pred_fallthru
          _
        // Predicated region
        $region61: #{tpu_custom_call.1} parent=11 // pred_check
          %p617 = pneg %p340
        $region62: #{tpu_custom_call.1} parent=11 // pred_check_branch
          %619 = sbr.rel (%p617) target = $region64
        $region63: #{tpu_custom_call.1} parent=11 // pred_region
          %621 = vsyncadd [#allocation24], 0
          %s622 = sshll.u32 %s13, 4
          %s623 = int_to_ptr.hbm [resolvable:$true] %s622
          %s624 = sshll.u32 [#allocation23], 4
          %s625 = int_to_ptr.vmem [resolvable:$true] %s624
          %630 = dma.hbm_to_vmem [thread:$0]  %s623, 1024, %s625, [#allocation24], 64, 64, 4
        $region64: #{tpu_custom_call.1} parent=11 // pred_fallthru
          _
        // Predicated region
        $region65: #{tpu_custom_call.1} parent=11 // pred_check
          %p631 = pneg %p361
        $region66: #{tpu_custom_call.1} parent=11 // pred_check_branch
          %633 = sbr.rel (%p631) target = $region68
        $region67: #{tpu_custom_call.1} parent=11 // pred_region
          %635 = vsyncadd [#allocation24], 0
          %s636 = sshll.u32 %s14, 4
          %s637 = int_to_ptr.hbm [resolvable:$true] %s636
          %s638 = sshll.u32 [#allocation25], 4
          %s639 = int_to_ptr.vmem [resolvable:$true] %s638
          %644 = dma.hbm_to_vmem [thread:$0]  %s637, 1024, %s639, [#allocation24], 64, 64, 4
        $region68: #{tpu_custom_call.1} parent=11 // pred_fallthru
          _
        // Predicated region
        $region69: #{tpu_custom_call.1} parent=11 // pred_check
          %p645 = pneg %p382
        $region70: #{tpu_custom_call.1} parent=11 // pred_check_branch
          %647 = sbr.rel (%p645) target = $region72
        $region71: #{tpu_custom_call.1} parent=11 // pred_region
          %649 = vsyncadd [#allocation27], 0
          %s650 = sshll.u32 %s15, 4
          %s651 = int_to_ptr.hbm [resolvable:$true] %s650
          %s652 = sshll.u32 [#allocation26], 4
          %s653 = int_to_ptr.vmem [resolvable:$true] %s652
          %658 = dma.hbm_to_vmem [thread:$0]  %s651, 256, %s653, [#allocation27], 128, 128, 8
        $region72: #{tpu_custom_call.1} parent=11 // pred_fallthru
          _
      $region12: #{tpu_custom_call.1} parent=5 // pred_fallthru
        _
      %p659 = scmp.lt.s32.totalorder %s41, 4
      // Predicated region
      $region73: #{tpu_custom_call.1} parent=5 // pred_check
        %p660 = pneg %p659
      $region74: #{tpu_custom_call.1} parent=5 // pred_check_branch
        %662 = sbr.rel (%p660) target = $region76
      $region75: #{tpu_custom_call.1} parent=5 // pred_region
        // Predicated region
        $region77: #{tpu_custom_call.1} parent=75 // pred_check
          %p663 = pneg %p61
        $region78: #{tpu_custom_call.1} parent=75 // pred_check_branch
          %665 = sbr.rel (%p663) target = $region80
        $region79: #{tpu_custom_call.1} parent=75 // pred_region
          %s666 = sand.u32 %s51, 1
          %s667 = scalar_lea.sflag [#allocation3], %s666
          %s668 = sand.u32 %s51, 1
          %s669 = smul.addr %s668, 64
          %s670 = scalar_lea.vmem [#allocation2], %s669
          %s671 = smul.u32 8, %s41
          %673 = vsyncadd %s667, 0
          %s674 = smul.addr %s671, 8
          %s675 = scalar_lea.hbm %s0, %s674
          %s676 = sshll.u32 %s675, 4
          %s677 = int_to_ptr.hbm [resolvable:$true] %s676
          %s678 = sshll.u32 %s670, 4
          %s679 = int_to_ptr.vmem [resolvable:$true] %s678
          %684 = dma.hbm_to_vmem [thread:$0]  %s677, 1024, %s679, %s667, 128, 128, 8
        $region80: #{tpu_custom_call.1} parent=75 // pred_fallthru
          _
      $region76: #{tpu_custom_call.1} parent=5 // pred_fallthru
        _
      %p685 = scmp.le.s32.totalorder 1, %s41
      %p686 = scmp.lt.s32.totalorder %s41, 5
      %p687 = pnand %p685, %p686
      %p688 = pneg %p687
      // Predicated region
      $region81: #{tpu_custom_call.1} parent=5 // pred_check
        _
      $region82: #{tpu_custom_call.1} parent=5 // pred_check_branch
        %690 = sbr.rel (%p687) target = $region84
      $region83: #{tpu_custom_call.1} parent=5 // pred_region
        %s691 = ssub.s32 %s41, 1
        %s692 = sand.u32 %s54, 1
        %s693 = scalar_lea.sflag [#allocation3], %s692
        %s694 = sand.u32 %s54, 1
        %s695 = smul.addr %s694, 64
        %s696 = scalar_lea.vmem [#allocation2], %s695
        // Predicated region
        $region85: #{tpu_custom_call.1} parent=83 // pred_check
          %p697 = pneg %p67
        $region86: #{tpu_custom_call.1} parent=83 // pred_check_branch
          %699 = sbr.rel (%p697) target = $region88
        $region87: #{tpu_custom_call.1} parent=83 // pred_region
          %701 = dma.done %s693, 1024
        $region88: #{tpu_custom_call.1} parent=83 // pred_fallthru
          _
        // Predicated region
        $region89: #{tpu_custom_call.1} parent=83 // pred_check
          %p702 = pneg %p88
        $region90: #{tpu_custom_call.1} parent=83 // pred_check_branch
          %704 = sbr.rel (%p702) target = $region92
        $region91: #{tpu_custom_call.1} parent=83 // pred_region
          %706 = dma.done [#allocation6], 1024
        $region92: #{tpu_custom_call.1} parent=83 // pred_fallthru
          _
        // Predicated region
        $region93: #{tpu_custom_call.1} parent=83 // pred_check
          %p707 = pneg %p109
        $region94: #{tpu_custom_call.1} parent=83 // pred_check_branch
          %709 = sbr.rel (%p707) target = $region96
        $region95: #{tpu_custom_call.1} parent=83 // pred_region
          %711 = dma.done [#allocation6], 1024
        $region96: #{tpu_custom_call.1} parent=83 // pred_fallthru
          _
        // Predicated region
        $region97: #{tpu_custom_call.1} parent=83 // pred_check
          %p712 = pneg %p130
        $region98: #{tpu_custom_call.1} parent=83 // pred_check_branch
          %714 = sbr.rel (%p712) target = $region100
        $region99: #{tpu_custom_call.1} parent=83 // pred_region
          %716 = dma.done [#allocation9], 1024
        $region100: #{tpu_custom_call.1} parent=83 // pred_fallthru
          _
        // Predicated region
        $region101: #{tpu_custom_call.1} parent=83 // pred_check
          %p717 = pneg %p151
        $region102: #{tpu_custom_call.1} parent=83 // pred_check_branch
          %719 = sbr.rel (%p717) target = $region104
        $region103: #{tpu_custom_call.1} parent=83 // pred_region
          %721 = dma.done [#allocation9], 1024
        $region104: #{tpu_custom_call.1} parent=83 // pred_fallthru
          _
        // Predicated region
        $region105: #{tpu_custom_call.1} parent=83 // pred_check
          %p722 = pneg %p172
        $region106: #{tpu_custom_call.1} parent=83 // pred_check_branch
          %724 = sbr.rel (%p722) target = $region108
        $region107: #{tpu_custom_call.1} parent=83 // pred_region
          %726 = dma.done [#allocation12], 1024
        $region108: #{tpu_custom_call.1} parent=83 // pred_fallthru
          _
        // Predicated region
        $region109: #{tpu_custom_call.1} parent=83 // pred_check
          %p727 = pneg %p193
        $region110: #{tpu_custom_call.1} parent=83 // pred_check_branch
          %729 = sbr.rel (%p727) target = $region112
        $region111: #{tpu_custom_call.1} parent=83 // pred_region
          %731 = dma.done [#allocation12], 1024
        $region112: #{tpu_custom_call.1} parent=83 // pred_fallthru
          _
        // Predicated region
        $region113: #{tpu_custom_call.1} parent=83 // pred_check
          %p732 = pneg %p214
        $region114: #{tpu_custom_call.1} parent=83 // pred_check_branch
          %734 = sbr.rel (%p732) target = $region116
        $region115: #{tpu_custom_call.1} parent=83 // pred_region
          %736 = dma.done [#allocation15], 1024
        $region116: #{tpu_custom_call.1} parent=83 // pred_fallthru
          _
        // Predicated region
        $region117: #{tpu_custom_call.1} parent=83 // pred_check
          %p737 = pneg %p235
        $region118: #{tpu_custom_call.1} parent=83 // pred_check_branch
          %739 = sbr.rel (%p737) target = $region120
        $region119: #{tpu_custom_call.1} parent=83 // pred_region
          %741 = dma.done [#allocation15], 1024
        $region120: #{tpu_custom_call.1} parent=83 // pred_fallthru
          _
        // Predicated region
        $region121: #{tpu_custom_call.1} parent=83 // pred_check
          %p742 = pneg %p256
        $region122: #{tpu_custom_call.1} parent=83 // pred_check_branch
          %744 = sbr.rel (%p742) target = $region124
        $region123: #{tpu_custom_call.1} parent=83 // pred_region
          %746 = dma.done [#allocation18], 1024
        $region124: #{tpu_custom_call.1} parent=83 // pred_fallthru
          _
        // Predicated region
        $region125: #{tpu_custom_call.1} parent=83 // pred_check
          %p747 = pneg %p277
        $region126: #{tpu_custom_call.1} parent=83 // pred_check_branch
          %749 = sbr.rel (%p747) target = $region128
        $region127: #{tpu_custom_call.1} parent=83 // pred_region
          %751 = dma.done [#allocation18], 1024
        $region128: #{tpu_custom_call.1} parent=83 // pred_fallthru
          _
        // Predicated region
        $region129: #{tpu_custom_call.1} parent=83 // pred_check
          %p752 = pneg %p298
        $region130: #{tpu_custom_call.1} parent=83 // pred_check_branch
          %754 = sbr.rel (%p752) target = $region132
        $region131: #{tpu_custom_call.1} parent=83 // pred_region
          %756 = dma.done [#allocation21], 1024
        $region132: #{tpu_custom_call.1} parent=83 // pred_fallthru
          _
        // Predicated region
        $region133: #{tpu_custom_call.1} parent=83 // pred_check
          %p757 = pneg %p319
        $region134: #{tpu_custom_call.1} parent=83 // pred_check_branch
          %759 = sbr.rel (%p757) target = $region136
        $region135: #{tpu_custom_call.1} parent=83 // pred_region
          %761 = dma.done [#allocation21], 1024
        $region136: #{tpu_custom_call.1} parent=83 // pred_fallthru
          _
        // Predicated region
        $region137: #{tpu_custom_call.1} parent=83 // pred_check
          %p762 = pneg %p340
        $region138: #{tpu_custom_call.1} parent=83 // pred_check_branch
          %764 = sbr.rel (%p762) target = $region140
        $region139: #{tpu_custom_call.1} parent=83 // pred_region
          %766 = dma.done [#allocation24], 1024
        $region140: #{tpu_custom_call.1} parent=83 // pred_fallthru
          _
        // Predicated region
        $region141: #{tpu_custom_call.1} parent=83 // pred_check
          %p767 = pneg %p361
        $region142: #{tpu_custom_call.1} parent=83 // pred_check_branch
          %769 = sbr.rel (%p767) target = $region144
        $region143: #{tpu_custom_call.1} parent=83 // pred_region
          %771 = dma.done [#allocation24], 1024
        $region144: #{tpu_custom_call.1} parent=83 // pred_fallthru
          _
        // Predicated region
        $region145: #{tpu_custom_call.1} parent=83 // pred_check
          %p772 = pneg %p382
        $region146: #{tpu_custom_call.1} parent=83 // pred_check_branch
          %774 = sbr.rel (%p772) target = $region148
        $region147: #{tpu_custom_call.1} parent=83 // pred_region
          %776 = dma.done [#allocation27], 256
        $region148: #{tpu_custom_call.1} parent=83 // pred_fallthru
          _
        %s777 = sand.u32 %s54, 1
        %s778 = scalar_lea.sflag [#allocation3], %s777
        %s779 = sand.u32 %s54, 1
        %s780 = smul.addr %s779, 64
        %s781 = scalar_lea.vmem [#allocation2], %s780
        %p782 = pneg %p67
        %p783 = pneg %p64
        %p784 = pneg %p88
        %p785 = pneg %p85
        %p786 = pneg %p109
        %p787 = pneg %p106
        %p788 = pneg %p130
        %p789 = pneg %p127
        %p790 = pneg %p151
        %p791 = pneg %p148
        %p792 = pneg %p172
        %p793 = pneg %p169
        %p794 = pneg %p193
        %p795 = pneg %p190
        %p796 = pneg %p214
        %p797 = pneg %p211
        %p798 = pneg %p235
        %p799 = pneg %p232
        %p800 = pneg %p256
        %p801 = pneg %p253
        %p802 = pneg %p277
        %p803 = pneg %p274
        %p804 = pneg %p298
        %p805 = pneg %p295
        %p806 = pneg %p319
        %p807 = pneg %p316
        %p808 = pneg %p340
        %p809 = pneg %p337
        %p810 = pneg %p361
        %p811 = pneg %p358
        %p812 = pneg %p382
        %p813 = pneg %p379
        %p814 = pneg %p408
        %p815 = pneg %p405
        %s816 = sand.u32 %s395, 1
        %s817 = scalar_lea.sflag [#allocation4], %s816
        %s818 = sand.u32 %s395, 1
        %s819 = smul.addr %s818, 64
        %s820 = scalar_lea.vmem [#allocation28], %s819
        %p821 = pneg %p434
        %p822 = pneg %p431
        %s823 = sand.u32 %s421, 1
        %s824 = scalar_lea.sflag [#allocation30], %s823
        %s825 = sand.u32 %s421, 1
        %s826 = smul.addr %s825, 64
        %s827 = scalar_lea.vmem [#allocation29], %s826
        %s828 = smul.u32 8, %s46
        %s829 = smul.u32 8, %s46
        %s830 = smul.u32 8, %s46
        %v831 = vld [vmem:[%s696] sm:$0xff]
        %v832 = vld [vmem:[%s696 + $0x8] sm:$0xff]
        %v833 = vld [vmem:[%s696 + $0x10] sm:$0xff]
        %v834 = vld [vmem:[%s696 + $0x18] sm:$0xff]
        %v835 = vld [vmem:[%s696 + $0x20] sm:$0xff]
        %v836 = vld [vmem:[%s696 + $0x28] sm:$0xff]
        %v837 = vld [vmem:[%s696 + $0x30] sm:$0xff]
        %v838 = vld [vmem:[%s696 + $0x38] sm:$0xff]
        %v839 = vld [vmem:[#allocation5] sm:$0xf]
        %v840 = vld [vmem:[#allocation5 + $0x4] sm:$0xf]
        %v841 = vld [vmem:[#allocation5 + $0x8] sm:$0xf]
        %v842 = vld [vmem:[#allocation5 + $0xc] sm:$0xf]
        %v843 = vld [vmem:[#allocation5 + $0x10] sm:$0xf]
        %v844 = vld [vmem:[#allocation5 + $0x14] sm:$0xf]
        %v845 = vld [vmem:[#allocation5 + $0x18] sm:$0xf]
        %v846 = vld [vmem:[#allocation5 + $0x1c] sm:$0xf]
        %v847 = vld [vmem:[#allocation5 + $0x20] sm:$0xf]
        %v848 = vld [vmem:[#allocation5 + $0x24] sm:$0xf]
        %v849 = vld [vmem:[#allocation5 + $0x28] sm:$0xf]
        %v850 = vld [vmem:[#allocation5 + $0x2c] sm:$0xf]
        %v851 = vld [vmem:[#allocation5 + $0x30] sm:$0xf]
        %v852 = vld [vmem:[#allocation5 + $0x34] sm:$0xf]
        %v853 = vld [vmem:[#allocation5 + $0x38] sm:$0xf]
        %v854 = vld [vmem:[#allocation5 + $0x3c] sm:$0xf]
        %v855 = vld [vmem:[#allocation26] sm:$0x1]
        %v856 = vpack.c.bf16 %v832, %v831
        %v857 = vpack.c.bf16 %v834, %v833
        %v858 = vpack.c.bf16 %v836, %v835
        %v859 = vpack.c.bf16 %v838, %v837
        %v860 = vperm.slane %v855, 0
        %v877 = vunpack.c.l.b16 %v839
        %v878 = vunpack.c.l.b16 %v840
        %v879 = vunpack.c.l.b16 %v841
        %v880 = vunpack.c.l.b16 %v842
        %v881 = vunpack.c.l.b16 %v843
        %v882 = vunpack.c.l.b16 %v844
        %v883 = vunpack.c.l.b16 %v845
        %v884 = vunpack.c.l.b16 %v846
        %v885 = vunpack.c.l.b16 %v847
        %v886 = vunpack.c.l.b16 %v848
        %v887 = vunpack.c.l.b16 %v849
        %v888 = vunpack.c.l.b16 %v850
        %v889 = vunpack.c.l.b16 %v851
        %v890 = vunpack.c.l.b16 %v852
        %v891 = vunpack.c.l.b16 %v853
        %v892 = vunpack.c.l.b16 %v854
        %v893 = vpack.c.b16 %v878, %v877
        %v894 = vpack.c.b16 %v880, %v879
        %v895 = vpack.c.b16 %v882, %v881
        %v896 = vpack.c.b16 %v884, %v883
        %v897 = vpack.c.b16 %v886, %v885
        %v898 = vpack.c.b16 %v888, %v887
        %v899 = vpack.c.b16 %v890, %v889
        %v900 = vpack.c.b16 %v892, %v891
        %909 = vmatpush.bf16.msra.mxu0 %v900
        %910 = vmatpush.bf16.msra.mxu0 %v899
        %911 = vmatpush.bf16.msra.mxu0 %v898
        %912 = vmatpush.bf16.msra.mxu0 %v897
        %913 = vmatpush.bf16.msra.mxu0 %v896
        %914 = vmatpush.bf16.msra.mxu0 %v895
        %915 = vmatpush.bf16.msra.mxu0 %v894
        %916 = vmatpush.bf16.msra.mxu0 %v893
        %917 = vmatmul.bf16.gmra.mxu0 %v856
        %v918 = vpop.f32.mrf.mxu0
        %v919 = vadd.f32 %v860, %v918
        %v920 = vpop.f32.mrf.mxu0
        %v921 = vadd.f32 %v860, %v920
        %922 = vmatmul.bf16.gmra.mxu0 %v857
        %v923 = vpop.f32.mrf.mxu0
        %v924 = vadd.f32 %v860, %v923
        %v925 = vpop.f32.mrf.mxu0
        %v926 = vadd.f32 %v860, %v925
        %927 = vmatmul.bf16.gmra.mxu0 %v858
        %v928 = vpop.f32.mrf.mxu0
        %v929 = vadd.f32 %v860, %v928
        %v930 = vpop.f32.mrf.mxu0
        %v931 = vadd.f32 %v860, %v930
        %932 = vmatmul.bf16.gmra.mxu0 %v859
        %v933 = vpop.f32.mrf.mxu0
        %v934 = vadd.f32 %v860, %v933
        %v935 = vpop.f32.mrf.mxu0
        %v936 = vadd.f32 %v860, %v935
        %937 = vdwg.mxu0
        %v938 = vld [vmem:[#allocation7] sm:$0xf]
        %v939 = vld [vmem:[#allocation7 + $0x4] sm:$0xf]
        %v940 = vld [vmem:[#allocation7 + $0x8] sm:$0xf]
        %v941 = vld [vmem:[#allocation7 + $0xc] sm:$0xf]
        %v942 = vld [vmem:[#allocation7 + $0x10] sm:$0xf]
        %v943 = vld [vmem:[#allocation7 + $0x14] sm:$0xf]
        %v944 = vld [vmem:[#allocation7 + $0x18] sm:$0xf]
        %v945 = vld [vmem:[#allocation7 + $0x1c] sm:$0xf]
        %v946 = vld [vmem:[#allocation7 + $0x20] sm:$0xf]
        %v947 = vld [vmem:[#allocation7 + $0x24] sm:$0xf]
        %v948 = vld [vmem:[#allocation7 + $0x28] sm:$0xf]
        %v949 = vld [vmem:[#allocation7 + $0x2c] sm:$0xf]
        %v950 = vld [vmem:[#allocation7 + $0x30] sm:$0xf]
        %v951 = vld [vmem:[#allocation7 + $0x34] sm:$0xf]
        %v952 = vld [vmem:[#allocation7 + $0x38] sm:$0xf]
        %v953 = vld [vmem:[#allocation7 + $0x3c] sm:$0xf]
        %v954 = vld [vmem:[#allocation26 + $0x1] sm:$0x1]
        %v955 = vpack.c.bf16 %v921, %v919
        %v956 = vpack.c.bf16 %v926, %v924
        %v957 = vpack.c.bf16 %v931, %v929
        %v958 = vpack.c.bf16 %v936, %v934
        %v959 = vperm.slane %v954, 0
        %v976 = vunpack.c.l.b16 %v938
        %v977 = vunpack.c.l.b16 %v939
        %v978 = vunpack.c.l.b16 %v940
        %v979 = vunpack.c.l.b16 %v941
        %v980 = vunpack.c.l.b16 %v942
        %v981 = vunpack.c.l.b16 %v943
        %v982 = vunpack.c.l.b16 %v944
        %v983 = vunpack.c.l.b16 %v945
        %v984 = vunpack.c.l.b16 %v946
        %v985 = vunpack.c.l.b16 %v947
        %v986 = vunpack.c.l.b16 %v948
        %v987 = vunpack.c.l.b16 %v949
        %v988 = vunpack.c.l.b16 %v950
        %v989 = vunpack.c.l.b16 %v951
        %v990 = vunpack.c.l.b16 %v952
        %v991 = vunpack.c.l.b16 %v953
        %v992 = vpack.c.b16 %v977, %v976
        %v993 = vpack.c.b16 %v979, %v978
        %v994 = vpack.c.b16 %v981, %v980
        %v995 = vpack.c.b16 %v983, %v982
        %v996 = vpack.c.b16 %v985, %v984
        %v997 = vpack.c.b16 %v987, %v986
        %v998 = vpack.c.b16 %v989, %v988
        %v999 = vpack.c.b16 %v991, %v990
        %1008 = vmatpush.bf16.msra.mxu0 %v999
        %1009 = vmatpush.bf16.msra.mxu0 %v998
        %1010 = vmatpush.bf16.msra.mxu0 %v997
        %1011 = vmatpush.bf16.msra.mxu0 %v996
        %1012 = vmatpush.bf16.msra.mxu0 %v995
        %1013 = vmatpush.bf16.msra.mxu0 %v994
        %1014 = vmatpush.bf16.msra.mxu0 %v993
        %1015 = vmatpush.bf16.msra.mxu0 %v992
        %1016 = vmatmul.bf16.gmra.mxu0 %v955
        %v1017 = vpop.f32.mrf.mxu0
        %v1018 = vadd.f32 %v959, %v1017
        %v1019 = vpop.f32.mrf.mxu0
        %v1020 = vadd.f32 %v959, %v1019
        %1021 = vmatmul.bf16.gmra.mxu0 %v956
        %v1022 = vpop.f32.mrf.mxu0
        %v1023 = vadd.f32 %v959, %v1022
        %v1024 = vpop.f32.mrf.mxu0
        %v1025 = vadd.f32 %v959, %v1024
        %1026 = vmatmul.bf16.gmra.mxu0 %v957
        %v1027 = vpop.f32.mrf.mxu0
        %v1028 = vadd.f32 %v959, %v1027
        %v1029 = vpop.f32.mrf.mxu0
        %v1030 = vadd.f32 %v959, %v1029
        %1031 = vmatmul.bf16.gmra.mxu0 %v958
        %v1032 = vpop.f32.mrf.mxu0
        %v1033 = vadd.f32 %v959, %v1032
        %v1034 = vpop.f32.mrf.mxu0
        %v1035 = vadd.f32 %v959, %v1034
        %1036 = vdwg.mxu0
        %v1037 = vmax.f32 %v1018, 0.0
        %v1038 = vmax.f32 %v1020, 0.0
        %v1039 = vmax.f32 %v1023, 0.0
        %v1040 = vmax.f32 %v1025, 0.0
        %v1041 = vmax.f32 %v1028, 0.0
        %v1042 = vmax.f32 %v1030, 0.0
        %v1043 = vmax.f32 %v1033, 0.0
        %v1044 = vmax.f32 %v1035, 0.0
        %v1045 = vld [vmem:[#allocation8] sm:$0xf]
        %v1046 = vld [vmem:[#allocation8 + $0x4] sm:$0xf]
        %v1047 = vld [vmem:[#allocation8 + $0x8] sm:$0xf]
        %v1048 = vld [vmem:[#allocation8 + $0xc] sm:$0xf]
        %v1049 = vld [vmem:[#allocation8 + $0x10] sm:$0xf]
        %v1050 = vld [vmem:[#allocation8 + $0x14] sm:$0xf]
        %v1051 = vld [vmem:[#allocation8 + $0x18] sm:$0xf]
        %v1052 = vld [vmem:[#allocation8 + $0x1c] sm:$0xf]
        %v1053 = vld [vmem:[#allocation8 + $0x20] sm:$0xf]
        %v1054 = vld [vmem:[#allocation8 + $0x24] sm:$0xf]
        %v1055 = vld [vmem:[#allocation8 + $0x28] sm:$0xf]
        %v1056 = vld [vmem:[#allocation8 + $0x2c] sm:$0xf]
        %v1057 = vld [vmem:[#allocation8 + $0x30] sm:$0xf]
        %v1058 = vld [vmem:[#allocation8 + $0x34] sm:$0xf]
        %v1059 = vld [vmem:[#allocation8 + $0x38] sm:$0xf]
        %v1060 = vld [vmem:[#allocation8 + $0x3c] sm:$0xf]
        %v1061 = vld [vmem:[#allocation26 + $0x2] sm:$0x1]
        %v1062 = vpack.c.bf16 %v1038, %v1037
        %v1063 = vpack.c.bf16 %v1040, %v1039
        %v1064 = vpack.c.bf16 %v1042, %v1041
        %v1065 = vpack.c.bf16 %v1044, %v1043
        %v1066 = vperm.slane %v1061, 0
        %v1083 = vunpack.c.l.b16 %v1045
        %v1084 = vunpack.c.l.b16 %v1046
        %v1085 = vunpack.c.l.b16 %v1047
        %v1086 = vunpack.c.l.b16 %v1048
        %v1087 = vunpack.c.l.b16 %v1049
        %v1088 = vunpack.c.l.b16 %v1050
        %v1089 = vunpack.c.l.b16 %v1051
        %v1090 = vunpack.c.l.b16 %v1052
        %v1091 = vunpack.c.l.b16 %v1053
        %v1092 = vunpack.c.l.b16 %v1054
        %v1093 = vunpack.c.l.b16 %v1055
        %v1094 = vunpack.c.l.b16 %v1056
        %v1095 = vunpack.c.l.b16 %v1057
        %v1096 = vunpack.c.l.b16 %v1058
        %v1097 = vunpack.c.l.b16 %v1059
        %v1098 = vunpack.c.l.b16 %v1060
        %v1099 = vpack.c.b16 %v1084, %v1083
        %v1100 = vpack.c.b16 %v1086, %v1085
        %v1101 = vpack.c.b16 %v1088, %v1087
        %v1102 = vpack.c.b16 %v1090, %v1089
        %v1103 = vpack.c.b16 %v1092, %v1091
        %v1104 = vpack.c.b16 %v1094, %v1093
        %v1105 = vpack.c.b16 %v1096, %v1095
        %v1106 = vpack.c.b16 %v1098, %v1097
        %1115 = vmatpush.bf16.msra.mxu0 %v1106
        %1116 = vmatpush.bf16.msra.mxu0 %v1105
        %1117 = vmatpush.bf16.msra.mxu0 %v1104
        %1118 = vmatpush.bf16.msra.mxu0 %v1103
        %1119 = vmatpush.bf16.msra.mxu0 %v1102
        %1120 = vmatpush.bf16.msra.mxu0 %v1101
        %1121 = vmatpush.bf16.msra.mxu0 %v1100
        %1122 = vmatpush.bf16.msra.mxu0 %v1099
        %1123 = vmatmul.bf16.gmra.mxu0 %v1062
        %v1124 = vpop.f32.mrf.mxu0
        %v1125 = vadd.f32 %v1066, %v1124
        %v1126 = vpop.f32.mrf.mxu0
        %v1127 = vadd.f32 %v1066, %v1126
        %1128 = vmatmul.bf16.gmra.mxu0 %v1063
        %v1129 = vpop.f32.mrf.mxu0
        %v1130 = vadd.f32 %v1066, %v1129
        %v1131 = vpop.f32.mrf.mxu0
        %v1132 = vadd.f32 %v1066, %v1131
        %1133 = vmatmul.bf16.gmra.mxu0 %v1064
        %v1134 = vpop.f32.mrf.mxu0
        %v1135 = vadd.f32 %v1066, %v1134
        %v1136 = vpop.f32.mrf.mxu0
        %v1137 = vadd.f32 %v1066, %v1136
        %1138 = vmatmul.bf16.gmra.mxu0 %v1065
        %v1139 = vpop.f32.mrf.mxu0
        %v1140 = vadd.f32 %v1066, %v1139
        %v1141 = vpop.f32.mrf.mxu0
        %v1142 = vadd.f32 %v1066, %v1141
        %1143 = vdwg.mxu0
        %v1144 = vadd.f32 %v919, %v1125
        %v1145 = vadd.f32 %v921, %v1127
        %v1146 = vadd.f32 %v924, %v1130
        %v1147 = vadd.f32 %v926, %v1132
        %v1148 = vadd.f32 %v929, %v1135
        %v1149 = vadd.f32 %v931, %v1137
        %v1150 = vadd.f32 %v934, %v1140
        %v1151 = vadd.f32 %v936, %v1142
        %v1152 = vmax.f32 %v1144, 0.0
        %v1153 = vmax.f32 %v1145, 0.0
        %v1154 = vmax.f32 %v1146, 0.0
        %v1155 = vmax.f32 %v1147, 0.0
        %v1156 = vmax.f32 %v1148, 0.0
        %v1157 = vmax.f32 %v1149, 0.0
        %v1158 = vmax.f32 %v1150, 0.0
        %v1159 = vmax.f32 %v1151, 0.0
        %v1160 = vld [vmem:[#allocation10] sm:$0xf]
        %v1161 = vld [vmem:[#allocation10 + $0x4] sm:$0xf]
        %v1162 = vld [vmem:[#allocation10 + $0x8] sm:$0xf]
        %v1163 = vld [vmem:[#allocation10 + $0xc] sm:$0xf]
        %v1164 = vld [vmem:[#allocation10 + $0x10] sm:$0xf]
        %v1165 = vld [vmem:[#allocation10 + $0x14] sm:$0xf]
        %v1166 = vld [vmem:[#allocation10 + $0x18] sm:$0xf]
        %v1167 = vld [vmem:[#allocation10 + $0x1c] sm:$0xf]
        %v1168 = vld [vmem:[#allocation10 + $0x20] sm:$0xf]
        %v1169 = vld [vmem:[#allocation10 + $0x24] sm:$0xf]
        %v1170 = vld [vmem:[#allocation10 + $0x28] sm:$0xf]
        %v1171 = vld [vmem:[#allocation10 + $0x2c] sm:$0xf]
        %v1172 = vld [vmem:[#allocation10 + $0x30] sm:$0xf]
        %v1173 = vld [vmem:[#allocation10 + $0x34] sm:$0xf]
        %v1174 = vld [vmem:[#allocation10 + $0x38] sm:$0xf]
        %v1175 = vld [vmem:[#allocation10 + $0x3c] sm:$0xf]
        %v1176 = vld [vmem:[#allocation26 + $0x3] sm:$0x1]
        %v1177 = vpack.c.bf16 %v1153, %v1152
        %v1178 = vpack.c.bf16 %v1155, %v1154
        %v1179 = vpack.c.bf16 %v1157, %v1156
        %v1180 = vpack.c.bf16 %v1159, %v1158
        %v1181 = vperm.slane %v1176, 0
        %v1198 = vunpack.c.l.b16 %v1160
        %v1199 = vunpack.c.l.b16 %v1161
        %v1200 = vunpack.c.l.b16 %v1162
        %v1201 = vunpack.c.l.b16 %v1163
        %v1202 = vunpack.c.l.b16 %v1164
        %v1203 = vunpack.c.l.b16 %v1165
        %v1204 = vunpack.c.l.b16 %v1166
        %v1205 = vunpack.c.l.b16 %v1167
        %v1206 = vunpack.c.l.b16 %v1168
        %v1207 = vunpack.c.l.b16 %v1169
        %v1208 = vunpack.c.l.b16 %v1170
        %v1209 = vunpack.c.l.b16 %v1171
        %v1210 = vunpack.c.l.b16 %v1172
        %v1211 = vunpack.c.l.b16 %v1173
        %v1212 = vunpack.c.l.b16 %v1174
        %v1213 = vunpack.c.l.b16 %v1175
        %v1214 = vpack.c.b16 %v1199, %v1198
        %v1215 = vpack.c.b16 %v1201, %v1200
        %v1216 = vpack.c.b16 %v1203, %v1202
        %v1217 = vpack.c.b16 %v1205, %v1204
        %v1218 = vpack.c.b16 %v1207, %v1206
        %v1219 = vpack.c.b16 %v1209, %v1208
        %v1220 = vpack.c.b16 %v1211, %v1210
        %v1221 = vpack.c.b16 %v1213, %v1212
        %1230 = vmatpush.bf16.msra.mxu0 %v1221
        %1231 = vmatpush.bf16.msra.mxu0 %v1220
        %1232 = vmatpush.bf16.msra.mxu0 %v1219
        %1233 = vmatpush.bf16.msra.mxu0 %v1218
        %1234 = vmatpush.bf16.msra.mxu0 %v1217
        %1235 = vmatpush.bf16.msra.mxu0 %v1216
        %1236 = vmatpush.bf16.msra.mxu0 %v1215
        %1237 = vmatpush.bf16.msra.mxu0 %v1214
        %1238 = vmatmul.bf16.gmra.mxu0 %v1177
        %v1239 = vpop.f32.mrf.mxu0
        %v1240 = vadd.f32 %v1181, %v1239
        %v1241 = vpop.f32.mrf.mxu0
        %v1242 = vadd.f32 %v1181, %v1241
        %1243 = vmatmul.bf16.gmra.mxu0 %v1178
        %v1244 = vpop.f32.mrf.mxu0
        %v1245 = vadd.f32 %v1181, %v1244
        %v1246 = vpop.f32.mrf.mxu0
        %v1247 = vadd.f32 %v1181, %v1246
        %1248 = vmatmul.bf16.gmra.mxu0 %v1179
        %v1249 = vpop.f32.mrf.mxu0
        %v1250 = vadd.f32 %v1181, %v1249
        %v1251 = vpop.f32.mrf.mxu0
        %v1252 = vadd.f32 %v1181, %v1251
        %1253 = vmatmul.bf16.gmra.mxu0 %v1180
        %v1254 = vpop.f32.mrf.mxu0
        %v1255 = vadd.f32 %v1181, %v1254
        %v1256 = vpop.f32.mrf.mxu0
        %v1257 = vadd.f32 %v1181, %v1256
        %1258 = vdwg.mxu0
        %v1259 = vld [vmem:[#allocation11] sm:$0xf]
        %v1260 = vld [vmem:[#allocation11 + $0x4] sm:$0xf]
        %v1261 = vld [vmem:[#allocation11 + $0x8] sm:$0xf]
        %v1262 = vld [vmem:[#allocation11 + $0xc] sm:$0xf]
        %v1263 = vld [vmem:[#allocation11 + $0x10] sm:$0xf]
        %v1264 = vld [vmem:[#allocation11 + $0x14] sm:$0xf]
        %v1265 = vld [vmem:[#allocation11 + $0x18] sm:$0xf]
        %v1266 = vld [vmem:[#allocation11 + $0x1c] sm:$0xf]
        %v1267 = vld [vmem:[#allocation11 + $0x20] sm:$0xf]
        %v1268 = vld [vmem:[#allocation11 + $0x24] sm:$0xf]
        %v1269 = vld [vmem:[#allocation11 + $0x28] sm:$0xf]
        %v1270 = vld [vmem:[#allocation11 + $0x2c] sm:$0xf]
        %v1271 = vld [vmem:[#allocation11 + $0x30] sm:$0xf]
        %v1272 = vld [vmem:[#allocation11 + $0x34] sm:$0xf]
        %v1273 = vld [vmem:[#allocation11 + $0x38] sm:$0xf]
        %v1274 = vld [vmem:[#allocation11 + $0x3c] sm:$0xf]
        %v1275 = vld [vmem:[#allocation26 + $0x4] sm:$0x1]
        %v1276 = vpack.c.bf16 %v1242, %v1240
        %v1277 = vpack.c.bf16 %v1247, %v1245
        %v1278 = vpack.c.bf16 %v1252, %v1250
        %v1279 = vpack.c.bf16 %v1257, %v1255
        %v1280 = vperm.slane %v1275, 0
        %v1297 = vunpack.c.l.b16 %v1259
        %v1298 = vunpack.c.l.b16 %v1260
        %v1299 = vunpack.c.l.b16 %v1261
        %v1300 = vunpack.c.l.b16 %v1262
        %v1301 = vunpack.c.l.b16 %v1263
        %v1302 = vunpack.c.l.b16 %v1264
        %v1303 = vunpack.c.l.b16 %v1265
        %v1304 = vunpack.c.l.b16 %v1266
        %v1305 = vunpack.c.l.b16 %v1267
        %v1306 = vunpack.c.l.b16 %v1268
        %v1307 = vunpack.c.l.b16 %v1269
        %v1308 = vunpack.c.l.b16 %v1270
        %v1309 = vunpack.c.l.b16 %v1271
        %v1310 = vunpack.c.l.b16 %v1272
        %v1311 = vunpack.c.l.b16 %v1273
        %v1312 = vunpack.c.l.b16 %v1274
        %v1313 = vpack.c.b16 %v1298, %v1297
        %v1314 = vpack.c.b16 %v1300, %v1299
        %v1315 = vpack.c.b16 %v1302, %v1301
        %v1316 = vpack.c.b16 %v1304, %v1303
        %v1317 = vpack.c.b16 %v1306, %v1305
        %v1318 = vpack.c.b16 %v1308, %v1307
        %v1319 = vpack.c.b16 %v1310, %v1309
        %v1320 = vpack.c.b16 %v1312, %v1311
        %1329 = vmatpush.bf16.msra.mxu0 %v1320
        %1330 = vmatpush.bf16.msra.mxu0 %v1319
        %1331 = vmatpush.bf16.msra.mxu0 %v1318
        %1332 = vmatpush.bf16.msra.mxu0 %v1317
        %1333 = vmatpush.bf16.msra.mxu0 %v1316
        %1334 = vmatpush.bf16.msra.mxu0 %v1315
        %1335 = vmatpush.bf16.msra.mxu0 %v1314
        %1336 = vmatpush.bf16.msra.mxu0 %v1313
        %1337 = vmatmul.bf16.gmra.mxu0 %v1276
        %v1338 = vpop.f32.mrf.mxu0
        %v1339 = vadd.f32 %v1280, %v1338
        %v1340 = vpop.f32.mrf.mxu0
        %v1341 = vadd.f32 %v1280, %v1340
        %1342 = vmatmul.bf16.gmra.mxu0 %v1277
        %v1343 = vpop.f32.mrf.mxu0
        %v1344 = vadd.f32 %v1280, %v1343
        %v1345 = vpop.f32.mrf.mxu0
        %v1346 = vadd.f32 %v1280, %v1345
        %1347 = vmatmul.bf16.gmra.mxu0 %v1278
        %v1348 = vpop.f32.mrf.mxu0
        %v1349 = vadd.f32 %v1280, %v1348
        %v1350 = vpop.f32.mrf.mxu0
        %v1351 = vadd.f32 %v1280, %v1350
        %1352 = vmatmul.bf16.gmra.mxu0 %v1279
        %v1353 = vpop.f32.mrf.mxu0
        %v1354 = vadd.f32 %v1280, %v1353
        %v1355 = vpop.f32.mrf.mxu0
        %v1356 = vadd.f32 %v1280, %v1355
        %1357 = vdwg.mxu0
        %v1358 = vmax.f32 %v1339, 0.0
        %v1359 = vmax.f32 %v1341, 0.0
        %v1360 = vmax.f32 %v1344, 0.0
        %v1361 = vmax.f32 %v1346, 0.0
        %v1362 = vmax.f32 %v1349, 0.0
        %v1363 = vmax.f32 %v1351, 0.0
        %v1364 = vmax.f32 %v1354, 0.0
        %v1365 = vmax.f32 %v1356, 0.0
        %v1366 = vld [vmem:[#allocation13] sm:$0xf]
        %v1367 = vld [vmem:[#allocation13 + $0x4] sm:$0xf]
        %v1368 = vld [vmem:[#allocation13 + $0x8] sm:$0xf]
        %v1369 = vld [vmem:[#allocation13 + $0xc] sm:$0xf]
        %v1370 = vld [vmem:[#allocation13 + $0x10] sm:$0xf]
        %v1371 = vld [vmem:[#allocation13 + $0x14] sm:$0xf]
        %v1372 = vld [vmem:[#allocation13 + $0x18] sm:$0xf]
        %v1373 = vld [vmem:[#allocation13 + $0x1c] sm:$0xf]
        %v1374 = vld [vmem:[#allocation13 + $0x20] sm:$0xf]
        %v1375 = vld [vmem:[#allocation13 + $0x24] sm:$0xf]
        %v1376 = vld [vmem:[#allocation13 + $0x28] sm:$0xf]
        %v1377 = vld [vmem:[#allocation13 + $0x2c] sm:$0xf]
        %v1378 = vld [vmem:[#allocation13 + $0x30] sm:$0xf]
        %v1379 = vld [vmem:[#allocation13 + $0x34] sm:$0xf]
        %v1380 = vld [vmem:[#allocation13 + $0x38] sm:$0xf]
        %v1381 = vld [vmem:[#allocation13 + $0x3c] sm:$0xf]
        %v1382 = vld [vmem:[#allocation26 + $0x5] sm:$0x1]
        %v1383 = vpack.c.bf16 %v1359, %v1358
        %v1384 = vpack.c.bf16 %v1361, %v1360
        %v1385 = vpack.c.bf16 %v1363, %v1362
        %v1386 = vpack.c.bf16 %v1365, %v1364
        %v1387 = vperm.slane %v1382, 0
        %v1404 = vunpack.c.l.b16 %v1366
        %v1405 = vunpack.c.l.b16 %v1367
        %v1406 = vunpack.c.l.b16 %v1368
        %v1407 = vunpack.c.l.b16 %v1369
        %v1408 = vunpack.c.l.b16 %v1370
        %v1409 = vunpack.c.l.b16 %v1371
        %v1410 = vunpack.c.l.b16 %v1372
        %v1411 = vunpack.c.l.b16 %v1373
        %v1412 = vunpack.c.l.b16 %v1374
        %v1413 = vunpack.c.l.b16 %v1375
        %v1414 = vunpack.c.l.b16 %v1376
        %v1415 = vunpack.c.l.b16 %v1377
        %v1416 = vunpack.c.l.b16 %v1378
        %v1417 = vunpack.c.l.b16 %v1379
        %v1418 = vunpack.c.l.b16 %v1380
        %v1419 = vunpack.c.l.b16 %v1381
        %v1420 = vpack.c.b16 %v1405, %v1404
        %v1421 = vpack.c.b16 %v1407, %v1406
        %v1422 = vpack.c.b16 %v1409, %v1408
        %v1423 = vpack.c.b16 %v1411, %v1410
        %v1424 = vpack.c.b16 %v1413, %v1412
        %v1425 = vpack.c.b16 %v1415, %v1414
        %v1426 = vpack.c.b16 %v1417, %v1416
        %v1427 = vpack.c.b16 %v1419, %v1418
        %1436 = vmatpush.bf16.msra.mxu0 %v1427
        %1437 = vmatpush.bf16.msra.mxu0 %v1426
        %1438 = vmatpush.bf16.msra.mxu0 %v1425
        %1439 = vmatpush.bf16.msra.mxu0 %v1424
        %1440 = vmatpush.bf16.msra.mxu0 %v1423
        %1441 = vmatpush.bf16.msra.mxu0 %v1422
        %1442 = vmatpush.bf16.msra.mxu0 %v1421
        %1443 = vmatpush.bf16.msra.mxu0 %v1420
        %1444 = vmatmul.bf16.gmra.mxu0 %v1383
        %v1445 = vpop.f32.mrf.mxu0
        %v1446 = vadd.f32 %v1387, %v1445
        %v1447 = vpop.f32.mrf.mxu0
        %v1448 = vadd.f32 %v1387, %v1447
        %1449 = vmatmul.bf16.gmra.mxu0 %v1384
        %v1450 = vpop.f32.mrf.mxu0
        %v1451 = vadd.f32 %v1387, %v1450
        %v1452 = vpop.f32.mrf.mxu0
        %v1453 = vadd.f32 %v1387, %v1452
        %1454 = vmatmul.bf16.gmra.mxu0 %v1385
        %v1455 = vpop.f32.mrf.mxu0
        %v1456 = vadd.f32 %v1387, %v1455
        %v1457 = vpop.f32.mrf.mxu0
        %v1458 = vadd.f32 %v1387, %v1457
        %1459 = vmatmul.bf16.gmra.mxu0 %v1386
        %v1460 = vpop.f32.mrf.mxu0
        %v1461 = vadd.f32 %v1387, %v1460
        %v1462 = vpop.f32.mrf.mxu0
        %v1463 = vadd.f32 %v1387, %v1462
        %1464 = vdwg.mxu0
        %v1465 = vadd.f32 %v1240, %v1446
        %v1466 = vadd.f32 %v1242, %v1448
        %v1467 = vadd.f32 %v1245, %v1451
        %v1468 = vadd.f32 %v1247, %v1453
        %v1469 = vadd.f32 %v1250, %v1456
        %v1470 = vadd.f32 %v1252, %v1458
        %v1471 = vadd.f32 %v1255, %v1461
        %v1472 = vadd.f32 %v1257, %v1463
        %v1473 = vmax.f32 %v1465, 0.0
        %v1474 = vmax.f32 %v1466, 0.0
        %v1475 = vmax.f32 %v1467, 0.0
        %v1476 = vmax.f32 %v1468, 0.0
        %v1477 = vmax.f32 %v1469, 0.0
        %v1478 = vmax.f32 %v1470, 0.0
        %v1479 = vmax.f32 %v1471, 0.0
        %v1480 = vmax.f32 %v1472, 0.0
        %v1481 = vld [vmem:[#allocation14] sm:$0xf]
        %v1482 = vld [vmem:[#allocation14 + $0x4] sm:$0xf]
        %v1483 = vld [vmem:[#allocation14 + $0x8] sm:$0xf]
        %v1484 = vld [vmem:[#allocation14 + $0xc] sm:$0xf]
        %v1485 = vld [vmem:[#allocation14 + $0x10] sm:$0xf]
        %v1486 = vld [vmem:[#allocation14 + $0x14] sm:$0xf]
        %v1487 = vld [vmem:[#allocation14 + $0x18] sm:$0xf]
        %v1488 = vld [vmem:[#allocation14 + $0x1c] sm:$0xf]
        %v1489 = vld [vmem:[#allocation14 + $0x20] sm:$0xf]
        %v1490 = vld [vmem:[#allocation14 + $0x24] sm:$0xf]
        %v1491 = vld [vmem:[#allocation14 + $0x28] sm:$0xf]
        %v1492 = vld [vmem:[#allocation14 + $0x2c] sm:$0xf]
        %v1493 = vld [vmem:[#allocation14 + $0x30] sm:$0xf]
        %v1494 = vld [vmem:[#allocation14 + $0x34] sm:$0xf]
        %v1495 = vld [vmem:[#allocation14 + $0x38] sm:$0xf]
        %v1496 = vld [vmem:[#allocation14 + $0x3c] sm:$0xf]
        %v1497 = vld [vmem:[#allocation26 + $0x6] sm:$0x1]
        %v1498 = vpack.c.bf16 %v1474, %v1473
        %v1499 = vpack.c.bf16 %v1476, %v1475
        %v1500 = vpack.c.bf16 %v1478, %v1477
        %v1501 = vpack.c.bf16 %v1480, %v1479
        %v1502 = vperm.slane %v1497, 0
        %v1519 = vunpack.c.l.b16 %v1481
        %v1520 = vunpack.c.l.b16 %v1482
        %v1521 = vunpack.c.l.b16 %v1483
        %v1522 = vunpack.c.l.b16 %v1484
        %v1523 = vunpack.c.l.b16 %v1485
        %v1524 = vunpack.c.l.b16 %v1486
        %v1525 = vunpack.c.l.b16 %v1487
        %v1526 = vunpack.c.l.b16 %v1488
        %v1527 = vunpack.c.l.b16 %v1489
        %v1528 = vunpack.c.l.b16 %v1490
        %v1529 = vunpack.c.l.b16 %v1491
        %v1530 = vunpack.c.l.b16 %v1492
        %v1531 = vunpack.c.l.b16 %v1493
        %v1532 = vunpack.c.l.b16 %v1494
        %v1533 = vunpack.c.l.b16 %v1495
        %v1534 = vunpack.c.l.b16 %v1496
        %v1535 = vpack.c.b16 %v1520, %v1519
        %v1536 = vpack.c.b16 %v1522, %v1521
        %v1537 = vpack.c.b16 %v1524, %v1523
        %v1538 = vpack.c.b16 %v1526, %v1525
        %v1539 = vpack.c.b16 %v1528, %v1527
        %v1540 = vpack.c.b16 %v1530, %v1529
        %v1541 = vpack.c.b16 %v1532, %v1531
        %v1542 = vpack.c.b16 %v1534, %v1533
        %1551 = vmatpush.bf16.msra.mxu0 %v1542
        %1552 = vmatpush.bf16.msra.mxu0 %v1541
        %1553 = vmatpush.bf16.msra.mxu0 %v1540
        %1554 = vmatpush.bf16.msra.mxu0 %v1539
        %1555 = vmatpush.bf16.msra.mxu0 %v1538
        %1556 = vmatpush.bf16.msra.mxu0 %v1537
        %1557 = vmatpush.bf16.msra.mxu0 %v1536
        %1558 = vmatpush.bf16.msra.mxu0 %v1535
        %1559 = vmatmul.bf16.gmra.mxu0 %v1498
        %v1560 = vpop.f32.mrf.mxu0
        %v1561 = vadd.f32 %v1502, %v1560
        %v1562 = vpop.f32.mrf.mxu0
        %v1563 = vadd.f32 %v1502, %v1562
        %1564 = vmatmul.bf16.gmra.mxu0 %v1499
        %v1565 = vpop.f32.mrf.mxu0
        %v1566 = vadd.f32 %v1502, %v1565
        %v1567 = vpop.f32.mrf.mxu0
        %v1568 = vadd.f32 %v1502, %v1567
        %1569 = vmatmul.bf16.gmra.mxu0 %v1500
        %v1570 = vpop.f32.mrf.mxu0
        %v1571 = vadd.f32 %v1502, %v1570
        %v1572 = vpop.f32.mrf.mxu0
        %v1573 = vadd.f32 %v1502, %v1572
        %1574 = vmatmul.bf16.gmra.mxu0 %v1501
        %v1575 = vpop.f32.mrf.mxu0
        %v1576 = vadd.f32 %v1502, %v1575
        %v1577 = vpop.f32.mrf.mxu0
        %v1578 = vadd.f32 %v1502, %v1577
        %1579 = vdwg.mxu0
        %1580 = vmax.xlane.f32.xlu0 %v1561
        %v1581 = vpop.xlane.xlu0 %1580
        %1582 = vmax.xlane.f32.xlu0 %v1563
        %v1583 = vpop.xlane.xlu0 %1582
        %1584 = vmax.xlane.f32.xlu0 %v1566
        %v1585 = vpop.xlane.xlu0 %1584
        %1586 = vmax.xlane.f32.xlu0 %v1568
        %v1587 = vpop.xlane.xlu0 %1586
        %1588 = vmax.xlane.f32.xlu0 %v1571
        %v1589 = vpop.xlane.xlu0 %1588
        %1590 = vmax.xlane.f32.xlu0 %v1573
        %v1591 = vpop.xlane.xlu0 %1590
        %1592 = vmax.xlane.f32.xlu0 %v1576
        %v1593 = vpop.xlane.xlu0 %1592
        %1594 = vmax.xlane.f32.xlu0 %v1578
        %v1595 = vpop.xlane.xlu0 %1594
        %v1596 = vsub.f32 %v1561, %v1581
        %v1597 = vsub.f32 %v1563, %v1583
        %v1598 = vsub.f32 %v1566, %v1585
        %v1599 = vsub.f32 %v1568, %v1587
        %v1600 = vsub.f32 %v1571, %v1589
        %v1601 = vsub.f32 %v1573, %v1591
        %v1602 = vsub.f32 %v1576, %v1593
        %v1603 = vsub.f32 %v1578, %v1595
        %v1604 = vmul.f32 %v1596, 1.442695
        %v1605 = vpow.pop %v1604
        %v1606 = vmul.f32 %v1597, 1.442695
        %v1607 = vpow.pop %v1606
        %v1608 = vmul.f32 %v1598, 1.442695
        %v1609 = vpow.pop %v1608
        %v1610 = vmul.f32 %v1599, 1.442695
        %v1611 = vpow.pop %v1610
        %v1612 = vmul.f32 %v1600, 1.442695
        %v1613 = vpow.pop %v1612
        %v1614 = vmul.f32 %v1601, 1.442695
        %v1615 = vpow.pop %v1614
        %v1616 = vmul.f32 %v1602, 1.442695
        %v1617 = vpow.pop %v1616
        %v1618 = vmul.f32 %v1603, 1.442695
        %v1619 = vpow.pop %v1618
        %1620 = vadd.xlane.f32.xlu0 %v1605
        %v1621 = vpop.xlane.xlu0 %1620
        %1622 = vadd.xlane.f32.xlu0 %v1607
        %v1623 = vpop.xlane.xlu0 %1622
        %1624 = vadd.xlane.f32.xlu0 %v1609
        %v1625 = vpop.xlane.xlu0 %1624
        %1626 = vadd.xlane.f32.xlu0 %v1611
        %v1627 = vpop.xlane.xlu0 %1626
        %1628 = vadd.xlane.f32.xlu0 %v1613
        %v1629 = vpop.xlane.xlu0 %1628
        %1630 = vadd.xlane.f32.xlu0 %v1615
        %v1631 = vpop.xlane.xlu0 %1630
        %1632 = vadd.xlane.f32.xlu0 %v1617
        %v1633 = vpop.xlane.xlu0 %1632
        %1634 = vadd.xlane.f32.xlu0 %v1619
        %v1635 = vpop.xlane.xlu0 %1634
        %v1636 = vrcp.pop %v1621
        %v1637 = vmul.f32 %v1621, %v1636
        %v1638 = vsub.f32 1.0, %v1637
        %v1639 = vmul.f32 %v1636, %v1638
        %v1640 = vadd.f32 %v1636, %v1639
        %vm1641 = vweird.f32 %v1621
        %vm1642 = vweird.f32 %v1636
        %vm1643 = vmor %vm1641, %vm1642
        %v1644 = vsel %vm1643, %v1636, %v1640
        %v1645 = vand.u32 2147483647, %v1621
        %vm1646 = vcmp.eq.f32.partialorder %v1645, 8.507059e+37
        %v1647 = vand.u32 %v1621, 2147483648
        %v1648 = vor.u32 1.1754944e-38, %v1647
        %v1649 = vsel %vm1646, %v1648, %v1644
        %v1650 = vmul.f32 %v1605, %v1649
        %v1651 = vrcp.pop %v1623
        %v1652 = vmul.f32 %v1623, %v1651
        %v1653 = vsub.f32 1.0, %v1652
        %v1654 = vmul.f32 %v1651, %v1653
        %v1655 = vadd.f32 %v1651, %v1654
        %vm1656 = vweird.f32 %v1623
        %vm1657 = vweird.f32 %v1651
        %vm1658 = vmor %vm1656, %vm1657
        %v1659 = vsel %vm1658, %v1651, %v1655
        %v1660 = vand.u32 2147483647, %v1623
        %vm1661 = vcmp.eq.f32.partialorder %v1660, 8.507059e+37
        %v1662 = vand.u32 %v1623, 2147483648
        %v1663 = vor.u32 1.1754944e-38, %v1662
        %v1664 = vsel %vm1661, %v1663, %v1659
        %v1665 = vmul.f32 %v1607, %v1664
        %v1666 = vrcp.pop %v1625
        %v1667 = vmul.f32 %v1625, %v1666
        %v1668 = vsub.f32 1.0, %v1667
        %v1669 = vmul.f32 %v1666, %v1668
        %v1670 = vadd.f32 %v1666, %v1669
        %vm1671 = vweird.f32 %v1625
        %vm1672 = vweird.f32 %v1666
        %vm1673 = vmor %vm1671, %vm1672
        %v1674 = vsel %vm1673, %v1666, %v1670
        %v1675 = vand.u32 2147483647, %v1625
        %vm1676 = vcmp.eq.f32.partialorder %v1675, 8.507059e+37
        %v1677 = vand.u32 %v1625, 2147483648
        %v1678 = vor.u32 1.1754944e-38, %v1677
        %v1679 = vsel %vm1676, %v1678, %v1674
        %v1680 = vmul.f32 %v1609, %v1679
        %v1681 = vrcp.pop %v1627
        %v1682 = vmul.f32 %v1627, %v1681
        %v1683 = vsub.f32 1.0, %v1682
        %v1684 = vmul.f32 %v1681, %v1683
        %v1685 = vadd.f32 %v1681, %v1684
        %vm1686 = vweird.f32 %v1627
        %vm1687 = vweird.f32 %v1681
        %vm1688 = vmor %vm1686, %vm1687
        %v1689 = vsel %vm1688, %v1681, %v1685
        %v1690 = vand.u32 2147483647, %v1627
        %vm1691 = vcmp.eq.f32.partialorder %v1690, 8.507059e+37
        %v1692 = vand.u32 %v1627, 2147483648
        %v1693 = vor.u32 1.1754944e-38, %v1692
        %v1694 = vsel %vm1691, %v1693, %v1689
        %v1695 = vmul.f32 %v1611, %v1694
        %v1696 = vrcp.pop %v1629
        %v1697 = vmul.f32 %v1629, %v1696
        %v1698 = vsub.f32 1.0, %v1697
        %v1699 = vmul.f32 %v1696, %v1698
        %v1700 = vadd.f32 %v1696, %v1699
        %vm1701 = vweird.f32 %v1629
        %vm1702 = vweird.f32 %v1696
        %vm1703 = vmor %vm1701, %vm1702
        %v1704 = vsel %vm1703, %v1696, %v1700
        %v1705 = vand.u32 2147483647, %v1629
        %vm1706 = vcmp.eq.f32.partialorder %v1705, 8.507059e+37
        %v1707 = vand.u32 %v1629, 2147483648
        %v1708 = vor.u32 1.1754944e-38, %v1707
        %v1709 = vsel %vm1706, %v1708, %v1704
        %v1710 = vmul.f32 %v1613, %v1709
        %v1711 = vrcp.pop %v1631
        %v1712 = vmul.f32 %v1631, %v1711
        %v1713 = vsub.f32 1.0, %v1712
        %v1714 = vmul.f32 %v1711, %v1713
        %v1715 = vadd.f32 %v1711, %v1714
        %vm1716 = vweird.f32 %v1631
        %vm1717 = vweird.f32 %v1711
        %vm1718 = vmor %vm1716, %vm1717
        %v1719 = vsel %vm1718, %v1711, %v1715
        %v1720 = vand.u32 2147483647, %v1631
        %vm1721 = vcmp.eq.f32.partialorder %v1720, 8.507059e+37
        %v1722 = vand.u32 %v1631, 2147483648
        %v1723 = vor.u32 1.1754944e-38, %v1722
        %v1724 = vsel %vm1721, %v1723, %v1719
        %v1725 = vmul.f32 %v1615, %v1724
        %v1726 = vrcp.pop %v1633
        %v1727 = vmul.f32 %v1633, %v1726
        %v1728 = vsub.f32 1.0, %v1727
        %v1729 = vmul.f32 %v1726, %v1728
        %v1730 = vadd.f32 %v1726, %v1729
        %vm1731 = vweird.f32 %v1633
        %vm1732 = vweird.f32 %v1726
        %vm1733 = vmor %vm1731, %vm1732
        %v1734 = vsel %vm1733, %v1726, %v1730
        %v1735 = vand.u32 2147483647, %v1633
        %vm1736 = vcmp.eq.f32.partialorder %v1735, 8.507059e+37
        %v1737 = vand.u32 %v1633, 2147483648
        %v1738 = vor.u32 1.1754944e-38, %v1737
        %v1739 = vsel %vm1736, %v1738, %v1734
        %v1740 = vmul.f32 %v1617, %v1739
        %v1741 = vrcp.pop %v1635
        %v1742 = vmul.f32 %v1635, %v1741
        %v1743 = vsub.f32 1.0, %v1742
        %v1744 = vmul.f32 %v1741, %v1743
        %v1745 = vadd.f32 %v1741, %v1744
        %vm1746 = vweird.f32 %v1635
        %vm1747 = vweird.f32 %v1741
        %vm1748 = vmor %vm1746, %vm1747
        %v1749 = vsel %vm1748, %v1741, %v1745
        %v1750 = vand.u32 2147483647, %v1635
        %vm1751 = vcmp.eq.f32.partialorder %v1750, 8.507059e+37
        %v1752 = vand.u32 %v1635, 2147483648
        %v1753 = vor.u32 1.1754944e-38, %v1752
        %v1754 = vsel %vm1751, %v1753, %v1749
        %v1755 = vmul.f32 %v1619, %v1754
        %v1756 = vld [vmem:[#allocation16] sm:$0xf]
        %v1757 = vld [vmem:[#allocation16 + $0x4] sm:$0xf]
        %v1758 = vld [vmem:[#allocation16 + $0x8] sm:$0xf]
        %v1759 = vld [vmem:[#allocation16 + $0xc] sm:$0xf]
        %v1760 = vld [vmem:[#allocation16 + $0x10] sm:$0xf]
        %v1761 = vld [vmem:[#allocation16 + $0x14] sm:$0xf]
        %v1762 = vld [vmem:[#allocation16 + $0x18] sm:$0xf]
        %v1763 = vld [vmem:[#allocation16 + $0x1c] sm:$0xf]
        %v1764 = vld [vmem:[#allocation16 + $0x20] sm:$0xf]
        %v1765 = vld [vmem:[#allocation16 + $0x24] sm:$0xf]
        %v1766 = vld [vmem:[#allocation16 + $0x28] sm:$0xf]
        %v1767 = vld [vmem:[#allocation16 + $0x2c] sm:$0xf]
        %v1768 = vld [vmem:[#allocation16 + $0x30] sm:$0xf]
        %v1769 = vld [vmem:[#allocation16 + $0x34] sm:$0xf]
        %v1770 = vld [vmem:[#allocation16 + $0x38] sm:$0xf]
        %v1771 = vld [vmem:[#allocation16 + $0x3c] sm:$0xf]
        %v1772 = vld [vmem:[#allocation26 + $0x7] sm:$0x1]
        %v1773 = vpack.c.bf16 %v1665, %v1650
        %v1774 = vpack.c.bf16 %v1695, %v1680
        %v1775 = vpack.c.bf16 %v1725, %v1710
        %v1776 = vpack.c.bf16 %v1755, %v1740
        %v1777 = vperm.slane %v1772, 0
        %v1794 = vunpack.c.l.b16 %v1756
        %v1795 = vunpack.c.l.b16 %v1757
        %v1796 = vunpack.c.l.b16 %v1758
        %v1797 = vunpack.c.l.b16 %v1759
        %v1798 = vunpack.c.l.b16 %v1760
        %v1799 = vunpack.c.l.b16 %v1761
        %v1800 = vunpack.c.l.b16 %v1762
        %v1801 = vunpack.c.l.b16 %v1763
        %v1802 = vunpack.c.l.b16 %v1764
        %v1803 = vunpack.c.l.b16 %v1765
        %v1804 = vunpack.c.l.b16 %v1766
        %v1805 = vunpack.c.l.b16 %v1767
        %v1806 = vunpack.c.l.b16 %v1768
        %v1807 = vunpack.c.l.b16 %v1769
        %v1808 = vunpack.c.l.b16 %v1770
        %v1809 = vunpack.c.l.b16 %v1771
        %v1810 = vpack.c.b16 %v1795, %v1794
        %v1811 = vpack.c.b16 %v1797, %v1796
        %v1812 = vpack.c.b16 %v1799, %v1798
        %v1813 = vpack.c.b16 %v1801, %v1800
        %v1814 = vpack.c.b16 %v1803, %v1802
        %v1815 = vpack.c.b16 %v1805, %v1804
        %v1816 = vpack.c.b16 %v1807, %v1806
        %v1817 = vpack.c.b16 %v1809, %v1808
        %1826 = vmatpush.bf16.msra.mxu0 %v1817
        %1827 = vmatpush.bf16.msra.mxu0 %v1816
        %1828 = vmatpush.bf16.msra.mxu0 %v1815
        %1829 = vmatpush.bf16.msra.mxu0 %v1814
        %1830 = vmatpush.bf16.msra.mxu0 %v1813
        %1831 = vmatpush.bf16.msra.mxu0 %v1812
        %1832 = vmatpush.bf16.msra.mxu0 %v1811
        %1833 = vmatpush.bf16.msra.mxu0 %v1810
        %1834 = vmatmul.bf16.gmra.mxu0 %v1773
        %v1835 = vpop.f32.mrf.mxu0
        %v1836 = vadd.f32 %v1777, %v1835
        %v1837 = vpop.f32.mrf.mxu0
        %v1838 = vadd.f32 %v1777, %v1837
        %1839 = vmatmul.bf16.gmra.mxu0 %v1774
        %v1840 = vpop.f32.mrf.mxu0
        %v1841 = vadd.f32 %v1777, %v1840
        %v1842 = vpop.f32.mrf.mxu0
        %v1843 = vadd.f32 %v1777, %v1842
        %1844 = vmatmul.bf16.gmra.mxu0 %v1775
        %v1845 = vpop.f32.mrf.mxu0
        %v1846 = vadd.f32 %v1777, %v1845
        %v1847 = vpop.f32.mrf.mxu0
        %v1848 = vadd.f32 %v1777, %v1847
        %1849 = vmatmul.bf16.gmra.mxu0 %v1776
        %v1850 = vpop.f32.mrf.mxu0
        %v1851 = vadd.f32 %v1777, %v1850
        %v1852 = vpop.f32.mrf.mxu0
        %v1853 = vadd.f32 %v1777, %v1852
        %1854 = vdwg.mxu0
        %v1855 = vld [vmem:[#allocation17] sm:$0xf]
        %v1856 = vld [vmem:[#allocation17 + $0x4] sm:$0xf]
        %v1857 = vld [vmem:[#allocation17 + $0x8] sm:$0xf]
        %v1858 = vld [vmem:[#allocation17 + $0xc] sm:$0xf]
        %v1859 = vld [vmem:[#allocation17 + $0x10] sm:$0xf]
        %v1860 = vld [vmem:[#allocation17 + $0x14] sm:$0xf]
        %v1861 = vld [vmem:[#allocation17 + $0x18] sm:$0xf]
        %v1862 = vld [vmem:[#allocation17 + $0x1c] sm:$0xf]
        %v1863 = vld [vmem:[#allocation17 + $0x20] sm:$0xf]
        %v1864 = vld [vmem:[#allocation17 + $0x24] sm:$0xf]
        %v1865 = vld [vmem:[#allocation17 + $0x28] sm:$0xf]
        %v1866 = vld [vmem:[#allocation17 + $0x2c] sm:$0xf]
        %v1867 = vld [vmem:[#allocation17 + $0x30] sm:$0xf]
        %v1868 = vld [vmem:[#allocation17 + $0x34] sm:$0xf]
        %v1869 = vld [vmem:[#allocation17 + $0x38] sm:$0xf]
        %v1870 = vld [vmem:[#allocation17 + $0x3c] sm:$0xf]
        %v1871 = vld [vmem:[#allocation26 + $0x8] sm:$0x1]
        %v1872 = vpack.c.bf16 %v1838, %v1836
        %v1873 = vpack.c.bf16 %v1843, %v1841
        %v1874 = vpack.c.bf16 %v1848, %v1846
        %v1875 = vpack.c.bf16 %v1853, %v1851
        %v1876 = vperm.slane %v1871, 0
        %v1893 = vunpack.c.l.b16 %v1855
        %v1894 = vunpack.c.l.b16 %v1856
        %v1895 = vunpack.c.l.b16 %v1857
        %v1896 = vunpack.c.l.b16 %v1858
        %v1897 = vunpack.c.l.b16 %v1859
        %v1898 = vunpack.c.l.b16 %v1860
        %v1899 = vunpack.c.l.b16 %v1861
        %v1900 = vunpack.c.l.b16 %v1862
        %v1901 = vunpack.c.l.b16 %v1863
        %v1902 = vunpack.c.l.b16 %v1864
        %v1903 = vunpack.c.l.b16 %v1865
        %v1904 = vunpack.c.l.b16 %v1866
        %v1905 = vunpack.c.l.b16 %v1867
        %v1906 = vunpack.c.l.b16 %v1868
        %v1907 = vunpack.c.l.b16 %v1869
        %v1908 = vunpack.c.l.b16 %v1870
        %v1909 = vpack.c.b16 %v1894, %v1893
        %v1910 = vpack.c.b16 %v1896, %v1895
        %v1911 = vpack.c.b16 %v1898, %v1897
        %v1912 = vpack.c.b16 %v1900, %v1899
        %v1913 = vpack.c.b16 %v1902, %v1901
        %v1914 = vpack.c.b16 %v1904, %v1903
        %v1915 = vpack.c.b16 %v1906, %v1905
        %v1916 = vpack.c.b16 %v1908, %v1907
        %1925 = vmatpush.bf16.msra.mxu0 %v1916
        %1926 = vmatpush.bf16.msra.mxu0 %v1915
        %1927 = vmatpush.bf16.msra.mxu0 %v1914
        %1928 = vmatpush.bf16.msra.mxu0 %v1913
        %1929 = vmatpush.bf16.msra.mxu0 %v1912
        %1930 = vmatpush.bf16.msra.mxu0 %v1911
        %1931 = vmatpush.bf16.msra.mxu0 %v1910
        %1932 = vmatpush.bf16.msra.mxu0 %v1909
        %1933 = vmatmul.bf16.gmra.mxu0 %v1872
        %v1934 = vpop.f32.mrf.mxu0
        %v1935 = vadd.f32 %v1876, %v1934
        %v1936 = vpop.f32.mrf.mxu0
        %v1937 = vadd.f32 %v1876, %v1936
        %1938 = vmatmul.bf16.gmra.mxu0 %v1873
        %v1939 = vpop.f32.mrf.mxu0
        %v1940 = vadd.f32 %v1876, %v1939
        %v1941 = vpop.f32.mrf.mxu0
        %v1942 = vadd.f32 %v1876, %v1941
        %1943 = vmatmul.bf16.gmra.mxu0 %v1874
        %v1944 = vpop.f32.mrf.mxu0
        %v1945 = vadd.f32 %v1876, %v1944
        %v1946 = vpop.f32.mrf.mxu0
        %v1947 = vadd.f32 %v1876, %v1946
        %1948 = vmatmul.bf16.gmra.mxu0 %v1875
        %v1949 = vpop.f32.mrf.mxu0
        %v1950 = vadd.f32 %v1876, %v1949
        %v1951 = vpop.f32.mrf.mxu0
        %v1952 = vadd.f32 %v1876, %v1951
        %1953 = vdwg.mxu0
        %v1954 = vmax.f32 %v1935, 0.0
        %v1955 = vmax.f32 %v1937, 0.0
        %v1956 = vmax.f32 %v1940, 0.0
        %v1957 = vmax.f32 %v1942, 0.0
        %v1958 = vmax.f32 %v1945, 0.0
        %v1959 = vmax.f32 %v1947, 0.0
        %v1960 = vmax.f32 %v1950, 0.0
        %v1961 = vmax.f32 %v1952, 0.0
        %v1962 = vld [vmem:[#allocation19] sm:$0xf]
        %v1963 = vld [vmem:[#allocation19 + $0x4] sm:$0xf]
        %v1964 = vld [vmem:[#allocation19 + $0x8] sm:$0xf]
        %v1965 = vld [vmem:[#allocation19 + $0xc] sm:$0xf]
        %v1966 = vld [vmem:[#allocation19 + $0x10] sm:$0xf]
        %v1967 = vld [vmem:[#allocation19 + $0x14] sm:$0xf]
        %v1968 = vld [vmem:[#allocation19 + $0x18] sm:$0xf]
        %v1969 = vld [vmem:[#allocation19 + $0x1c] sm:$0xf]
        %v1970 = vld [vmem:[#allocation19 + $0x20] sm:$0xf]
        %v1971 = vld [vmem:[#allocation19 + $0x24] sm:$0xf]
        %v1972 = vld [vmem:[#allocation19 + $0x28] sm:$0xf]
        %v1973 = vld [vmem:[#allocation19 + $0x2c] sm:$0xf]
        %v1974 = vld [vmem:[#allocation19 + $0x30] sm:$0xf]
        %v1975 = vld [vmem:[#allocation19 + $0x34] sm:$0xf]
        %v1976 = vld [vmem:[#allocation19 + $0x38] sm:$0xf]
        %v1977 = vld [vmem:[#allocation19 + $0x3c] sm:$0xf]
        %v1978 = vld [vmem:[#allocation26 + $0x9] sm:$0x1]
        %v1979 = vpack.c.bf16 %v1955, %v1954
        %v1980 = vpack.c.bf16 %v1957, %v1956
        %v1981 = vpack.c.bf16 %v1959, %v1958
        %v1982 = vpack.c.bf16 %v1961, %v1960
        %v1983 = vperm.slane %v1978, 0
        %v2000 = vunpack.c.l.b16 %v1962
        %v2001 = vunpack.c.l.b16 %v1963
        %v2002 = vunpack.c.l.b16 %v1964
        %v2003 = vunpack.c.l.b16 %v1965
        %v2004 = vunpack.c.l.b16 %v1966
        %v2005 = vunpack.c.l.b16 %v1967
        %v2006 = vunpack.c.l.b16 %v1968
        %v2007 = vunpack.c.l.b16 %v1969
        %v2008 = vunpack.c.l.b16 %v1970
        %v2009 = vunpack.c.l.b16 %v1971
        %v2010 = vunpack.c.l.b16 %v1972
        %v2011 = vunpack.c.l.b16 %v1973
        %v2012 = vunpack.c.l.b16 %v1974
        %v2013 = vunpack.c.l.b16 %v1975
        %v2014 = vunpack.c.l.b16 %v1976
        %v2015 = vunpack.c.l.b16 %v1977
        %v2016 = vpack.c.b16 %v2001, %v2000
        %v2017 = vpack.c.b16 %v2003, %v2002
        %v2018 = vpack.c.b16 %v2005, %v2004
        %v2019 = vpack.c.b16 %v2007, %v2006
        %v2020 = vpack.c.b16 %v2009, %v2008
        %v2021 = vpack.c.b16 %v2011, %v2010
        %v2022 = vpack.c.b16 %v2013, %v2012
        %v2023 = vpack.c.b16 %v2015, %v2014
        %2032 = vmatpush.bf16.msra.mxu0 %v2023
        %2033 = vmatpush.bf16.msra.mxu0 %v2022
        %2034 = vmatpush.bf16.msra.mxu0 %v2021
        %2035 = vmatpush.bf16.msra.mxu0 %v2020
        %2036 = vmatpush.bf16.msra.mxu0 %v2019
        %2037 = vmatpush.bf16.msra.mxu0 %v2018
        %2038 = vmatpush.bf16.msra.mxu0 %v2017
        %2039 = vmatpush.bf16.msra.mxu0 %v2016
        %2040 = vmatmul.bf16.gmra.mxu0 %v1979
        %v2041 = vpop.f32.mrf.mxu0
        %v2042 = vadd.f32 %v1983, %v2041
        %v2043 = vpop.f32.mrf.mxu0
        %v2044 = vadd.f32 %v1983, %v2043
        %2045 = vmatmul.bf16.gmra.mxu0 %v1980
        %v2046 = vpop.f32.mrf.mxu0
        %v2047 = vadd.f32 %v1983, %v2046
        %v2048 = vpop.f32.mrf.mxu0
        %v2049 = vadd.f32 %v1983, %v2048
        %2050 = vmatmul.bf16.gmra.mxu0 %v1981
        %v2051 = vpop.f32.mrf.mxu0
        %v2052 = vadd.f32 %v1983, %v2051
        %v2053 = vpop.f32.mrf.mxu0
        %v2054 = vadd.f32 %v1983, %v2053
        %2055 = vmatmul.bf16.gmra.mxu0 %v1982
        %v2056 = vpop.f32.mrf.mxu0
        %v2057 = vadd.f32 %v1983, %v2056
        %v2058 = vpop.f32.mrf.mxu0
        %v2059 = vadd.f32 %v1983, %v2058
        %2060 = vdwg.mxu0
        %v2061 = vadd.f32 %v1836, %v2042
        %v2062 = vadd.f32 %v1838, %v2044
        %v2063 = vadd.f32 %v1841, %v2047
        %v2064 = vadd.f32 %v1843, %v2049
        %v2065 = vadd.f32 %v1846, %v2052
        %v2066 = vadd.f32 %v1848, %v2054
        %v2067 = vadd.f32 %v1851, %v2057
        %v2068 = vadd.f32 %v1853, %v2059
        %v2069 = vmax.f32 %v2061, 0.0
        %v2070 = vmax.f32 %v2062, 0.0
        %v2071 = vmax.f32 %v2063, 0.0
        %v2072 = vmax.f32 %v2064, 0.0
        %v2073 = vmax.f32 %v2065, 0.0
        %v2074 = vmax.f32 %v2066, 0.0
        %v2075 = vmax.f32 %v2067, 0.0
        %v2076 = vmax.f32 %v2068, 0.0
        %v2077 = vld [vmem:[#allocation20] sm:$0xf]
        %v2078 = vld [vmem:[#allocation20 + $0x4] sm:$0xf]
        %v2079 = vld [vmem:[#allocation20 + $0x8] sm:$0xf]
        %v2080 = vld [vmem:[#allocation20 + $0xc] sm:$0xf]
        %v2081 = vld [vmem:[#allocation20 + $0x10] sm:$0xf]
        %v2082 = vld [vmem:[#allocation20 + $0x14] sm:$0xf]
        %v2083 = vld [vmem:[#allocation20 + $0x18] sm:$0xf]
        %v2084 = vld [vmem:[#allocation20 + $0x1c] sm:$0xf]
        %v2085 = vld [vmem:[#allocation20 + $0x20] sm:$0xf]
        %v2086 = vld [vmem:[#allocation20 + $0x24] sm:$0xf]
        %v2087 = vld [vmem:[#allocation20 + $0x28] sm:$0xf]
        %v2088 = vld [vmem:[#allocation20 + $0x2c] sm:$0xf]
        %v2089 = vld [vmem:[#allocation20 + $0x30] sm:$0xf]
        %v2090 = vld [vmem:[#allocation20 + $0x34] sm:$0xf]
        %v2091 = vld [vmem:[#allocation20 + $0x38] sm:$0xf]
        %v2092 = vld [vmem:[#allocation20 + $0x3c] sm:$0xf]
        %v2093 = vld [vmem:[#allocation26 + $0xa] sm:$0x1]
        %v2094 = vpack.c.bf16 %v2070, %v2069
        %v2095 = vpack.c.bf16 %v2072, %v2071
        %v2096 = vpack.c.bf16 %v2074, %v2073
        %v2097 = vpack.c.bf16 %v2076, %v2075
        %v2098 = vperm.slane %v2093, 0
        %v2115 = vunpack.c.l.b16 %v2077
        %v2116 = vunpack.c.l.b16 %v2078
        %v2117 = vunpack.c.l.b16 %v2079
        %v2118 = vunpack.c.l.b16 %v2080
        %v2119 = vunpack.c.l.b16 %v2081
        %v2120 = vunpack.c.l.b16 %v2082
        %v2121 = vunpack.c.l.b16 %v2083
        %v2122 = vunpack.c.l.b16 %v2084
        %v2123 = vunpack.c.l.b16 %v2085
        %v2124 = vunpack.c.l.b16 %v2086
        %v2125 = vunpack.c.l.b16 %v2087
        %v2126 = vunpack.c.l.b16 %v2088
        %v2127 = vunpack.c.l.b16 %v2089
        %v2128 = vunpack.c.l.b16 %v2090
        %v2129 = vunpack.c.l.b16 %v2091
        %v2130 = vunpack.c.l.b16 %v2092
        %v2131 = vpack.c.b16 %v2116, %v2115
        %v2132 = vpack.c.b16 %v2118, %v2117
        %v2133 = vpack.c.b16 %v2120, %v2119
        %v2134 = vpack.c.b16 %v2122, %v2121
        %v2135 = vpack.c.b16 %v2124, %v2123
        %v2136 = vpack.c.b16 %v2126, %v2125
        %v2137 = vpack.c.b16 %v2128, %v2127
        %v2138 = vpack.c.b16 %v2130, %v2129
        %2147 = vmatpush.bf16.msra.mxu0 %v2138
        %2148 = vmatpush.bf16.msra.mxu0 %v2137
        %2149 = vmatpush.bf16.msra.mxu0 %v2136
        %2150 = vmatpush.bf16.msra.mxu0 %v2135
        %2151 = vmatpush.bf16.msra.mxu0 %v2134
        %2152 = vmatpush.bf16.msra.mxu0 %v2133
        %2153 = vmatpush.bf16.msra.mxu0 %v2132
        %2154 = vmatpush.bf16.msra.mxu0 %v2131
        %2155 = vmatmul.bf16.gmra.mxu0 %v2094
        %v2156 = vpop.f32.mrf.mxu0
        %v2157 = vadd.f32 %v2098, %v2156
        %v2158 = vpop.f32.mrf.mxu0
        %v2159 = vadd.f32 %v2098, %v2158
        %2160 = vmatmul.bf16.gmra.mxu0 %v2095
        %v2161 = vpop.f32.mrf.mxu0
        %v2162 = vadd.f32 %v2098, %v2161
        %v2163 = vpop.f32.mrf.mxu0
        %v2164 = vadd.f32 %v2098, %v2163
        %2165 = vmatmul.bf16.gmra.mxu0 %v2096
        %v2166 = vpop.f32.mrf.mxu0
        %v2167 = vadd.f32 %v2098, %v2166
        %v2168 = vpop.f32.mrf.mxu0
        %v2169 = vadd.f32 %v2098, %v2168
        %2170 = vmatmul.bf16.gmra.mxu0 %v2097
        %v2171 = vpop.f32.mrf.mxu0
        %v2172 = vadd.f32 %v2098, %v2171
        %v2173 = vpop.f32.mrf.mxu0
        %v2174 = vadd.f32 %v2098, %v2173
        %2175 = vdwg.mxu0
        %v2176 = vld [vmem:[#allocation22] sm:$0xf]
        %v2177 = vld [vmem:[#allocation22 + $0x4] sm:$0xf]
        %v2178 = vld [vmem:[#allocation22 + $0x8] sm:$0xf]
        %v2179 = vld [vmem:[#allocation22 + $0xc] sm:$0xf]
        %v2180 = vld [vmem:[#allocation22 + $0x10] sm:$0xf]
        %v2181 = vld [vmem:[#allocation22 + $0x14] sm:$0xf]
        %v2182 = vld [vmem:[#allocation22 + $0x18] sm:$0xf]
        %v2183 = vld [vmem:[#allocation22 + $0x1c] sm:$0xf]
        %v2184 = vld [vmem:[#allocation22 + $0x20] sm:$0xf]
        %v2185 = vld [vmem:[#allocation22 + $0x24] sm:$0xf]
        %v2186 = vld [vmem:[#allocation22 + $0x28] sm:$0xf]
        %v2187 = vld [vmem:[#allocation22 + $0x2c] sm:$0xf]
        %v2188 = vld [vmem:[#allocation22 + $0x30] sm:$0xf]
        %v2189 = vld [vmem:[#allocation22 + $0x34] sm:$0xf]
        %v2190 = vld [vmem:[#allocation22 + $0x38] sm:$0xf]
        %v2191 = vld [vmem:[#allocation22 + $0x3c] sm:$0xf]
        %v2192 = vld [vmem:[#allocation26 + $0xb] sm:$0x1]
        %v2193 = vpack.c.bf16 %v2159, %v2157
        %v2194 = vpack.c.bf16 %v2164, %v2162
        %v2195 = vpack.c.bf16 %v2169, %v2167
        %v2196 = vpack.c.bf16 %v2174, %v2172
        %v2197 = vperm.slane %v2192, 0
        %v2214 = vunpack.c.l.b16 %v2176
        %v2215 = vunpack.c.l.b16 %v2177
        %v2216 = vunpack.c.l.b16 %v2178
        %v2217 = vunpack.c.l.b16 %v2179
        %v2218 = vunpack.c.l.b16 %v2180
        %v2219 = vunpack.c.l.b16 %v2181
        %v2220 = vunpack.c.l.b16 %v2182
        %v2221 = vunpack.c.l.b16 %v2183
        %v2222 = vunpack.c.l.b16 %v2184
        %v2223 = vunpack.c.l.b16 %v2185
        %v2224 = vunpack.c.l.b16 %v2186
        %v2225 = vunpack.c.l.b16 %v2187
        %v2226 = vunpack.c.l.b16 %v2188
        %v2227 = vunpack.c.l.b16 %v2189
        %v2228 = vunpack.c.l.b16 %v2190
        %v2229 = vunpack.c.l.b16 %v2191
        %v2230 = vpack.c.b16 %v2215, %v2214
        %v2231 = vpack.c.b16 %v2217, %v2216
        %v2232 = vpack.c.b16 %v2219, %v2218
        %v2233 = vpack.c.b16 %v2221, %v2220
        %v2234 = vpack.c.b16 %v2223, %v2222
        %v2235 = vpack.c.b16 %v2225, %v2224
        %v2236 = vpack.c.b16 %v2227, %v2226
        %v2237 = vpack.c.b16 %v2229, %v2228
        %2246 = vmatpush.bf16.msra.mxu0 %v2237
        %2247 = vmatpush.bf16.msra.mxu0 %v2236
        %2248 = vmatpush.bf16.msra.mxu0 %v2235
        %2249 = vmatpush.bf16.msra.mxu0 %v2234
        %2250 = vmatpush.bf16.msra.mxu0 %v2233
        %2251 = vmatpush.bf16.msra.mxu0 %v2232
        %2252 = vmatpush.bf16.msra.mxu0 %v2231
        %2253 = vmatpush.bf16.msra.mxu0 %v2230
        %2254 = vmatmul.bf16.gmra.mxu0 %v2193
        %v2255 = vpop.f32.mrf.mxu0
        %v2256 = vadd.f32 %v2197, %v2255
        %v2257 = vpop.f32.mrf.mxu0
        %v2258 = vadd.f32 %v2197, %v2257
        %2259 = vmatmul.bf16.gmra.mxu0 %v2194
        %v2260 = vpop.f32.mrf.mxu0
        %v2261 = vadd.f32 %v2197, %v2260
        %v2262 = vpop.f32.mrf.mxu0
        %v2263 = vadd.f32 %v2197, %v2262
        %2264 = vmatmul.bf16.gmra.mxu0 %v2195
        %v2265 = vpop.f32.mrf.mxu0
        %v2266 = vadd.f32 %v2197, %v2265
        %v2267 = vpop.f32.mrf.mxu0
        %v2268 = vadd.f32 %v2197, %v2267
        %2269 = vmatmul.bf16.gmra.mxu0 %v2196
        %v2270 = vpop.f32.mrf.mxu0
        %v2271 = vadd.f32 %v2197, %v2270
        %v2272 = vpop.f32.mrf.mxu0
        %v2273 = vadd.f32 %v2197, %v2272
        %2274 = vdwg.mxu0
        %v2275 = vmax.f32 %v2256, 0.0
        %v2276 = vmax.f32 %v2258, 0.0
        %v2277 = vmax.f32 %v2261, 0.0
        %v2278 = vmax.f32 %v2263, 0.0
        %v2279 = vmax.f32 %v2266, 0.0
        %v2280 = vmax.f32 %v2268, 0.0
        %v2281 = vmax.f32 %v2271, 0.0
        %v2282 = vmax.f32 %v2273, 0.0
        %v2283 = vld [vmem:[#allocation23] sm:$0xf]
        %v2284 = vld [vmem:[#allocation23 + $0x4] sm:$0xf]
        %v2285 = vld [vmem:[#allocation23 + $0x8] sm:$0xf]
        %v2286 = vld [vmem:[#allocation23 + $0xc] sm:$0xf]
        %v2287 = vld [vmem:[#allocation23 + $0x10] sm:$0xf]
        %v2288 = vld [vmem:[#allocation23 + $0x14] sm:$0xf]
        %v2289 = vld [vmem:[#allocation23 + $0x18] sm:$0xf]
        %v2290 = vld [vmem:[#allocation23 + $0x1c] sm:$0xf]
        %v2291 = vld [vmem:[#allocation23 + $0x20] sm:$0xf]
        %v2292 = vld [vmem:[#allocation23 + $0x24] sm:$0xf]
        %v2293 = vld [vmem:[#allocation23 + $0x28] sm:$0xf]
        %v2294 = vld [vmem:[#allocation23 + $0x2c] sm:$0xf]
        %v2295 = vld [vmem:[#allocation23 + $0x30] sm:$0xf]
        %v2296 = vld [vmem:[#allocation23 + $0x34] sm:$0xf]
        %v2297 = vld [vmem:[#allocation23 + $0x38] sm:$0xf]
        %v2298 = vld [vmem:[#allocation23 + $0x3c] sm:$0xf]
        %v2299 = vld [vmem:[#allocation26 + $0xc] sm:$0x1]
        %v2300 = vpack.c.bf16 %v2276, %v2275
        %v2301 = vpack.c.bf16 %v2278, %v2277
        %v2302 = vpack.c.bf16 %v2280, %v2279
        %v2303 = vpack.c.bf16 %v2282, %v2281
        %v2304 = vperm.slane %v2299, 0
        %v2321 = vunpack.c.l.b16 %v2283
        %v2322 = vunpack.c.l.b16 %v2284
        %v2323 = vunpack.c.l.b16 %v2285
        %v2324 = vunpack.c.l.b16 %v2286
        %v2325 = vunpack.c.l.b16 %v2287
        %v2326 = vunpack.c.l.b16 %v2288
        %v2327 = vunpack.c.l.b16 %v2289
        %v2328 = vunpack.c.l.b16 %v2290
        %v2329 = vunpack.c.l.b16 %v2291
        %v2330 = vunpack.c.l.b16 %v2292
        %v2331 = vunpack.c.l.b16 %v2293
        %v2332 = vunpack.c.l.b16 %v2294
        %v2333 = vunpack.c.l.b16 %v2295
        %v2334 = vunpack.c.l.b16 %v2296
        %v2335 = vunpack.c.l.b16 %v2297
        %v2336 = vunpack.c.l.b16 %v2298
        %v2337 = vpack.c.b16 %v2322, %v2321
        %v2338 = vpack.c.b16 %v2324, %v2323
        %v2339 = vpack.c.b16 %v2326, %v2325
        %v2340 = vpack.c.b16 %v2328, %v2327
        %v2341 = vpack.c.b16 %v2330, %v2329
        %v2342 = vpack.c.b16 %v2332, %v2331
        %v2343 = vpack.c.b16 %v2334, %v2333
        %v2344 = vpack.c.b16 %v2336, %v2335
        %2353 = vmatpush.bf16.msra.mxu0 %v2344
        %2354 = vmatpush.bf16.msra.mxu0 %v2343
        %2355 = vmatpush.bf16.msra.mxu0 %v2342
        %2356 = vmatpush.bf16.msra.mxu0 %v2341
        %2357 = vmatpush.bf16.msra.mxu0 %v2340
        %2358 = vmatpush.bf16.msra.mxu0 %v2339
        %2359 = vmatpush.bf16.msra.mxu0 %v2338
        %2360 = vmatpush.bf16.msra.mxu0 %v2337
        %2361 = vmatmul.bf16.gmra.mxu0 %v2300
        %v2362 = vpop.f32.mrf.mxu0
        %v2363 = vadd.f32 %v2304, %v2362
        %v2364 = vpop.f32.mrf.mxu0
        %v2365 = vadd.f32 %v2304, %v2364
        %2366 = vmatmul.bf16.gmra.mxu0 %v2301
        %v2367 = vpop.f32.mrf.mxu0
        %v2368 = vadd.f32 %v2304, %v2367
        %v2369 = vpop.f32.mrf.mxu0
        %v2370 = vadd.f32 %v2304, %v2369
        %2371 = vmatmul.bf16.gmra.mxu0 %v2302
        %v2372 = vpop.f32.mrf.mxu0
        %v2373 = vadd.f32 %v2304, %v2372
        %v2374 = vpop.f32.mrf.mxu0
        %v2375 = vadd.f32 %v2304, %v2374
        %2376 = vmatmul.bf16.gmra.mxu0 %v2303
        %v2377 = vpop.f32.mrf.mxu0
        %v2378 = vadd.f32 %v2304, %v2377
        %v2379 = vpop.f32.mrf.mxu0
        %v2380 = vadd.f32 %v2304, %v2379
        %2381 = vdwg.mxu0
        %v2382 = vadd.f32 %v2157, %v2363
        %v2383 = vadd.f32 %v2159, %v2365
        %v2384 = vadd.f32 %v2162, %v2368
        %v2385 = vadd.f32 %v2164, %v2370
        %v2386 = vadd.f32 %v2167, %v2373
        %v2387 = vadd.f32 %v2169, %v2375
        %v2388 = vadd.f32 %v2172, %v2378
        %v2389 = vadd.f32 %v2174, %v2380
        %v2390 = vmax.f32 %v2382, 0.0
        %v2391 = vmax.f32 %v2383, 0.0
        %v2392 = vmax.f32 %v2384, 0.0
        %v2393 = vmax.f32 %v2385, 0.0
        %v2394 = vmax.f32 %v2386, 0.0
        %v2395 = vmax.f32 %v2387, 0.0
        %v2396 = vmax.f32 %v2388, 0.0
        %v2397 = vmax.f32 %v2389, 0.0
        %v2398 = vld [vmem:[#allocation25] sm:$0xf]
        %v2399 = vld [vmem:[#allocation25 + $0x4] sm:$0xf]
        %v2400 = vld [vmem:[#allocation25 + $0x8] sm:$0xf]
        %v2401 = vld [vmem:[#allocation25 + $0xc] sm:$0xf]
        %v2402 = vld [vmem:[#allocation25 + $0x10] sm:$0xf]
        %v2403 = vld [vmem:[#allocation25 + $0x14] sm:$0xf]
        %v2404 = vld [vmem:[#allocation25 + $0x18] sm:$0xf]
        %v2405 = vld [vmem:[#allocation25 + $0x1c] sm:$0xf]
        %v2406 = vld [vmem:[#allocation25 + $0x20] sm:$0xf]
        %v2407 = vld [vmem:[#allocation25 + $0x24] sm:$0xf]
        %v2408 = vld [vmem:[#allocation25 + $0x28] sm:$0xf]
        %v2409 = vld [vmem:[#allocation25 + $0x2c] sm:$0xf]
        %v2410 = vld [vmem:[#allocation25 + $0x30] sm:$0xf]
        %v2411 = vld [vmem:[#allocation25 + $0x34] sm:$0xf]
        %v2412 = vld [vmem:[#allocation25 + $0x38] sm:$0xf]
        %v2413 = vld [vmem:[#allocation25 + $0x3c] sm:$0xf]
        %v2414 = vld [vmem:[#allocation26 + $0xd] sm:$0x1]
        %v2415 = vpack.c.bf16 %v2391, %v2390
        %v2416 = vpack.c.bf16 %v2393, %v2392
        %v2417 = vpack.c.bf16 %v2395, %v2394
        %v2418 = vpack.c.bf16 %v2397, %v2396
        %v2419 = vperm.slane %v2414, 0
        %v2436 = vunpack.c.l.b16 %v2398
        %v2437 = vunpack.c.l.b16 %v2399
        %v2438 = vunpack.c.l.b16 %v2400
        %v2439 = vunpack.c.l.b16 %v2401
        %v2440 = vunpack.c.l.b16 %v2402
        %v2441 = vunpack.c.l.b16 %v2403
        %v2442 = vunpack.c.l.b16 %v2404
        %v2443 = vunpack.c.l.b16 %v2405
        %v2444 = vunpack.c.l.b16 %v2406
        %v2445 = vunpack.c.l.b16 %v2407
        %v2446 = vunpack.c.l.b16 %v2408
        %v2447 = vunpack.c.l.b16 %v2409
        %v2448 = vunpack.c.l.b16 %v2410
        %v2449 = vunpack.c.l.b16 %v2411
        %v2450 = vunpack.c.l.b16 %v2412
        %v2451 = vunpack.c.l.b16 %v2413
        %v2452 = vpack.c.b16 %v2437, %v2436
        %v2453 = vpack.c.b16 %v2439, %v2438
        %v2454 = vpack.c.b16 %v2441, %v2440
        %v2455 = vpack.c.b16 %v2443, %v2442
        %v2456 = vpack.c.b16 %v2445, %v2444
        %v2457 = vpack.c.b16 %v2447, %v2446
        %v2458 = vpack.c.b16 %v2449, %v2448
        %v2459 = vpack.c.b16 %v2451, %v2450
        %2468 = vmatpush.bf16.msra.mxu0 %v2459
        %2469 = vmatpush.bf16.msra.mxu0 %v2458
        %2470 = vmatpush.bf16.msra.mxu0 %v2457
        %2471 = vmatpush.bf16.msra.mxu0 %v2456
        %2472 = vmatpush.bf16.msra.mxu0 %v2455
        %2473 = vmatpush.bf16.msra.mxu0 %v2454
        %2474 = vmatpush.bf16.msra.mxu0 %v2453
        %2475 = vmatpush.bf16.msra.mxu0 %v2452
        %2476 = vmatmul.bf16.gmra.mxu0 %v2415
        %v2477 = vpop.f32.mrf.mxu0
        %v2478 = vadd.f32 %v2419, %v2477
        %v2479 = vpop.f32.mrf.mxu0
        %v2480 = vadd.f32 %v2419, %v2479
        %2481 = vmatmul.bf16.gmra.mxu0 %v2416
        %v2482 = vpop.f32.mrf.mxu0
        %v2483 = vadd.f32 %v2419, %v2482
        %v2484 = vpop.f32.mrf.mxu0
        %v2485 = vadd.f32 %v2419, %v2484
        %2486 = vmatmul.bf16.gmra.mxu0 %v2417
        %v2487 = vpop.f32.mrf.mxu0
        %v2488 = vadd.f32 %v2419, %v2487
        %v2489 = vpop.f32.mrf.mxu0
        %v2490 = vadd.f32 %v2419, %v2489
        %2491 = vmatmul.bf16.gmra.mxu0 %v2418
        %v2492 = vpop.f32.mrf.mxu0
        %v2493 = vadd.f32 %v2419, %v2492
        %v2494 = vpop.f32.mrf.mxu0
        %v2495 = vadd.f32 %v2419, %v2494
        %2496 = vdwg.mxu0
        %2497 = vmax.xlane.f32.xlu0 %v2478
        %v2498 = vpop.xlane.xlu0 %2497
        %2499 = vmax.xlane.f32.xlu0 %v2480
        %v2500 = vpop.xlane.xlu0 %2499
        %2501 = vmax.xlane.f32.xlu0 %v2483
        %v2502 = vpop.xlane.xlu0 %2501
        %2503 = vmax.xlane.f32.xlu0 %v2485
        %v2504 = vpop.xlane.xlu0 %2503
        %2505 = vmax.xlane.f32.xlu0 %v2488
        %v2506 = vpop.xlane.xlu0 %2505
        %2507 = vmax.xlane.f32.xlu0 %v2490
        %v2508 = vpop.xlane.xlu0 %2507
        %2509 = vmax.xlane.f32.xlu0 %v2493
        %v2510 = vpop.xlane.xlu0 %2509
        %2511 = vmax.xlane.f32.xlu0 %v2495
        %v2512 = vpop.xlane.xlu0 %2511
        %v2513 = vsub.f32 %v2478, %v2498
        %v2514 = vsub.f32 %v2480, %v2500
        %v2515 = vsub.f32 %v2483, %v2502
        %v2516 = vsub.f32 %v2485, %v2504
        %v2517 = vsub.f32 %v2488, %v2506
        %v2518 = vsub.f32 %v2490, %v2508
        %v2519 = vsub.f32 %v2493, %v2510
        %v2520 = vsub.f32 %v2495, %v2512
        %v2521 = vmul.f32 %v2513, 1.442695
        %v2522 = vpow.pop %v2521
        %v2523 = vmul.f32 %v2514, 1.442695
        %v2524 = vpow.pop %v2523
        %v2525 = vmul.f32 %v2515, 1.442695
        %v2526 = vpow.pop %v2525
        %v2527 = vmul.f32 %v2516, 1.442695
        %v2528 = vpow.pop %v2527
        %v2529 = vmul.f32 %v2517, 1.442695
        %v2530 = vpow.pop %v2529
        %v2531 = vmul.f32 %v2518, 1.442695
        %v2532 = vpow.pop %v2531
        %v2533 = vmul.f32 %v2519, 1.442695
        %v2534 = vpow.pop %v2533
        %v2535 = vmul.f32 %v2520, 1.442695
        %v2536 = vpow.pop %v2535
        %2537 = vadd.xlane.f32.xlu0 %v2522
        %v2538 = vpop.xlane.xlu0 %2537
        %2539 = vadd.xlane.f32.xlu0 %v2524
        %v2540 = vpop.xlane.xlu0 %2539
        %2541 = vadd.xlane.f32.xlu0 %v2526
        %v2542 = vpop.xlane.xlu0 %2541
        %2543 = vadd.xlane.f32.xlu0 %v2528
        %v2544 = vpop.xlane.xlu0 %2543
        %2545 = vadd.xlane.f32.xlu0 %v2530
        %v2546 = vpop.xlane.xlu0 %2545
        %2547 = vadd.xlane.f32.xlu0 %v2532
        %v2548 = vpop.xlane.xlu0 %2547
        %2549 = vadd.xlane.f32.xlu0 %v2534
        %v2550 = vpop.xlane.xlu0 %2549
        %2551 = vadd.xlane.f32.xlu0 %v2536
        %v2552 = vpop.xlane.xlu0 %2551
        %v2553 = vrcp.pop %v2538
        %v2554 = vmul.f32 %v2538, %v2553
        %v2555 = vsub.f32 1.0, %v2554
        %v2556 = vmul.f32 %v2553, %v2555
        %v2557 = vadd.f32 %v2553, %v2556
        %vm2558 = vweird.f32 %v2538
        %vm2559 = vweird.f32 %v2553
        %vm2560 = vmor %vm2558, %vm2559
        %v2561 = vsel %vm2560, %v2553, %v2557
        %v2562 = vand.u32 2147483647, %v2538
        %vm2563 = vcmp.eq.f32.partialorder %v2562, 8.507059e+37
        %v2564 = vand.u32 %v2538, 2147483648
        %v2565 = vor.u32 1.1754944e-38, %v2564
        %v2566 = vsel %vm2563, %v2565, %v2561
        %v2567 = vmul.f32 %v2522, %v2566
        %v2568 = vrcp.pop %v2540
        %v2569 = vmul.f32 %v2540, %v2568
        %v2570 = vsub.f32 1.0, %v2569
        %v2571 = vmul.f32 %v2568, %v2570
        %v2572 = vadd.f32 %v2568, %v2571
        %vm2573 = vweird.f32 %v2540
        %vm2574 = vweird.f32 %v2568
        %vm2575 = vmor %vm2573, %vm2574
        %v2576 = vsel %vm2575, %v2568, %v2572
        %v2577 = vand.u32 2147483647, %v2540
        %vm2578 = vcmp.eq.f32.partialorder %v2577, 8.507059e+37
        %v2579 = vand.u32 %v2540, 2147483648
        %v2580 = vor.u32 1.1754944e-38, %v2579
        %v2581 = vsel %vm2578, %v2580, %v2576
        %v2582 = vmul.f32 %v2524, %v2581
        %v2583 = vrcp.pop %v2542
        %v2584 = vmul.f32 %v2542, %v2583
        %v2585 = vsub.f32 1.0, %v2584
        %v2586 = vmul.f32 %v2583, %v2585
        %v2587 = vadd.f32 %v2583, %v2586
        %vm2588 = vweird.f32 %v2542
        %vm2589 = vweird.f32 %v2583
        %vm2590 = vmor %vm2588, %vm2589
        %v2591 = vsel %vm2590, %v2583, %v2587
        %v2592 = vand.u32 2147483647, %v2542
        %vm2593 = vcmp.eq.f32.partialorder %v2592, 8.507059e+37
        %v2594 = vand.u32 %v2542, 2147483648
        %v2595 = vor.u32 1.1754944e-38, %v2594
        %v2596 = vsel %vm2593, %v2595, %v2591
        %v2597 = vmul.f32 %v2526, %v2596
        %v2598 = vrcp.pop %v2544
        %v2599 = vmul.f32 %v2544, %v2598
        %v2600 = vsub.f32 1.0, %v2599
        %v2601 = vmul.f32 %v2598, %v2600
        %v2602 = vadd.f32 %v2598, %v2601
        %vm2603 = vweird.f32 %v2544
        %vm2604 = vweird.f32 %v2598
        %vm2605 = vmor %vm2603, %vm2604
        %v2606 = vsel %vm2605, %v2598, %v2602
        %v2607 = vand.u32 2147483647, %v2544
        %vm2608 = vcmp.eq.f32.partialorder %v2607, 8.507059e+37
        %v2609 = vand.u32 %v2544, 2147483648
        %v2610 = vor.u32 1.1754944e-38, %v2609
        %v2611 = vsel %vm2608, %v2610, %v2606
        %v2612 = vmul.f32 %v2528, %v2611
        %v2613 = vrcp.pop %v2546
        %v2614 = vmul.f32 %v2546, %v2613
        %v2615 = vsub.f32 1.0, %v2614
        %v2616 = vmul.f32 %v2613, %v2615
        %v2617 = vadd.f32 %v2613, %v2616
        %vm2618 = vweird.f32 %v2546
        %vm2619 = vweird.f32 %v2613
        %vm2620 = vmor %vm2618, %vm2619
        %v2621 = vsel %vm2620, %v2613, %v2617
        %v2622 = vand.u32 2147483647, %v2546
        %vm2623 = vcmp.eq.f32.partialorder %v2622, 8.507059e+37
        %v2624 = vand.u32 %v2546, 2147483648
        %v2625 = vor.u32 1.1754944e-38, %v2624
        %v2626 = vsel %vm2623, %v2625, %v2621
        %v2627 = vmul.f32 %v2530, %v2626
        %v2628 = vrcp.pop %v2548
        %v2629 = vmul.f32 %v2548, %v2628
        %v2630 = vsub.f32 1.0, %v2629
        %v2631 = vmul.f32 %v2628, %v2630
        %v2632 = vadd.f32 %v2628, %v2631
        %vm2633 = vweird.f32 %v2548
        %vm2634 = vweird.f32 %v2628
        %vm2635 = vmor %vm2633, %vm2634
        %v2636 = vsel %vm2635, %v2628, %v2632
        %v2637 = vand.u32 2147483647, %v2548
        %vm2638 = vcmp.eq.f32.partialorder %v2637, 8.507059e+37
        %v2639 = vand.u32 %v2548, 2147483648
        %v2640 = vor.u32 1.1754944e-38, %v2639
        %v2641 = vsel %vm2638, %v2640, %v2636
        %v2642 = vmul.f32 %v2532, %v2641
        %v2643 = vrcp.pop %v2550
        %v2644 = vmul.f32 %v2550, %v2643
        %v2645 = vsub.f32 1.0, %v2644
        %v2646 = vmul.f32 %v2643, %v2645
        %v2647 = vadd.f32 %v2643, %v2646
        %vm2648 = vweird.f32 %v2550
        %vm2649 = vweird.f32 %v2643
        %vm2650 = vmor %vm2648, %vm2649
        %v2651 = vsel %vm2650, %v2643, %v2647
        %v2652 = vand.u32 2147483647, %v2550
        %vm2653 = vcmp.eq.f32.partialorder %v2652, 8.507059e+37
        %v2654 = vand.u32 %v2550, 2147483648
        %v2655 = vor.u32 1.1754944e-38, %v2654
        %v2656 = vsel %vm2653, %v2655, %v2651
        %v2657 = vmul.f32 %v2534, %v2656
        %v2658 = vrcp.pop %v2552
        %v2659 = vmul.f32 %v2552, %v2658
        %v2660 = vsub.f32 1.0, %v2659
        %v2661 = vmul.f32 %v2658, %v2660
        %v2662 = vadd.f32 %v2658, %v2661
        %vm2663 = vweird.f32 %v2552
        %vm2664 = vweird.f32 %v2658
        %vm2665 = vmor %vm2663, %vm2664
        %v2666 = vsel %vm2665, %v2658, %v2662
        %v2667 = vand.u32 2147483647, %v2552
        %vm2668 = vcmp.eq.f32.partialorder %v2667, 8.507059e+37
        %v2669 = vand.u32 %v2552, 2147483648
        %v2670 = vor.u32 1.1754944e-38, %v2669
        %v2671 = vsel %vm2668, %v2670, %v2666
        %v2672 = vmul.f32 %v2536, %v2671
        %2673 = vst [vmem:[%s820] sm:$0xff] %v1650
        %2674 = vst [vmem:[%s820 + $0x8] sm:$0xff] %v1665
        %2675 = vst [vmem:[%s820 + $0x10] sm:$0xff] %v1680
        %2676 = vst [vmem:[%s820 + $0x18] sm:$0xff] %v1695
        %2677 = vst [vmem:[%s820 + $0x20] sm:$0xff] %v1710
        %2678 = vst [vmem:[%s820 + $0x28] sm:$0xff] %v1725
        %2679 = vst [vmem:[%s820 + $0x30] sm:$0xff] %v1740
        %2680 = vst [vmem:[%s820 + $0x38] sm:$0xff] %v1755
        %2681 = vst [vmem:[%s827] sm:$0xff] %v2567
        %2682 = vst [vmem:[%s827 + $0x8] sm:$0xff] %v2582
        %2683 = vst [vmem:[%s827 + $0x10] sm:$0xff] %v2597
        %2684 = vst [vmem:[%s827 + $0x18] sm:$0xff] %v2612
        %2685 = vst [vmem:[%s827 + $0x20] sm:$0xff] %v2627
        %2686 = vst [vmem:[%s827 + $0x28] sm:$0xff] %v2642
        %2687 = vst [vmem:[%s827 + $0x30] sm:$0xff] %v2657
        %2688 = vst [vmem:[%s827 + $0x38] sm:$0xff] %v2672
        %s2689 = sand.u32 %s395, 1
        %s2690 = scalar_lea.sflag [#allocation4], %s2689
        %s2691 = sand.u32 %s395, 1
        %s2692 = smul.addr %s2691, 64
        %s2693 = scalar_lea.vmem [#allocation28], %s2692
        %s2694 = sand.u32 %s421, 1
        %s2695 = scalar_lea.sflag [#allocation30], %s2694
        %s2696 = sand.u32 %s421, 1
        %s2697 = smul.addr %s2696, 64
        %s2698 = scalar_lea.vmem [#allocation29], %s2697
        // Predicated region
        $region149: #{tpu_custom_call.1} parent=83 // pred_check
          %p2699 = pneg %p405
        $region150: #{tpu_custom_call.1} parent=83 // pred_check_branch
          %2701 = sbr.rel (%p2699) target = $region152
        $region151: #{tpu_custom_call.1} parent=83 // pred_region
          %s2702 = smul.u32 8, %s46
          %2704 = vsyncadd %s2690, 0
          %s2705 = smul.addr %s2702, 8
          %s2706 = scalar_lea.hbm %s16, %s2705
          %s2707 = sshll.u32 %s2693, 4
          %s2708 = int_to_ptr.vmem [resolvable:$true] %s2707
          %s2709 = sshll.u32 %s2706, 4
          %s2710 = int_to_ptr.hbm [resolvable:$true] %s2709
          %2715 = dma.vmem_to_hbm [thread:$0]  %s2708, 1024, %s2710, %s2690, 128, 128, 8
        $region152: #{tpu_custom_call.1} parent=83 // pred_fallthru
          _
        // Predicated region
        $region153: #{tpu_custom_call.1} parent=83 // pred_check
          %p2716 = pneg %p431
        $region154: #{tpu_custom_call.1} parent=83 // pred_check_branch
          %2718 = sbr.rel (%p2716) target = $region156
        $region155: #{tpu_custom_call.1} parent=83 // pred_region
          %s2719 = smul.u32 8, %s46
          %2721 = vsyncadd %s2695, 0
          %s2722 = smul.addr %s2719, 8
          %s2723 = scalar_lea.hbm %s17, %s2722
          %s2724 = sshll.u32 %s2698, 4
          %s2725 = int_to_ptr.vmem [resolvable:$true] %s2724
          %s2726 = sshll.u32 %s2723, 4
          %s2727 = int_to_ptr.hbm [resolvable:$true] %s2726
          %2732 = dma.vmem_to_hbm [thread:$0]  %s2725, 1024, %s2727, %s2695, 128, 128, 8
        $region156: #{tpu_custom_call.1} parent=83 // pred_fallthru
          _
      $region84: #{tpu_custom_call.1} parent=5 // pred_fallthru
        _
      %p2733 = scmp.le.s32.totalorder 2, %s41
      // Predicated region
      $region157: #{tpu_custom_call.1} parent=5 // pred_check
        %p2734 = pneg %p2733
      $region158: #{tpu_custom_call.1} parent=5 // pred_check_branch
        %2736 = sbr.rel (%p2734) target = $region160
      $region159: #{tpu_custom_call.1} parent=5 // pred_region
        %s2737 = ssub.s32 %s41, 2
        // Predicated region
        $region161: #{tpu_custom_call.1} parent=159 // pred_check
          %p2738 = pneg %p411
        $region162: #{tpu_custom_call.1} parent=159 // pred_check_branch
          %2740 = sbr.rel (%p2738) target = $region164
        $region163: #{tpu_custom_call.1} parent=159 // pred_region
          %s2741 = sand.u32 %s396, 1
          %s2742 = scalar_lea.sflag [#allocation4], %s2741
          %s2743 = sand.u32 %s396, 1
          %s2744 = smul.addr %s2743, 64
          %s2745 = scalar_lea.vmem [#allocation28], %s2744
          %2747 = dma.done %s2742, 1024
        $region164: #{tpu_custom_call.1} parent=159 // pred_fallthru
          _
        // Predicated region
        $region165: #{tpu_custom_call.1} parent=159 // pred_check
          %p2748 = pneg %p437
        $region166: #{tpu_custom_call.1} parent=159 // pred_check_branch
          %2750 = sbr.rel (%p2748) target = $region168
        $region167: #{tpu_custom_call.1} parent=159 // pred_region
          %s2751 = sand.u32 %s422, 1
          %s2752 = scalar_lea.sflag [#allocation30], %s2751
          %s2753 = sand.u32 %s422, 1
          %s2754 = smul.addr %s2753, 64
          %s2755 = scalar_lea.vmem [#allocation29], %s2754
          %2757 = dma.done %s2752, 1024
        $region168: #{tpu_custom_call.1} parent=159 // pred_fallthru
          _
      $region160: #{tpu_custom_call.1} parent=5 // pred_fallthru
        _
    $region6: #{tpu_custom_call.1} parent=1 // loop_footer
      %s45 = sadd.s32 1, %s41
    $region7: #{tpu_custom_call.1} parent=1 // loop_footer_branch
      %40 = sbr.rel target = $region3
    $region8: #{tpu_custom_call.1} parent=1 // loop_exit
      _
    %2758 = vsyncpa [#allocation3], 1
    %s2759 = scalar_lea.sflag [#allocation3], 1
    %2760 = vsyncpa %s2759, 1
    %2761 = vsyncpa [#allocation6], 1
    %2762 = vsyncpa [#allocation9], 1
    %2763 = vsyncpa [#allocation12], 1
    %2764 = vsyncpa [#allocation15], 1
    %2765 = vsyncpa [#allocation18], 1
    %2766 = vsyncpa [#allocation21], 1
    %2767 = vsyncpa [#allocation24], 1
    %2768 = vsyncpa [#allocation27], 1
    %2769 = vsyncpa [#allocation4], 1
    %s2770 = scalar_lea.sflag [#allocation4], 1
    %2771 = vsyncpa %s2770, 1
    %2772 = vsyncpa [#allocation30], 1
    %s2773 = scalar_lea.sflag [#allocation30], 1
    %2774 = vsyncpa %s2773, 1

// kernel: tpu_custom_call.1
$region0: #{tpu_custom_call.1}
  #allocation0 [shape = 'u32[]', space=smem, size = 0x4, offset = 0x4, fixed_abs, tag = 'smem constant byte address 0x4 - core index']
  #allocation1 [shape = 'u32[72,128]{1,0:T(1,128)}', space=vmem, size = 0x9000, scoped, tag = 'internal scratch']
  %s0 = inlined_call_operand.hbm [shape: f32[256,128], index: 0, kind: input, shape index: {}]
  %s1 = inlined_call_operand.hbm [shape: bf16[128,128], index: 1, kind: input, shape index: {}]
  %s2 = inlined_call_operand.hbm [shape: bf16[128,128], index: 2, kind: input, shape index: {}]
  %s3 = inlined_call_operand.hbm [shape: bf16[128,128], index: 3, kind: input, shape index: {}]
  %s4 = inlined_call_operand.hbm [shape: bf16[128,128], index: 4, kind: input, shape index: {}]
  %s5 = inlined_call_operand.hbm [shape: bf16[128,128], index: 5, kind: input, shape index: {}]
  %s6 = inlined_call_operand.hbm [shape: bf16[128,128], index: 6, kind: input, shape index: {}]
  %s7 = inlined_call_operand.hbm [shape: bf16[128,128], index: 7, kind: input, shape index: {}]
  %s8 = inlined_call_operand.hbm [shape: bf16[128,128], index: 8, kind: input, shape index: {}]
  %s9 = inlined_call_operand.hbm [shape: bf16[128,128], index: 9, kind: input, shape index: {}]
  %s10 = inlined_call_operand.hbm [shape: bf16[128,128], index: 10, kind: input, shape index: {}]
  %s11 = inlined_call_operand.hbm [shape: bf16[128,128], index: 11, kind: input, shape index: {}]
  %s12 = inlined_call_operand.hbm [shape: bf16[128,128], index: 12, kind: input, shape index: {}]
  %s13 = inlined_call_operand.hbm [shape: bf16[128,128], index: 13, kind: input, shape index: {}]
  %s14 = inlined_call_operand.hbm [shape: bf16[128,128], index: 14, kind: input, shape index: {}]
  %s15 = inlined_call_operand.hbm [shape: f32[14,128], index: 15, kind: input, shape index: {}]
  %s16 = inlined_call_operand.hbm [shape: f32[256,128], index: 16, kind: output, shape index: {0}]
  %s17 = inlined_call_operand.hbm [shape: f32[256,128], index: 17, kind: output, shape index: {1}]
  %18 = xla_tuple %s16, %s17
  %s19 = sld [smem:[#allocation0]]
  $region169: #{tpu_custom_call.1} parent=0
    _
  %s21 = ssub.s32 1, %s19
  %s22 = scalar_select 0, %s21, %s19
  $region1: #{tpu_custom_call.1} parent=0
    #allocation2 [shape = 'u8[65536]{0}', space=vmem, size = 0x10000, scoped, tag = 'input window, operand 0']
    #allocation3 [shape = 's32[2]{0}', space=sflag, size = 0x8, scoped, tag = 'scoped memory for tpu_custom_call.1']
    #allocation4 [shape = 's32[2]{0}', space=sflag, size = 0x8, scoped, tag = 'scoped memory for tpu_custom_call.1']
    #allocation5 [shape = 'u8[32768]{0}', space=vmem, size = 0x8000, scoped, tag = 'input window, operand 1, single buffered']
    #allocation6 [shape = 's32[1]{0}', space=sflag, size = 0x4, scoped, tag = 'scoped memory for tpu_custom_call.1']
    #allocation7 [shape = 'u8[32768]{0}', space=vmem, size = 0x8000, scoped, tag = 'input window, operand 2, single buffered']
    #allocation8 [shape = 'u8[32768]{0}', space=vmem, size = 0x8000, scoped, tag = 'input window, operand 3, single buffered']
    #allocation9 [shape = 's32[1]{0}', space=sflag, size = 0x4, scoped, tag = 'scoped memory for tpu_custom_call.1']
    #allocation10 [shape = 'u8[32768]{0}', space=vmem, size = 0x8000, scoped, tag = 'input window, operand 4, single buffered']
    #allocation11 [shape = 'u8[32768]{0}', space=vmem, size = 0x8000, scoped, tag = 'input window, operand 5, single buffered']
    #allocation12 [shape = 's32[1]{0}', space=sflag, size = 0x4, scoped, tag = 'scoped memory for tpu_custom_call.1']
    #allocation13 [shape = 'u8[32768]{0}', space=vmem, size = 0x8000, scoped, tag = 'input window, operand 6, single buffered']
    #allocation14 [shape = 'u8[32768]{0}', space=vmem, size = 0x8000, scoped, tag = 'input window, operand 7, single buffered']
    #allocation15 [shape = 's32[1]{0}', space=sflag, size = 0x4, scoped, tag = 'scoped memory for tpu_custom_call.1']
    #allocation16 [shape = 'u8[32768]{0}', space=vmem, size = 0x8000, scoped, tag = 'input window, operand 8, single buffered']
    #allocation17 [shape = 'u8[32768]{0}', space=vmem, size = 0x8000, scoped, tag = 'input window, operand 9, single buffered']
    #allocation18 [shape = 's32[1]{0}', space=sflag, size = 0x4, scoped, tag = 'scoped memory for tpu_custom_call.1']
    #allocation19 [shape = 'u8[32768]{0}', space=vmem, size = 0x8000, scoped, tag = 'input window, operand 10, single buffered']
    #allocation20 [shape = 'u8[32768]{0}', space=vmem, size = 0x8000, scoped, tag = 'input window, operand 11, single buffered']
    #allocation21 [shape = 's32[1]{0}', space=sflag, size = 0x4, scoped, tag = 'scoped memory for tpu_custom_call.1']
    #allocation22 [shape = 'u8[32768]{0}', space=vmem, size = 0x8000, scoped, tag = 'input window, operand 12, single buffered']
    #allocation23 [shape = 'u8[32768]{0}', space=vmem, size = 0x8000, scoped, tag = 'input window, operand 13, single buffered']
    #allocation24 [shape = 's32[1]{0}', space=sflag, size = 0x4, scoped, tag = 'scoped memory for tpu_custom_call.1']
    #allocation25 [shape = 'u8[32768]{0}', space=vmem, size = 0x8000, scoped, tag = 'input window, operand 14, single buffered']
    #allocation26 [shape = 'u8[8192]{0}', space=vmem, size = 0x2000, scoped, tag = 'input window, operand 15, single buffered']
    #allocation27 [shape = 's32[1]{0}', space=sflag, size = 0x4, scoped, tag = 'scoped memory for tpu_custom_call.1']
    #allocation28 [shape = 'u8[65536]{0}', space=vmem, size = 0x10000, scoped, tag = 'output window, operand 0']
    #allocation29 [shape = 'u8[65536]{0}', space=vmem, size = 0x10000, scoped, tag = 'output window, operand 1']
    #allocation30 [shape = 's32[2]{0}', space=sflag, size = 0x8, scoped, tag = 'scoped memory for tpu_custom_call.1']
    %23 = vsyncpa [#allocation3], 0
    %s24 = scalar_lea.sflag [#allocation3], 1
    %25 = vsyncpa %s24, 0
    %26 = vsyncpa [#allocation6], 0
    %27 = vsyncpa [#allocation9], 0
    %28 = vsyncpa [#allocation12], 0
    %29 = vsyncpa [#allocation15], 0
    %30 = vsyncpa [#allocation18], 0
    %31 = vsyncpa [#allocation21], 0
    %32 = vsyncpa [#allocation24], 0
    %33 = vsyncpa [#allocation27], 0
    %34 = vsyncpa [#allocation4], 0
    %s35 = scalar_lea.sflag [#allocation4], 1
    %36 = vsyncpa %s35, 0
    %37 = vsyncpa [#allocation30], 0
    %s38 = scalar_lea.sflag [#allocation30], 1
    %39 = vsyncpa %s38, 0
    loop: start=0, step=1, limit=6
    $region2: #{tpu_custom_call.1} parent=1 // loop_pre_header
      _
    $region3: #{tpu_custom_call.1} parent=1 // loop_header
      %s41 = sphi 0, %s45
      %p42 = scmp.ge.s32.totalorder %s41, 6
      %s51 = sphi 0, %s53
      %s54 = sphi 0, %s51
      %s55 = sphi 0, %s54
      %s71 = sphi 0, %s55
      %s75 = sphi 0, %s75
      %s77 = sphi 0, %s75
      %s78 = sphi 0, %s77
      %s92 = sphi 0, %s78
      %s96 = sphi 0, %s96
      %s98 = sphi 0, %s96
      %s99 = sphi 0, %s98
      %s113 = sphi 0, %s99
      %s117 = sphi 0, %s117
      %s119 = sphi 0, %s117
      %s120 = sphi 0, %s119
      %s134 = sphi 0, %s120
      %s138 = sphi 0, %s138
      %s140 = sphi 0, %s138
      %s141 = sphi 0, %s140
      %s155 = sphi 0, %s141
      %s159 = sphi 0, %s159
      %s161 = sphi 0, %s159
      %s162 = sphi 0, %s161
      %s176 = sphi 0, %s162
      %s180 = sphi 0, %s180
      %s182 = sphi 0, %s180
      %s183 = sphi 0, %s182
      %s197 = sphi 0, %s183
      %s201 = sphi 0, %s201
      %s203 = sphi 0, %s201
      %s204 = sphi 0, %s203
      %s218 = sphi 0, %s204
      %s222 = sphi 0, %s222
      %s224 = sphi 0, %s222
      %s225 = sphi 0, %s224
      %s239 = sphi 0, %s225
      %s243 = sphi 0, %s243
      %s245 = sphi 0, %s243
      %s246 = sphi 0, %s245
      %s260 = sphi 0, %s246
      %s264 = sphi 0, %s264
      %s266 = sphi 0, %s264
      %s267 = sphi 0, %s266
      %s281 = sphi 0, %s267
      %s285 = sphi 0, %s285
      %s287 = sphi 0, %s285
      %s288 = sphi 0, %s287
      %s302 = sphi 0, %s288
      %s306 = sphi 0, %s306
      %s308 = sphi 0, %s306
      %s309 = sphi 0, %s308
      %s323 = sphi 0, %s309
      %s327 = sphi 0, %s327
      %s329 = sphi 0, %s327
      %s330 = sphi 0, %s329
      %s344 = sphi 0, %s330
      %s348 = sphi 0, %s348
      %s350 = sphi 0, %s348
      %s351 = sphi 0, %s350
      %s365 = sphi 0, %s351
      %s369 = sphi 0, %s369
      %s371 = sphi 0, %s369
      %s372 = sphi 0, %s371
      %s386 = sphi 0, %s372
      %s392 = sphi 0, %s394
      %s395 = sphi 0, %s392
      %s396 = sphi 0, %s395
      %s412 = sphi 0, %s396
      %s418 = sphi 0, %s420
      %s421 = sphi 0, %s418
      %s422 = sphi 0, %s421
      %s438 = sphi 0, %s422
    $region4: #{tpu_custom_call.1} parent=1 // loop_header_branch
      %44 = sbr.rel (%p42) target = $region8
    $region5: #{tpu_custom_call.1} parent=1 // loop_body
      %s46 = ssub.s32 %s41, 1
      %s47 = ssub.s32 %s41, 2
      %s48 = sadd.s32 %s41, 1
      %s49 = ssub.s32 %s41, %s48
      %p50 = scmp.eq.s32.totalorder %s49, 0
      %s52 = sadd.s32 %s51, 1
      %s53 = scalar_select %p50, %s51, %s52
      %p56 = pneg %p50
      %p57 = scmp.eq.s32.totalorder %s41, 3
      %p58 = por %p56, %p57
      %p59 = scmp.ne.s32.totalorder %s51, %s54
      %p60 = scmp.eq.s32.totalorder %s41, 0
      %p61 = por %p59, %p60
      %p62 = scmp.ne.s32.totalorder %s51, %s54
      %p63 = scmp.eq.s32.totalorder %s46, 3
      %p64 = por %p62, %p63
      %p65 = scmp.ne.s32.totalorder %s54, %s55
      %p66 = scmp.eq.s32.totalorder %s46, 0
      %p67 = por %p65, %p66
      %p68 = scmp.ne.s32.totalorder %s54, %s55
      %p69 = scmp.eq.s32.totalorder %s47, 3
      %p70 = por %p68, %p69
      %p72 = scmp.ne.s32.totalorder %s55, %s71
      %p73 = scmp.eq.s32.totalorder %s47, 0
      %p74 = por %p72, %p73
      %s76 = sadd.s32 %s75, 1
      %p79 = scmp.eq.s32.totalorder %s41, 3
      %p80 = scmp.ne.s32.totalorder %s75, %s77
      %p81 = scmp.eq.s32.totalorder %s41, 0
      %p82 = por %p80, %p81
      %p83 = scmp.ne.s32.totalorder %s75, %s77
      %p84 = scmp.eq.s32.totalorder %s46, 3
      %p85 = por %p83, %p84
      %p86 = scmp.ne.s32.totalorder %s77, %s78
      %p87 = scmp.eq.s32.totalorder %s46, 0
      %p88 = por %p86, %p87
      %p89 = scmp.ne.s32.totalorder %s77, %s78
      %p90 = scmp.eq.s32.totalorder %s47, 3
      %p91 = por %p89, %p90
      %p93 = scmp.ne.s32.totalorder %s78, %s92
      %p94 = scmp.eq.s32.totalorder %s47, 0
      %p95 = por %p93, %p94
      %s97 = sadd.s32 %s96, 1
      %p100 = scmp.eq.s32.totalorder %s41, 3
      %p101 = scmp.ne.s32.totalorder %s96, %s98
      %p102 = scmp.eq.s32.totalorder %s41, 0
      %p103 = por %p101, %p102
      %p104 = scmp.ne.s32.totalorder %s96, %s98
      %p105 = scmp.eq.s32.totalorder %s46, 3
      %p106 = por %p104, %p105
      %p107 = scmp.ne.s32.totalorder %s98, %s99
      %p108 = scmp.eq.s32.totalorder %s46, 0
      %p109 = por %p107, %p108
      %p110 = scmp.ne.s32.totalorder %s98, %s99
      %p111 = scmp.eq.s32.totalorder %s47, 3
      %p112 = por %p110, %p111
      %p114 = scmp.ne.s32.totalorder %s99, %s113
      %p115 = scmp.eq.s32.totalorder %s47, 0
      %p116 = por %p114, %p115
      %s118 = sadd.s32 %s117, 1
      %p121 = scmp.eq.s32.totalorder %s41, 3
      %p122 = scmp.ne.s32.totalorder %s117, %s119
      %p123 = scmp.eq.s32.totalorder %s41, 0
      %p124 = por %p122, %p123
      %p125 = scmp.ne.s32.totalorder %s117, %s119
      %p126 = scmp.eq.s32.totalorder %s46, 3
      %p127 = por %p125, %p126
      %p128 = scmp.ne.s32.totalorder %s119, %s120
      %p129 = scmp.eq.s32.totalorder %s46, 0
      %p130 = por %p128, %p129
      %p131 = scmp.ne.s32.totalorder %s119, %s120
      %p132 = scmp.eq.s32.totalorder %s47, 3
      %p133 = por %p131, %p132
      %p135 = scmp.ne.s32.totalorder %s120, %s134
      %p136 = scmp.eq.s32.totalorder %s47, 0
      %p137 = por %p135, %p136
      %s139 = sadd.s32 %s138, 1
      %p142 = scmp.eq.s32.totalorder %s41, 3
      %p143 = scmp.ne.s32.totalorder %s138, %s140
      %p144 = scmp.eq.s32.totalorder %s41, 0
      %p145 = por %p143, %p144
      %p146 = scmp.ne.s32.totalorder %s138, %s140
      %p147 = scmp.eq.s32.totalorder %s46, 3
      %p148 = por %p146, %p147
      %p149 = scmp.ne.s32.totalorder %s140, %s141
      %p150 = scmp.eq.s32.totalorder %s46, 0
      %p151 = por %p149, %p150
      %p152 = scmp.ne.s32.totalorder %s140, %s141
      %p153 = scmp.eq.s32.totalorder %s47, 3
      %p154 = por %p152, %p153
      %p156 = scmp.ne.s32.totalorder %s141, %s155
      %p157 = scmp.eq.s32.totalorder %s47, 0
      %p158 = por %p156, %p157
      %s160 = sadd.s32 %s159, 1
      %p163 = scmp.eq.s32.totalorder %s41, 3
      %p164 = scmp.ne.s32.totalorder %s159, %s161
      %p165 = scmp.eq.s32.totalorder %s41, 0
      %p166 = por %p164, %p165
      %p167 = scmp.ne.s32.totalorder %s159, %s161
      %p168 = scmp.eq.s32.totalorder %s46, 3
      %p169 = por %p167, %p168
      %p170 = scmp.ne.s32.totalorder %s161, %s162
      %p171 = scmp.eq.s32.totalorder %s46, 0
      %p172 = por %p170, %p171
      %p173 = scmp.ne.s32.totalorder %s161, %s162
      %p174 = scmp.eq.s32.totalorder %s47, 3
      %p175 = por %p173, %p174
      %p177 = scmp.ne.s32.totalorder %s162, %s176
      %p178 = scmp.eq.s32.totalorder %s47, 0
      %p179 = por %p177, %p178
      %s181 = sadd.s32 %s180, 1
      %p184 = scmp.eq.s32.totalorder %s41, 3
      %p185 = scmp.ne.s32.totalorder %s180, %s182
      %p186 = scmp.eq.s32.totalorder %s41, 0
      %p187 = por %p185, %p186
      %p188 = scmp.ne.s32.totalorder %s180, %s182
      %p189 = scmp.eq.s32.totalorder %s46, 3
      %p190 = por %p188, %p189
      %p191 = scmp.ne.s32.totalorder %s182, %s183
      %p192 = scmp.eq.s32.totalorder %s46, 0
      %p193 = por %p191, %p192
      %p194 = scmp.ne.s32.totalorder %s182, %s183
      %p195 = scmp.eq.s32.totalorder %s47, 3
      %p196 = por %p194, %p195
      %p198 = scmp.ne.s32.totalorder %s183, %s197
      %p199 = scmp.eq.s32.totalorder %s47, 0
      %p200 = por %p198, %p199
      %s202 = sadd.s32 %s201, 1
      %p205 = scmp.eq.s32.totalorder %s41, 3
      %p206 = scmp.ne.s32.totalorder %s201, %s203
      %p207 = scmp.eq.s32.totalorder %s41, 0
      %p208 = por %p206, %p207
      %p209 = scmp.ne.s32.totalorder %s201, %s203
      %p210 = scmp.eq.s32.totalorder %s46, 3
      %p211 = por %p209, %p210
      %p212 = scmp.ne.s32.totalorder %s203, %s204
      %p213 = scmp.eq.s32.totalorder %s46, 0
      %p214 = por %p212, %p213
      %p215 = scmp.ne.s32.totalorder %s203, %s204
      %p216 = scmp.eq.s32.totalorder %s47, 3
      %p217 = por %p215, %p216
      %p219 = scmp.ne.s32.totalorder %s204, %s218
      %p220 = scmp.eq.s32.totalorder %s47, 0
      %p221 = por %p219, %p220
      %s223 = sadd.s32 %s222, 1
      %p226 = scmp.eq.s32.totalorder %s41, 3
      %p227 = scmp.ne.s32.totalorder %s222, %s224
      %p228 = scmp.eq.s32.totalorder %s41, 0
      %p229 = por %p227, %p228
      %p230 = scmp.ne.s32.totalorder %s222, %s224
      %p231 = scmp.eq.s32.totalorder %s46, 3
      %p232 = por %p230, %p231
      %p233 = scmp.ne.s32.totalorder %s224, %s225
      %p234 = scmp.eq.s32.totalorder %s46, 0
      %p235 = por %p233, %p234
      %p236 = scmp.ne.s32.totalorder %s224, %s225
      %p237 = scmp.eq.s32.totalorder %s47, 3
      %p238 = por %p236, %p237
      %p240 = scmp.ne.s32.totalorder %s225, %s239
      %p241 = scmp.eq.s32.totalorder %s47, 0
      %p242 = por %p240, %p241
      %s244 = sadd.s32 %s243, 1
      %p247 = scmp.eq.s32.totalorder %s41, 3
      %p248 = scmp.ne.s32.totalorder %s243, %s245
      %p249 = scmp.eq.s32.totalorder %s41, 0
      %p250 = por %p248, %p249
      %p251 = scmp.ne.s32.totalorder %s243, %s245
      %p252 = scmp.eq.s32.totalorder %s46, 3
      %p253 = por %p251, %p252
      %p254 = scmp.ne.s32.totalorder %s245, %s246
      %p255 = scmp.eq.s32.totalorder %s46, 0
      %p256 = por %p254, %p255
      %p257 = scmp.ne.s32.totalorder %s245, %s246
      %p258 = scmp.eq.s32.totalorder %s47, 3
      %p259 = por %p257, %p258
      %p261 = scmp.ne.s32.totalorder %s246, %s260
      %p262 = scmp.eq.s32.totalorder %s47, 0
      %p263 = por %p261, %p262
      %s265 = sadd.s32 %s264, 1
      %p268 = scmp.eq.s32.totalorder %s41, 3
      %p269 = scmp.ne.s32.totalorder %s264, %s266
      %p270 = scmp.eq.s32.totalorder %s41, 0
      %p271 = por %p269, %p270
      %p272 = scmp.ne.s32.totalorder %s264, %s266
      %p273 = scmp.eq.s32.totalorder %s46, 3
      %p274 = por %p272, %p273
      %p275 = scmp.ne.s32.totalorder %s266, %s267
      %p276 = scmp.eq.s32.totalorder %s46, 0
      %p277 = por %p275, %p276
      %p278 = scmp.ne.s32.totalorder %s266, %s267
      %p279 = scmp.eq.s32.totalorder %s47, 3
      %p280 = por %p278, %p279
      %p282 = scmp.ne.s32.totalorder %s267, %s281
      %p283 = scmp.eq.s32.totalorder %s47, 0
      %p284 = por %p282, %p283
      %s286 = sadd.s32 %s285, 1
      %p289 = scmp.eq.s32.totalorder %s41, 3
      %p290 = scmp.ne.s32.totalorder %s285, %s287
      %p291 = scmp.eq.s32.totalorder %s41, 0
      %p292 = por %p290, %p291
      %p293 = scmp.ne.s32.totalorder %s285, %s287
      %p294 = scmp.eq.s32.totalorder %s46, 3
      %p295 = por %p293, %p294
      %p296 = scmp.ne.s32.totalorder %s287, %s288
      %p297 = scmp.eq.s32.totalorder %s46, 0
      %p298 = por %p296, %p297
      %p299 = scmp.ne.s32.totalorder %s287, %s288
      %p300 = scmp.eq.s32.totalorder %s47, 3
      %p301 = por %p299, %p300
      %p303 = scmp.ne.s32.totalorder %s288, %s302
      %p304 = scmp.eq.s32.totalorder %s47, 0
      %p305 = por %p303, %p304
      %s307 = sadd.s32 %s306, 1
      %p310 = scmp.eq.s32.totalorder %s41, 3
      %p311 = scmp.ne.s32.totalorder %s306, %s308
      %p312 = scmp.eq.s32.totalorder %s41, 0
      %p313 = por %p311, %p312
      %p314 = scmp.ne.s32.totalorder %s306, %s308
      %p315 = scmp.eq.s32.totalorder %s46, 3
      %p316 = por %p314, %p315
      %p317 = scmp.ne.s32.totalorder %s308, %s309
      %p318 = scmp.eq.s32.totalorder %s46, 0
      %p319 = por %p317, %p318
      %p320 = scmp.ne.s32.totalorder %s308, %s309
      %p321 = scmp.eq.s32.totalorder %s47, 3
      %p322 = por %p320, %p321
      %p324 = scmp.ne.s32.totalorder %s309, %s323
      %p325 = scmp.eq.s32.totalorder %s47, 0
      %p326 = por %p324, %p325
      %s328 = sadd.s32 %s327, 1
      %p331 = scmp.eq.s32.totalorder %s41, 3
      %p332 = scmp.ne.s32.totalorder %s327, %s329
      %p333 = scmp.eq.s32.totalorder %s41, 0
      %p334 = por %p332, %p333
      %p335 = scmp.ne.s32.totalorder %s327, %s329
      %p336 = scmp.eq.s32.totalorder %s46, 3
      %p337 = por %p335, %p336
      %p338 = scmp.ne.s32.totalorder %s329, %s330
      %p339 = scmp.eq.s32.totalorder %s46, 0
      %p340 = por %p338, %p339
      %p341 = scmp.ne.s32.totalorder %s329, %s330
      %p342 = scmp.eq.s32.totalorder %s47, 3
      %p343 = por %p341, %p342
      %p345 = scmp.ne.s32.totalorder %s330, %s344
      %p346 = scmp.eq.s32.totalorder %s47, 0
      %p347 = por %p345, %p346
      %s349 = sadd.s32 %s348, 1
      %p352 = scmp.eq.s32.totalorder %s41, 3
      %p353 = scmp.ne.s32.totalorder %s348, %s350
      %p354 = scmp.eq.s32.totalorder %s41, 0
      %p355 = por %p353, %p354
      %p356 = scmp.ne.s32.totalorder %s348, %s350
      %p357 = scmp.eq.s32.totalorder %s46, 3
      %p358 = por %p356, %p357
      %p359 = scmp.ne.s32.totalorder %s350, %s351
      %p360 = scmp.eq.s32.totalorder %s46, 0
      %p361 = por %p359, %p360
      %p362 = scmp.ne.s32.totalorder %s350, %s351
      %p363 = scmp.eq.s32.totalorder %s47, 3
      %p364 = por %p362, %p363
      %p366 = scmp.ne.s32.totalorder %s351, %s365
      %p367 = scmp.eq.s32.totalorder %s47, 0
      %p368 = por %p366, %p367
      %s370 = sadd.s32 %s369, 1
      %p373 = scmp.eq.s32.totalorder %s41, 3
      %p374 = scmp.ne.s32.totalorder %s369, %s371
      %p375 = scmp.eq.s32.totalorder %s41, 0
      %p376 = por %p374, %p375
      %p377 = scmp.ne.s32.totalorder %s369, %s371
      %p378 = scmp.eq.s32.totalorder %s46, 3
      %p379 = por %p377, %p378
      %p380 = scmp.ne.s32.totalorder %s371, %s372
      %p381 = scmp.eq.s32.totalorder %s46, 0
      %p382 = por %p380, %p381
      %p383 = scmp.ne.s32.totalorder %s371, %s372
      %p384 = scmp.eq.s32.totalorder %s47, 3
      %p385 = por %p383, %p384
      %p387 = scmp.ne.s32.totalorder %s372, %s386
      %p388 = scmp.eq.s32.totalorder %s47, 0
      %p389 = por %p387, %p388
      %s390 = ssub.s32 %s41, %s48
      %p391 = scmp.eq.s32.totalorder %s390, 0
      %s393 = sadd.s32 %s392, 1
      %s394 = scalar_select %p391, %s392, %s393
      %p397 = pneg %p391
      %p398 = scmp.eq.s32.totalorder %s41, 3
      %p399 = por %p397, %p398
      %p400 = scmp.ne.s32.totalorder %s392, %s395
      %p401 = scmp.eq.s32.totalorder %s41, 0
      %p402 = por %p400, %p401
      %p403 = scmp.ne.s32.totalorder %s392, %s395
      %p404 = scmp.eq.s32.totalorder %s46, 3
      %p405 = por %p403, %p404
      %p406 = scmp.ne.s32.totalorder %s395, %s396
      %p407 = scmp.eq.s32.totalorder %s46, 0
      %p408 = por %p406, %p407
      %p409 = scmp.ne.s32.totalorder %s395, %s396
      %p410 = scmp.eq.s32.totalorder %s47, 3
      %p411 = por %p409, %p410
      %p413 = scmp.ne.s32.totalorder %s396, %s412
      %p414 = scmp.eq.s32.totalorder %s47, 0
      %p415 = por %p413, %p414
      %s416 = ssub.s32 %s41, %s48
      %p417 = scmp.eq.s32.totalorder %s416, 0
      %s419 = sadd.s32 %s418, 1
      %s420 = scalar_select %p417, %s418, %s419
      %p423 = pneg %p417
      %p424 = scmp.eq.s32.totalorder %s41, 3
      %p425 = por %p423, %p424
      %p426 = scmp.ne.s32.totalorder %s418, %s421
      %p427 = scmp.eq.s32.totalorder %s41, 0
      %p428 = por %p426, %p427
      %p429 = scmp.ne.s32.totalorder %s418, %s421
      %p430 = scmp.eq.s32.totalorder %s46, 3
      %p431 = por %p429, %p430
      %p432 = scmp.ne.s32.totalorder %s421, %s422
      %p433 = scmp.eq.s32.totalorder %s46, 0
      %p434 = por %p432, %p433
      %p435 = scmp.ne.s32.totalorder %s421, %s422
      %p436 = scmp.eq.s32.totalorder %s47, 3
      %p437 = por %p435, %p436
      %p439 = scmp.ne.s32.totalorder %s422, %s438
      %p440 = scmp.eq.s32.totalorder %s47, 0
      %p441 = por %p439, %p440
      %p442 = scmp.le.s32.totalorder 1, %s41
      %p443 = scmp.lt.s32.totalorder %s41, 5
      %p444 = pnand %p442, %p443
      %p445 = pneg %p444
      // Predicated region
      $region9: #{tpu_custom_call.1} parent=5 // pred_check
        _
      $region10: #{tpu_custom_call.1} parent=5 // pred_check_branch
        %447 = sbr.rel (%p444) target = $region12
      $region11: #{tpu_custom_call.1} parent=5 // pred_region
        %s448 = ssub.s32 %s41, 1
        // Predicated region
        $region13: #{tpu_custom_call.1} parent=11 // pred_check
          %p449 = pneg %p88
        $region14: #{tpu_custom_call.1} parent=11 // pred_check_branch
          %451 = sbr.rel (%p449) target = $region16
        $region15: #{tpu_custom_call.1} parent=11 // pred_region
          %453 = vsyncadd [#allocation6], 0
          %s454 = sshll.u32 %s1, 4
          %s455 = int_to_ptr.hbm [resolvable:$true] %s454
          %s456 = sshll.u32 [#allocation5], 4
          %s457 = int_to_ptr.vmem [resolvable:$true] %s456
          %462 = dma.hbm_to_vmem [thread:$0]  %s455, 1024, %s457, [#allocation6], 64, 64, 4
        $region16: #{tpu_custom_call.1} parent=11 // pred_fallthru
          _
        // Predicated region
        $region17: #{tpu_custom_call.1} parent=11 // pred_check
          %p463 = pneg %p109
        $region18: #{tpu_custom_call.1} parent=11 // pred_check_branch
          %465 = sbr.rel (%p463) target = $region20
        $region19: #{tpu_custom_call.1} parent=11 // pred_region
          %467 = vsyncadd [#allocation6], 0
          %s468 = sshll.u32 %s2, 4
          %s469 = int_to_ptr.hbm [resolvable:$true] %s468
          %s470 = sshll.u32 [#allocation7], 4
          %s471 = int_to_ptr.vmem [resolvable:$true] %s470
          %476 = dma.hbm_to_vmem [thread:$0]  %s469, 1024, %s471, [#allocation6], 64, 64, 4
        $region20: #{tpu_custom_call.1} parent=11 // pred_fallthru
          _
        // Predicated region
        $region21: #{tpu_custom_call.1} parent=11 // pred_check
          %p477 = pneg %p130
        $region22: #{tpu_custom_call.1} parent=11 // pred_check_branch
          %479 = sbr.rel (%p477) target = $region24
        $region23: #{tpu_custom_call.1} parent=11 // pred_region
          %481 = vsyncadd [#allocation9], 0
          %s482 = sshll.u32 %s3, 4
          %s483 = int_to_ptr.hbm [resolvable:$true] %s482
          %s484 = sshll.u32 [#allocation8], 4
          %s485 = int_to_ptr.vmem [resolvable:$true] %s484
          %490 = dma.hbm_to_vmem [thread:$0]  %s483, 1024, %s485, [#allocation9], 64, 64, 4
        $region24: #{tpu_custom_call.1} parent=11 // pred_fallthru
          _
        // Predicated region
        $region25: #{tpu_custom_call.1} parent=11 // pred_check
          %p491 = pneg %p151
        $region26: #{tpu_custom_call.1} parent=11 // pred_check_branch
          %493 = sbr.rel (%p491) target = $region28
        $region27: #{tpu_custom_call.1} parent=11 // pred_region
          %495 = vsyncadd [#allocation9], 0
          %s496 = sshll.u32 %s4, 4
          %s497 = int_to_ptr.hbm [resolvable:$true] %s496
          %s498 = sshll.u32 [#allocation10], 4
          %s499 = int_to_ptr.vmem [resolvable:$true] %s498
          %504 = dma.hbm_to_vmem [thread:$0]  %s497, 1024, %s499, [#allocation9], 64, 64, 4
        $region28: #{tpu_custom_call.1} parent=11 // pred_fallthru
          _
        // Predicated region
        $region29: #{tpu_custom_call.1} parent=11 // pred_check
          %p505 = pneg %p172
        $region30: #{tpu_custom_call.1} parent=11 // pred_check_branch
          %507 = sbr.rel (%p505) target = $region32
        $region31: #{tpu_custom_call.1} parent=11 // pred_region
          %509 = vsyncadd [#allocation12], 0
          %s510 = sshll.u32 %s5, 4
          %s511 = int_to_ptr.hbm [resolvable:$true] %s510
          %s512 = sshll.u32 [#allocation11], 4
          %s513 = int_to_ptr.vmem [resolvable:$true] %s512
          %518 = dma.hbm_to_vmem [thread:$0]  %s511, 1024, %s513, [#allocation12], 64, 64, 4
        $region32: #{tpu_custom_call.1} parent=11 // pred_fallthru
          _
        // Predicated region
        $region33: #{tpu_custom_call.1} parent=11 // pred_check
          %p519 = pneg %p193
        $region34: #{tpu_custom_call.1} parent=11 // pred_check_branch
          %521 = sbr.rel (%p519) target = $region36
        $region35: #{tpu_custom_call.1} parent=11 // pred_region
          %523 = vsyncadd [#allocation12], 0
          %s524 = sshll.u32 %s6, 4
          %s525 = int_to_ptr.hbm [resolvable:$true] %s524
          %s526 = sshll.u32 [#allocation13], 4
          %s527 = int_to_ptr.vmem [resolvable:$true] %s526
          %532 = dma.hbm_to_vmem [thread:$0]  %s525, 1024, %s527, [#allocation12], 64, 64, 4
        $region36: #{tpu_custom_call.1} parent=11 // pred_fallthru
          _
        // Predicated region
        $region37: #{tpu_custom_call.1} parent=11 // pred_check
          %p533 = pneg %p214
        $region38: #{tpu_custom_call.1} parent=11 // pred_check_branch
          %535 = sbr.rel (%p533) target = $region40
        $region39: #{tpu_custom_call.1} parent=11 // pred_region
          %537 = vsyncadd [#allocation15], 0
          %s538 = sshll.u32 %s7, 4
          %s539 = int_to_ptr.hbm [resolvable:$true] %s538
          %s540 = sshll.u32 [#allocation14], 4
          %s541 = int_to_ptr.vmem [resolvable:$true] %s540
          %546 = dma.hbm_to_vmem [thread:$0]  %s539, 1024, %s541, [#allocation15], 64, 64, 4
        $region40: #{tpu_custom_call.1} parent=11 // pred_fallthru
          _
        // Predicated region
        $region41: #{tpu_custom_call.1} parent=11 // pred_check
          %p547 = pneg %p235
        $region42: #{tpu_custom_call.1} parent=11 // pred_check_branch
          %549 = sbr.rel (%p547) target = $region44
        $region43: #{tpu_custom_call.1} parent=11 // pred_region
          %551 = vsyncadd [#allocation15], 0
          %s552 = sshll.u32 %s8, 4
          %s553 = int_to_ptr.hbm [resolvable:$true] %s552
          %s554 = sshll.u32 [#allocation16], 4
          %s555 = int_to_ptr.vmem [resolvable:$true] %s554
          %560 = dma.hbm_to_vmem [thread:$0]  %s553, 1024, %s555, [#allocation15], 64, 64, 4
        $region44: #{tpu_custom_call.1} parent=11 // pred_fallthru
          _
        // Predicated region
        $region45: #{tpu_custom_call.1} parent=11 // pred_check
          %p561 = pneg %p256
        $region46: #{tpu_custom_call.1} parent=11 // pred_check_branch
          %563 = sbr.rel (%p561) target = $region48
        $region47: #{tpu_custom_call.1} parent=11 // pred_region
          %565 = vsyncadd [#allocation18], 0
          %s566 = sshll.u32 %s9, 4
          %s567 = int_to_ptr.hbm [resolvable:$true] %s566
          %s568 = sshll.u32 [#allocation17], 4
          %s569 = int_to_ptr.vmem [resolvable:$true] %s568
          %574 = dma.hbm_to_vmem [thread:$0]  %s567, 1024, %s569, [#allocation18], 64, 64, 4
        $region48: #{tpu_custom_call.1} parent=11 // pred_fallthru
          _
        // Predicated region
        $region49: #{tpu_custom_call.1} parent=11 // pred_check
          %p575 = pneg %p277
        $region50: #{tpu_custom_call.1} parent=11 // pred_check_branch
          %577 = sbr.rel (%p575) target = $region52
        $region51: #{tpu_custom_call.1} parent=11 // pred_region
          %579 = vsyncadd [#allocation18], 0
          %s580 = sshll.u32 %s10, 4
          %s581 = int_to_ptr.hbm [resolvable:$true] %s580
          %s582 = sshll.u32 [#allocation19], 4
          %s583 = int_to_ptr.vmem [resolvable:$true] %s582
          %588 = dma.hbm_to_vmem [thread:$0]  %s581, 1024, %s583, [#allocation18], 64, 64, 4
        $region52: #{tpu_custom_call.1} parent=11 // pred_fallthru
          _
        // Predicated region
        $region53: #{tpu_custom_call.1} parent=11 // pred_check
          %p589 = pneg %p298
        $region54: #{tpu_custom_call.1} parent=11 // pred_check_branch
          %591 = sbr.rel (%p589) target = $region56
        $region55: #{tpu_custom_call.1} parent=11 // pred_region
          %593 = vsyncadd [#allocation21], 0
          %s594 = sshll.u32 %s11, 4
          %s595 = int_to_ptr.hbm [resolvable:$true] %s594
          %s596 = sshll.u32 [#allocation20], 4
          %s597 = int_to_ptr.vmem [resolvable:$true] %s596
          %602 = dma.hbm_to_vmem [thread:$0]  %s595, 1024, %s597, [#allocation21], 64, 64, 4
        $region56: #{tpu_custom_call.1} parent=11 // pred_fallthru
          _
        // Predicated region
        $region57: #{tpu_custom_call.1} parent=11 // pred_check
          %p603 = pneg %p319
        $region58: #{tpu_custom_call.1} parent=11 // pred_check_branch
          %605 = sbr.rel (%p603) target = $region60
        $region59: #{tpu_custom_call.1} parent=11 // pred_region
          %607 = vsyncadd [#allocation21], 0
          %s608 = sshll.u32 %s12, 4
          %s609 = int_to_ptr.hbm [resolvable:$true] %s608
          %s610 = sshll.u32 [#allocation22], 4
          %s611 = int_to_ptr.vmem [resolvable:$true] %s610
          %616 = dma.hbm_to_vmem [thread:$0]  %s609, 1024, %s611, [#allocation21], 64, 64, 4
        $region60: #{tpu_custom_call.1} parent=11 // pred_fallthru
          _
        // Predicated region
        $region61: #{tpu_custom_call.1} parent=11 // pred_check
          %p617 = pneg %p340
        $region62: #{tpu_custom_call.1} parent=11 // pred_check_branch
          %619 = sbr.rel (%p617) target = $region64
        $region63: #{tpu_custom_call.1} parent=11 // pred_region
          %621 = vsyncadd [#allocation24], 0
          %s622 = sshll.u32 %s13, 4
          %s623 = int_to_ptr.hbm [resolvable:$true] %s622
          %s624 = sshll.u32 [#allocation23], 4
          %s625 = int_to_ptr.vmem [resolvable:$true] %s624
          %630 = dma.hbm_to_vmem [thread:$0]  %s623, 1024, %s625, [#allocation24], 64, 64, 4
        $region64: #{tpu_custom_call.1} parent=11 // pred_fallthru
          _
        // Predicated region
        $region65: #{tpu_custom_call.1} parent=11 // pred_check
          %p631 = pneg %p361
        $region66: #{tpu_custom_call.1} parent=11 // pred_check_branch
          %633 = sbr.rel (%p631) target = $region68
        $region67: #{tpu_custom_call.1} parent=11 // pred_region
          %635 = vsyncadd [#allocation24], 0
          %s636 = sshll.u32 %s14, 4
          %s637 = int_to_ptr.hbm [resolvable:$true] %s636
          %s638 = sshll.u32 [#allocation25], 4
          %s639 = int_to_ptr.vmem [resolvable:$true] %s638
          %644 = dma.hbm_to_vmem [thread:$0]  %s637, 1024, %s639, [#allocation24], 64, 64, 4
        $region68: #{tpu_custom_call.1} parent=11 // pred_fallthru
          _
        // Predicated region
        $region69: #{tpu_custom_call.1} parent=11 // pred_check
          %p645 = pneg %p382
        $region70: #{tpu_custom_call.1} parent=11 // pred_check_branch
          %647 = sbr.rel (%p645) target = $region72
        $region71: #{tpu_custom_call.1} parent=11 // pred_region
          %649 = vsyncadd [#allocation27], 0
          %s650 = sshll.u32 %s15, 4
          %s651 = int_to_ptr.hbm [resolvable:$true] %s650
          %s652 = sshll.u32 [#allocation26], 4
          %s653 = int_to_ptr.vmem [resolvable:$true] %s652
          %658 = dma.hbm_to_vmem [thread:$0]  %s651, 256, %s653, [#allocation27], 128, 128, 8
        $region72: #{tpu_custom_call.1} parent=11 // pred_fallthru
          _
      $region12: #{tpu_custom_call.1} parent=5 // pred_fallthru
        _
      %p659 = scmp.lt.s32.totalorder %s41, 4
      // Predicated region
      $region73: #{tpu_custom_call.1} parent=5 // pred_check
        %p660 = pneg %p659
      $region74: #{tpu_custom_call.1} parent=5 // pred_check_branch
        %662 = sbr.rel (%p660) target = $region76
      $region75: #{tpu_custom_call.1} parent=5 // pred_region
        // Predicated region
        $region77: #{tpu_custom_call.1} parent=75 // pred_check
          %p663 = pneg %p61
        $region78: #{tpu_custom_call.1} parent=75 // pred_check_branch
          %665 = sbr.rel (%p663) target = $region80
        $region79: #{tpu_custom_call.1} parent=75 // pred_region
          %s666 = sand.u32 %s51, 1
          %s667 = scalar_lea.sflag [#allocation3], %s666
          %s668 = sand.u32 %s51, 1
          %s669 = smul.addr %s668, 64
          %s670 = scalar_lea.vmem [#allocation2], %s669
          %s671 = smul.u32 8, %s41
          %673 = vsyncadd %s667, 0
          %s674 = smul.addr %s671, 8
          %s675 = scalar_lea.hbm %s0, %s674
          %s676 = sshll.u32 %s675, 4
          %s677 = int_to_ptr.hbm [resolvable:$true] %s676
          %s678 = sshll.u32 %s670, 4
          %s679 = int_to_ptr.vmem [resolvable:$true] %s678
          %684 = dma.hbm_to_vmem [thread:$0]  %s677, 1024, %s679, %s667, 128, 128, 8
        $region80: #{tpu_custom_call.1} parent=75 // pred_fallthru
          _
      $region76: #{tpu_custom_call.1} parent=5 // pred_fallthru
        _
      %p685 = scmp.le.s32.totalorder 1, %s41
      %p686 = scmp.lt.s32.totalorder %s41, 5
      %p687 = pnand %p685, %p686
      %p688 = pneg %p687
      // Predicated region
      $region81: #{tpu_custom_call.1} parent=5 // pred_check
        _
      $region82: #{tpu_custom_call.1} parent=5 // pred_check_branch
        %690 = sbr.rel (%p687) target = $region84
      $region83: #{tpu_custom_call.1} parent=5 // pred_region
        %s691 = ssub.s32 %s41, 1
        %s692 = sand.u32 %s54, 1
        %s693 = scalar_lea.sflag [#allocation3], %s692
        %s694 = sand.u32 %s54, 1
        %s695 = smul.addr %s694, 64
        %s696 = scalar_lea.vmem [#allocation2], %s695
        // Predicated region
        $region85: #{tpu_custom_call.1} parent=83 // pred_check
          %p697 = pneg %p67
        $region86: #{tpu_custom_call.1} parent=83 // pred_check_branch
          %699 = sbr.rel (%p697) target = $region88
        $region87: #{tpu_custom_call.1} parent=83 // pred_region
          %701 = dma.done %s693, 1024
        $region88: #{tpu_custom_call.1} parent=83 // pred_fallthru
          _
        // Predicated region
        $region89: #{tpu_custom_call.1} parent=83 // pred_check
          %p702 = pneg %p88
        $region90: #{tpu_custom_call.1} parent=83 // pred_check_branch
          %704 = sbr.rel (%p702) target = $region92
        $region91: #{tpu_custom_call.1} parent=83 // pred_region
          %706 = dma.done [#allocation6], 1024
        $region92: #{tpu_custom_call.1} parent=83 // pred_fallthru
          _
        // Predicated region
        $region93: #{tpu_custom_call.1} parent=83 // pred_check
          %p707 = pneg %p109
        $region94: #{tpu_custom_call.1} parent=83 // pred_check_branch
          %709 = sbr.rel (%p707) target = $region96
        $region95: #{tpu_custom_call.1} parent=83 // pred_region
          %711 = dma.done [#allocation6], 1024
        $region96: #{tpu_custom_call.1} parent=83 // pred_fallthru
          _
        // Predicated region
        $region97: #{tpu_custom_call.1} parent=83 // pred_check
          %p712 = pneg %p130
        $region98: #{tpu_custom_call.1} parent=83 // pred_check_branch
          %714 = sbr.rel (%p712) target = $region100
        $region99: #{tpu_custom_call.1} parent=83 // pred_region
          %716 = dma.done [#allocation9], 1024
        $region100: #{tpu_custom_call.1} parent=83 // pred_fallthru
          _
        // Predicated region
        $region101: #{tpu_custom_call.1} parent=83 // pred_check
          %p717 = pneg %p151
        $region102: #{tpu_custom_call.1} parent=83 // pred_check_branch
          %719 = sbr.rel (%p717) target = $region104
        $region103: #{tpu_custom_call.1} parent=83 // pred_region
          %721 = dma.done [#allocation9], 1024
        $region104: #{tpu_custom_call.1} parent=83 // pred_fallthru
          _
        // Predicated region
        $region105: #{tpu_custom_call.1} parent=83 // pred_check
          %p722 = pneg %p172
        $region106: #{tpu_custom_call.1} parent=83 // pred_check_branch
          %724 = sbr.rel (%p722) target = $region108
        $region107: #{tpu_custom_call.1} parent=83 // pred_region
          %726 = dma.done [#allocation12], 1024
        $region108: #{tpu_custom_call.1} parent=83 // pred_fallthru
          _
        // Predicated region
        $region109: #{tpu_custom_call.1} parent=83 // pred_check
          %p727 = pneg %p193
        $region110: #{tpu_custom_call.1} parent=83 // pred_check_branch
          %729 = sbr.rel (%p727) target = $region112
        $region111: #{tpu_custom_call.1} parent=83 // pred_region
          %731 = dma.done [#allocation12], 1024
        $region112: #{tpu_custom_call.1} parent=83 // pred_fallthru
          _
        // Predicated region
        $region113: #{tpu_custom_call.1} parent=83 // pred_check
          %p732 = pneg %p214
        $region114: #{tpu_custom_call.1} parent=83 // pred_check_branch
          %734 = sbr.rel (%p732) target = $region116
        $region115: #{tpu_custom_call.1} parent=83 // pred_region
          %736 = dma.done [#allocation15], 1024
        $region116: #{tpu_custom_call.1} parent=83 // pred_fallthru
          _
        // Predicated region
        $region117: #{tpu_custom_call.1} parent=83 // pred_check
          %p737 = pneg %p235
        $region118: #{tpu_custom_call.1} parent=83 // pred_check_branch
          %739 = sbr.rel (%p737) target = $region120
        $region119: #{tpu_custom_call.1} parent=83 // pred_region
          %741 = dma.done [#allocation15], 1024
        $region120: #{tpu_custom_call.1} parent=83 // pred_fallthru
          _
        // Predicated region
        $region121: #{tpu_custom_call.1} parent=83 // pred_check
          %p742 = pneg %p256
        $region122: #{tpu_custom_call.1} parent=83 // pred_check_branch
          %744 = sbr.rel (%p742) target = $region124
        $region123: #{tpu_custom_call.1} parent=83 // pred_region
          %746 = dma.done [#allocation18], 1024
        $region124: #{tpu_custom_call.1} parent=83 // pred_fallthru
          _
        // Predicated region
        $region125: #{tpu_custom_call.1} parent=83 // pred_check
          %p747 = pneg %p277
        $region126: #{tpu_custom_call.1} parent=83 // pred_check_branch
          %749 = sbr.rel (%p747) target = $region128
        $region127: #{tpu_custom_call.1} parent=83 // pred_region
          %751 = dma.done [#allocation18], 1024
        $region128: #{tpu_custom_call.1} parent=83 // pred_fallthru
          _
        // Predicated region
        $region129: #{tpu_custom_call.1} parent=83 // pred_check
          %p752 = pneg %p298
        $region130: #{tpu_custom_call.1} parent=83 // pred_check_branch
          %754 = sbr.rel (%p752) target = $region132
        $region131: #{tpu_custom_call.1} parent=83 // pred_region
          %756 = dma.done [#allocation21], 1024
        $region132: #{tpu_custom_call.1} parent=83 // pred_fallthru
          _
        // Predicated region
        $region133: #{tpu_custom_call.1} parent=83 // pred_check
          %p757 = pneg %p319
        $region134: #{tpu_custom_call.1} parent=83 // pred_check_branch
          %759 = sbr.rel (%p757) target = $region136
        $region135: #{tpu_custom_call.1} parent=83 // pred_region
          %761 = dma.done [#allocation21], 1024
        $region136: #{tpu_custom_call.1} parent=83 // pred_fallthru
          _
        // Predicated region
        $region137: #{tpu_custom_call.1} parent=83 // pred_check
          %p762 = pneg %p340
        $region138: #{tpu_custom_call.1} parent=83 // pred_check_branch
          %764 = sbr.rel (%p762) target = $region140
        $region139: #{tpu_custom_call.1} parent=83 // pred_region
          %766 = dma.done [#allocation24], 1024
        $region140: #{tpu_custom_call.1} parent=83 // pred_fallthru
          _
        // Predicated region
        $region141: #{tpu_custom_call.1} parent=83 // pred_check
          %p767 = pneg %p361
        $region142: #{tpu_custom_call.1} parent=83 // pred_check_branch
          %769 = sbr.rel (%p767) target = $region144
        $region143: #{tpu_custom_call.1} parent=83 // pred_region
          %771 = dma.done [#allocation24], 1024
        $region144: #{tpu_custom_call.1} parent=83 // pred_fallthru
          _
        // Predicated region
        $region145: #{tpu_custom_call.1} parent=83 // pred_check
          %p772 = pneg %p382
        $region146: #{tpu_custom_call.1} parent=83 // pred_check_branch
          %774 = sbr.rel (%p772) target = $region148
        $region147: #{tpu_custom_call.1} parent=83 // pred_region
          %776 = dma.done [#allocation27], 256
        $region148: #{tpu_custom_call.1} parent=83 // pred_fallthru
          _
        %s777 = sand.u32 %s54, 1
        %s778 = scalar_lea.sflag [#allocation3], %s777
        %s779 = sand.u32 %s54, 1
        %s780 = smul.addr %s779, 64
        %s781 = scalar_lea.vmem [#allocation2], %s780
        %p782 = pneg %p67
        %p783 = pneg %p64
        %p784 = pneg %p88
        %p785 = pneg %p85
        %p786 = pneg %p109
        %p787 = pneg %p106
        %p788 = pneg %p130
        %p789 = pneg %p127
        %p790 = pneg %p151
        %p791 = pneg %p148
        %p792 = pneg %p172
        %p793 = pneg %p169
        %p794 = pneg %p193
        %p795 = pneg %p190
        %p796 = pneg %p214
        %p797 = pneg %p211
        %p798 = pneg %p235
        %p799 = pneg %p232
        %p800 = pneg %p256
        %p801 = pneg %p253
        %p802 = pneg %p277
        %p803 = pneg %p274
        %p804 = pneg %p298
        %p805 = pneg %p295
        %p806 = pneg %p319
        %p807 = pneg %p316
        %p808 = pneg %p340
        %p809 = pneg %p337
        %p810 = pneg %p361
        %p811 = pneg %p358
        %p812 = pneg %p382
        %p813 = pneg %p379
        %p814 = pneg %p408
        %p815 = pneg %p405
        %s816 = sand.u32 %s395, 1
        %s817 = scalar_lea.sflag [#allocation4], %s816
        %s818 = sand.u32 %s395, 1
        %s819 = smul.addr %s818, 64
        %s820 = scalar_lea.vmem [#allocation28], %s819
        %p821 = pneg %p434
        %p822 = pneg %p431
        %s823 = sand.u32 %s421, 1
        %s824 = scalar_lea.sflag [#allocation30], %s823
        %s825 = sand.u32 %s421, 1
        %s826 = smul.addr %s825, 64
        %s827 = scalar_lea.vmem [#allocation29], %s826
        %s828 = smul.u32 8, %s46
        %s829 = smul.u32 8, %s46
        %s830 = smul.u32 8, %s46
        %v831 = vld [vmem:[%s696] sm:$0xff]
        %v832 = vld [vmem:[%s696 + $0x8] sm:$0xff]
        %v833 = vld [vmem:[%s696 + $0x10] sm:$0xff]
        %v834 = vld [vmem:[%s696 + $0x18] sm:$0xff]
        %v835 = vld [vmem:[%s696 + $0x20] sm:$0xff]
        %v836 = vld [vmem:[%s696 + $0x28] sm:$0xff]
        %v837 = vld [vmem:[%s696 + $0x30] sm:$0xff]
        %v838 = vld [vmem:[%s696 + $0x38] sm:$0xff]
        %v839 = vld [vmem:[#allocation5] sm:$0xf]
        %v840 = vld [vmem:[#allocation5 + $0x4] sm:$0xf]
        %v841 = vld [vmem:[#allocation5 + $0x8] sm:$0xf]
        %v842 = vld [vmem:[#allocation5 + $0xc] sm:$0xf]
        %v843 = vld [vmem:[#allocation5 + $0x10] sm:$0xf]
        %v844 = vld [vmem:[#allocation5 + $0x14] sm:$0xf]
        %v845 = vld [vmem:[#allocation5 + $0x18] sm:$0xf]
        %v846 = vld [vmem:[#allocation5 + $0x1c] sm:$0xf]
        %v847 = vld [vmem:[#allocation5 + $0x20] sm:$0xf]
        %v848 = vld [vmem:[#allocation5 + $0x24] sm:$0xf]
        %v849 = vld [vmem:[#allocation5 + $0x28] sm:$0xf]
        %v850 = vld [vmem:[#allocation5 + $0x2c] sm:$0xf]
        %v851 = vld [vmem:[#allocation5 + $0x30] sm:$0xf]
        %v852 = vld [vmem:[#allocation5 + $0x34] sm:$0xf]
        %v853 = vld [vmem:[#allocation5 + $0x38] sm:$0xf]
        %v854 = vld [vmem:[#allocation5 + $0x3c] sm:$0xf]
        %v855 = vld [vmem:[#allocation26] sm:$0x1]
        %v856 = vpack.c.bf16 %v832, %v831
        %v857 = vpack.c.bf16 %v834, %v833
        %v858 = vpack.c.bf16 %v836, %v835
        %v859 = vpack.c.bf16 %v838, %v837
        %v860 = vperm.slane %v855, 0
        %v877 = vunpack.c.l.b16 %v839
        %v878 = vunpack.c.l.b16 %v840
        %v879 = vunpack.c.l.b16 %v841
        %v880 = vunpack.c.l.b16 %v842
        %v881 = vunpack.c.l.b16 %v843
        %v882 = vunpack.c.l.b16 %v844
        %v883 = vunpack.c.l.b16 %v845
        %v884 = vunpack.c.l.b16 %v846
        %v885 = vunpack.c.l.b16 %v847
        %v886 = vunpack.c.l.b16 %v848
        %v887 = vunpack.c.l.b16 %v849
        %v888 = vunpack.c.l.b16 %v850
        %v889 = vunpack.c.l.b16 %v851
        %v890 = vunpack.c.l.b16 %v852
        %v891 = vunpack.c.l.b16 %v853
        %v892 = vunpack.c.l.b16 %v854
        %v893 = vpack.c.b16 %v878, %v877
        %v894 = vpack.c.b16 %v880, %v879
        %v895 = vpack.c.b16 %v882, %v881
        %v896 = vpack.c.b16 %v884, %v883
        %v897 = vpack.c.b16 %v886, %v885
        %v898 = vpack.c.b16 %v888, %v887
        %v899 = vpack.c.b16 %v890, %v889
        %v900 = vpack.c.b16 %v892, %v891
        %909 = vmatpush.bf16.msra.mxu0 %v900
        %910 = vmatpush.bf16.msra.mxu0 %v899
        %911 = vmatpush.bf16.msra.mxu0 %v898
        %912 = vmatpush.bf16.msra.mxu0 %v897
        %913 = vmatpush.bf16.msra.mxu0 %v896
        %914 = vmatpush.bf16.msra.mxu0 %v895
        %915 = vmatpush.bf16.msra.mxu0 %v894
        %916 = vmatpush.bf16.msra.mxu0 %v893
        %917 = vmatmul.bf16.gmra.mxu0 %v856
        %v918 = vpop.f32.mrf.mxu0
        %v919 = vadd.f32 %v860, %v918
        %v920 = vpop.f32.mrf.mxu0
        %v921 = vadd.f32 %v860, %v920
        %922 = vmatmul.bf16.gmra.mxu0 %v857
        %v923 = vpop.f32.mrf.mxu0
        %v924 = vadd.f32 %v860, %v923
        %v925 = vpop.f32.mrf.mxu0
        %v926 = vadd.f32 %v860, %v925
        %927 = vmatmul.bf16.gmra.mxu0 %v858
        %v928 = vpop.f32.mrf.mxu0
        %v929 = vadd.f32 %v860, %v928
        %v930 = vpop.f32.mrf.mxu0
        %v931 = vadd.f32 %v860, %v930
        %932 = vmatmul.bf16.gmra.mxu0 %v859
        %v933 = vpop.f32.mrf.mxu0
        %v934 = vadd.f32 %v860, %v933
        %v935 = vpop.f32.mrf.mxu0
        %v936 = vadd.f32 %v860, %v935
        %937 = vdwg.mxu0
        %v938 = vld [vmem:[#allocation7] sm:$0xf]
        %v939 = vld [vmem:[#allocation7 + $0x4] sm:$0xf]
        %v940 = vld [vmem:[#allocation7 + $0x8] sm:$0xf]
        %v941 = vld [vmem:[#allocation7 + $0xc] sm:$0xf]
        %v942 = vld [vmem:[#allocation7 + $0x10] sm:$0xf]
        %v943 = vld [vmem:[#allocation7 + $0x14] sm:$0xf]
        %v944 = vld [vmem:[#allocation7 + $0x18] sm:$0xf]
        %v945 = vld [vmem:[#allocation7 + $0x1c] sm:$0xf]
        %v946 = vld [vmem:[#allocation7 + $0x20] sm:$0xf]
        %v947 = vld [vmem:[#allocation7 + $0x24] sm:$0xf]
        %v948 = vld [vmem:[#allocation7 + $0x28] sm:$0xf]
        %v949 = vld [vmem:[#allocation7 + $0x2c] sm:$0xf]
        %v950 = vld [vmem:[#allocation7 + $0x30] sm:$0xf]
        %v951 = vld [vmem:[#allocation7 + $0x34] sm:$0xf]
        %v952 = vld [vmem:[#allocation7 + $0x38] sm:$0xf]
        %v953 = vld [vmem:[#allocation7 + $0x3c] sm:$0xf]
        %v954 = vld [vmem:[#allocation26 + $0x1] sm:$0x1]
        %v955 = vpack.c.bf16 %v921, %v919
        %v956 = vpack.c.bf16 %v926, %v924
        %v957 = vpack.c.bf16 %v931, %v929
        %v958 = vpack.c.bf16 %v936, %v934
        %v959 = vperm.slane %v954, 0
        %v976 = vunpack.c.l.b16 %v938
        %v977 = vunpack.c.l.b16 %v939
        %v978 = vunpack.c.l.b16 %v940
        %v979 = vunpack.c.l.b16 %v941
        %v980 = vunpack.c.l.b16 %v942
        %v981 = vunpack.c.l.b16 %v943
        %v982 = vunpack.c.l.b16 %v944
        %v983 = vunpack.c.l.b16 %v945
        %v984 = vunpack.c.l.b16 %v946
        %v985 = vunpack.c.l.b16 %v947
        %v986 = vunpack.c.l.b16 %v948
        %v987 = vunpack.c.l.b16 %v949
        %v988 = vunpack.c.l.b16 %v950
        %v989 = vunpack.c.l.b16 %v951
        %v990 = vunpack.c.l.b16 %v952
        %v991 = vunpack.c.l.b16 %v953
        %v992 = vpack.c.b16 %v977, %v976
        %v993 = vpack.c.b16 %v979, %v978
        %v994 = vpack.c.b16 %v981, %v980
        %v995 = vpack.c.b16 %v983, %v982
        %v996 = vpack.c.b16 %v985, %v984
        %v997 = vpack.c.b16 %v987, %v986
        %v998 = vpack.c.b16 %v989, %v988
        %v999 = vpack.c.b16 %v991, %v990
        %1008 = vmatpush.bf16.msra.mxu0 %v999
        %1009 = vmatpush.bf16.msra.mxu0 %v998
        %1010 = vmatpush.bf16.msra.mxu0 %v997
        %1011 = vmatpush.bf16.msra.mxu0 %v996
        %1012 = vmatpush.bf16.msra.mxu0 %v995
        %1013 = vmatpush.bf16.msra.mxu0 %v994
        %1014 = vmatpush.bf16.msra.mxu0 %v993
        %1015 = vmatpush.bf16.msra.mxu0 %v992
        %1016 = vmatmul.bf16.gmra.mxu0 %v955
        %v1017 = vpop.f32.mrf.mxu0
        %v1018 = vadd.f32 %v959, %v1017
        %v1019 = vpop.f32.mrf.mxu0
        %v1020 = vadd.f32 %v959, %v1019
        %1021 = vmatmul.bf16.gmra.mxu0 %v956
        %v1022 = vpop.f32.mrf.mxu0
        %v1023 = vadd.f32 %v959, %v1022
        %v1024 = vpop.f32.mrf.mxu0
        %v1025 = vadd.f32 %v959, %v1024
        %1026 = vmatmul.bf16.gmra.mxu0 %v957
        %v1027 = vpop.f32.mrf.mxu0
        %v1028 = vadd.f32 %v959, %v1027
        %v1029 = vpop.f32.mrf.mxu0
        %v1030 = vadd.f32 %v959, %v1029
        %1031 = vmatmul.bf16.gmra.mxu0 %v958
        %v1032 = vpop.f32.mrf.mxu0
        %v1033 = vadd.f32 %v959, %v1032
        %v1034 = vpop.f32.mrf.mxu0
        %v1035 = vadd.f32 %v959, %v1034
        %1036 = vdwg.mxu0
        %v1037 = vmax.f32 %v1018, 0.0
        %v1038 = vmax.f32 %v1020, 0.0
        %v1039 = vmax.f32 %v1023, 0.0
        %v1040 = vmax.f32 %v1025, 0.0
        %v1041 = vmax.f32 %v1028, 0.0
        %v1042 = vmax.f32 %v1030, 0.0
        %v1043 = vmax.f32 %v1033, 0.0
        %v1044 = vmax.f32 %v1035, 0.0
        %v1045 = vld [vmem:[#allocation8] sm:$0xf]
        %v1046 = vld [vmem:[#allocation8 + $0x4] sm:$0xf]
        %v1047 = vld [vmem:[#allocation8 + $0x8] sm:$0xf]
        %v1048 = vld [vmem:[#allocation8 + $0xc] sm:$0xf]
        %v1049 = vld [vmem:[#allocation8 + $0x10] sm:$0xf]
        %v1050 = vld [vmem:[#allocation8 + $0x14] sm:$0xf]
        %v1051 = vld [vmem:[#allocation8 + $0x18] sm:$0xf]
        %v1052 = vld [vmem:[#allocation8 + $0x1c] sm:$0xf]
        %v1053 = vld [vmem:[#allocation8 + $0x20] sm:$0xf]
        %v1054 = vld [vmem:[#allocation8 + $0x24] sm:$0xf]
        %v1055 = vld [vmem:[#allocation8 + $0x28] sm:$0xf]
        %v1056 = vld [vmem:[#allocation8 + $0x2c] sm:$0xf]
        %v1057 = vld [vmem:[#allocation8 + $0x30] sm:$0xf]
        %v1058 = vld [vmem:[#allocation8 + $0x34] sm:$0xf]
        %v1059 = vld [vmem:[#allocation8 + $0x38] sm:$0xf]
        %v1060 = vld [vmem:[#allocation8 + $0x3c] sm:$0xf]
        %v1061 = vld [vmem:[#allocation26 + $0x2] sm:$0x1]
        %v1062 = vpack.c.bf16 %v1038, %v1037
        %v1063 = vpack.c.bf16 %v1040, %v1039
        %v1064 = vpack.c.bf16 %v1042, %v1041
        %v1065 = vpack.c.bf16 %v1044, %v1043
        %v1066 = vperm.slane %v1061, 0
        %v1083 = vunpack.c.l.b16 %v1045
        %v1084 = vunpack.c.l.b16 %v1046
        %v1085 = vunpack.c.l.b16 %v1047
        %v1086 = vunpack.c.l.b16 %v1048
        %v1087 = vunpack.c.l.b16 %v1049
        %v1088 = vunpack.c.l.b16 %v1050
        %v1089 = vunpack.c.l.b16 %v1051
        %v1090 = vunpack.c.l.b16 %v1052
        %v1091 = vunpack.c.l.b16 %v1053
        %v1092 = vunpack.c.l.b16 %v1054
        %v1093 = vunpack.c.l.b16 %v1055
        %v1094 = vunpack.c.l.b16 %v1056
        %v1095 = vunpack.c.l.b16 %v1057
        %v1096 = vunpack.c.l.b16 %v1058
        %v1097 = vunpack.c.l.b16 %v1059
        %v1098 = vunpack.c.l.b16 %v1060
        %v1099 = vpack.c.b16 %v1084, %v1083
        %v1100 = vpack.c.b16 %v1086, %v1085
        %v1101 = vpack.c.b16 %v1088, %v1087
        %v1102 = vpack.c.b16 %v1090, %v1089
        %v1103 = vpack.c.b16 %v1092, %v1091
        %v1104 = vpack.c.b16 %v1094, %v1093
        %v1105 = vpack.c.b16 %v1096, %v1095
        %v1106 = vpack.c.b16 %v1098, %v1097
        %1115 = vmatpush.bf16.msra.mxu0 %v1106
        %1116 = vmatpush.bf16.msra.mxu0 %v1105
        %1117 = vmatpush.bf16.msra.mxu0 %v1104
        %1118 = vmatpush.bf16.msra.mxu0 %v1103
        %1119 = vmatpush.bf16.msra.mxu0 %v1102
        %1120 = vmatpush.bf16.msra.mxu0 %v1101
        %1121 = vmatpush.bf16.msra.mxu0 %v1100
        %1122 = vmatpush.bf16.msra.mxu0 %v1099
        %1123 = vmatmul.bf16.gmra.mxu0 %v1062
        %v1124 = vpop.f32.mrf.mxu0
        %v1125 = vadd.f32 %v1066, %v1124
        %v1126 = vpop.f32.mrf.mxu0
        %v1127 = vadd.f32 %v1066, %v1126
        %1128 = vmatmul.bf16.gmra.mxu0 %v1063
        %v1129 = vpop.f32.mrf.mxu0
        %v1130 = vadd.f32 %v1066, %v1129
        %v1131 = vpop.f32.mrf.mxu0
        %v1132 = vadd.f32 %v1066, %v1131
        %1133 = vmatmul.bf16.gmra.mxu0 %v1064
        %v1134 = vpop.f32.mrf.mxu0
        %v1135 = vadd.f32 %v1066, %v1134
        %v1136 = vpop.f32.mrf.mxu0
        %v1137 = vadd.f32 %v1066, %v1136
        %1138 = vmatmul.bf16.gmra.mxu0 %v1065
        %v1139 = vpop.f32.mrf.mxu0
        %v1140 = vadd.f32 %v1066, %v1139
        %v1141 = vpop.f32.mrf.mxu0
        %v1142 = vadd.f32 %v1066, %v1141
        %1143 = vdwg.mxu0
        %v1144 = vadd.f32 %v919, %v1125
        %v1145 = vadd.f32 %v921, %v1127
        %v1146 = vadd.f32 %v924, %v1130
        %v1147 = vadd.f32 %v926, %v1132
        %v1148 = vadd.f32 %v929, %v1135
        %v1149 = vadd.f32 %v931, %v1137
        %v1150 = vadd.f32 %v934, %v1140
        %v1151 = vadd.f32 %v936, %v1142
        %v1152 = vmax.f32 %v1144, 0.0
        %v1153 = vmax.f32 %v1145, 0.0
        %v1154 = vmax.f32 %v1146, 0.0
        %v1155 = vmax.f32 %v1147, 0.0
        %v1156 = vmax.f32 %v1148, 0.0
        %v1157 = vmax.f32 %v1149, 0.0
        %v1158 = vmax.f32 %v1150, 0.0
        %v1159 = vmax.f32 %v1151, 0.0
        %v1160 = vld [vmem:[#allocation10] sm:$0xf]
        %v1161 = vld [vmem:[#allocation10 + $0x4] sm:$0xf]
        %v1162 = vld [vmem:[#allocation10 + $0x8] sm:$0xf]
        %v1163 = vld [vmem:[#allocation10 + $0xc] sm:$0xf]
        %v1164 = vld [vmem:[#allocation10 + $0x10] sm:$0xf]
        %v1165 = vld [vmem:[#allocation10 + $0x14] sm:$0xf]
        %v1166 = vld [vmem:[#allocation10 + $0x18] sm:$0xf]
        %v1167 = vld [vmem:[#allocation10 + $0x1c] sm:$0xf]
        %v1168 = vld [vmem:[#allocation10 + $0x20] sm:$0xf]
        %v1169 = vld [vmem:[#allocation10 + $0x24] sm:$0xf]
        %v1170 = vld [vmem:[#allocation10 + $0x28] sm:$0xf]
        %v1171 = vld [vmem:[#allocation10 + $0x2c] sm:$0xf]
        %v1172 = vld [vmem:[#allocation10 + $0x30] sm:$0xf]
        %v1173 = vld [vmem:[#allocation10 + $0x34] sm:$0xf]
        %v1174 = vld [vmem:[#allocation10 + $0x38] sm:$0xf]
        %v1175 = vld [vmem:[#allocation10 + $0x3c] sm:$0xf]
        %v1176 = vld [vmem:[#allocation26 + $0x3] sm:$0x1]
        %v1177 = vpack.c.bf16 %v1153, %v1152
        %v1178 = vpack.c.bf16 %v1155, %v1154
        %v1179 = vpack.c.bf16 %v1157, %v1156
        %v1180 = vpack.c.bf16 %v1159, %v1158
        %v1181 = vperm.slane %v1176, 0
        %v1198 = vunpack.c.l.b16 %v1160
        %v1199 = vunpack.c.l.b16 %v1161
        %v1200 = vunpack.c.l.b16 %v1162
        %v1201 = vunpack.c.l.b16 %v1163
        %v1202 = vunpack.c.l.b16 %v1164
        %v1203 = vunpack.c.l.b16 %v1165
        %v1204 = vunpack.c.l.b16 %v1166
        %v1205 = vunpack.c.l.b16 %v1167
        %v1206 = vunpack.c.l.b16 %v1168
        %v1207 = vunpack.c.l.b16 %v1169
        %v1208 = vunpack.c.l.b16 %v1170
        %v1209 = vunpack.c.l.b16 %v1171
        %v1210 = vunpack.c.l.b16 %v1172
        %v1211 = vunpack.c.l.b16 %v1173
        %v1212 = vunpack.c.l.b16 %v1174
        %v1213 = vunpack.c.l.b16 %v1175
        %v1214 = vpack.c.b16 %v1199, %v1198
        %v1215 = vpack.c.b16 %v1201, %v1200
        %v1216 = vpack.c.b16 %v1203, %v1202
        %v1217 = vpack.c.b16 %v1205, %v1204
        %v1218 = vpack.c.b16 %v1207, %v1206
        %v1219 = vpack.c.b16 %v1209, %v1208
        %v1220 = vpack.c.b16 %v1211, %v1210
        %v1221 = vpack.c.b16 %v1213, %v1212
        %1230 = vmatpush.bf16.msra.mxu0 %v1221
        %1231 = vmatpush.bf16.msra.mxu0 %v1220
        %1232 = vmatpush.bf16.msra.mxu0 %v1219
        %1233 = vmatpush.bf16.msra.mxu0 %v1218
        %1234 = vmatpush.bf16.msra.mxu0 %v1217
        %1235 = vmatpush.bf16.msra.mxu0 %v1216
        %1236 = vmatpush.bf16.msra.mxu0 %v1215
        %1237 = vmatpush.bf16.msra.mxu0 %v1214
        %1238 = vmatmul.bf16.gmra.mxu0 %v1177
        %v1239 = vpop.f32.mrf.mxu0
        %v1240 = vadd.f32 %v1181, %v1239
        %v1241 = vpop.f32.mrf.mxu0
        %v1242 = vadd.f32 %v1181, %v1241
        %1243 = vmatmul.bf16.gmra.mxu0 %v1178
        %v1244 = vpop.f32.mrf.mxu0
        %v1245 = vadd.f32 %v1181, %v1244
        %v1246 = vpop.f32.mrf.mxu0
        %v1247 = vadd.f32 %v1181, %v1246
        %1248 = vmatmul.bf16.gmra.mxu0 %v1179
        %v1249 = vpop.f32.mrf.mxu0
        %v1250 = vadd.f32 %v1181, %v1249
        %v1251 = vpop.f32.mrf.mxu0
        %v1252 = vadd.f32 %v1181, %v1251
        %1253 = vmatmul.bf16.gmra.mxu0 %v1180
        %v1254 = vpop.f32.mrf.mxu0
        %v1255 = vadd.f32 %v1181, %v1254
        %v1256 = vpop.f32.mrf.mxu0
        %v1257 = vadd.f32 %v1181, %v1256
        %1258 = vdwg.mxu0
        %v1259 = vld [vmem:[#allocation11] sm:$0xf]
        %v1260 = vld [vmem:[#allocation11 + $0x4] sm:$0xf]
        %v1261 = vld [vmem:[#allocation11 + $0x8] sm:$0xf]
        %v1262 = vld [vmem:[#allocation11 + $0xc] sm:$0xf]
        %v1263 = vld [vmem:[#allocation11 + $0x10] sm:$0xf]
        %v1264 = vld [vmem:[#allocation11 + $0x14] sm:$0xf]
        %v1265 = vld [vmem:[#allocation11 + $0x18] sm:$0xf]
        %v1266 = vld [vmem:[#allocation11 + $0x1c] sm:$0xf]
        %v1267 = vld [vmem:[#allocation11 + $0x20] sm:$0xf]
        %v1268 = vld [vmem:[#allocation11 + $0x24] sm:$0xf]
        %v1269 = vld [vmem:[#allocation11 + $0x28] sm:$0xf]
        %v1270 = vld [vmem:[#allocation11 + $0x2c] sm:$0xf]
        %v1271 = vld [vmem:[#allocation11 + $0x30] sm:$0xf]
        %v1272 = vld [vmem:[#allocation11 + $0x34] sm:$0xf]
        %v1273 = vld [vmem:[#allocation11 + $0x38] sm:$0xf]
        %v1274 = vld [vmem:[#allocation11 + $0x3c] sm:$0xf]
        %v1275 = vld [vmem:[#allocation26 + $0x4] sm:$0x1]
        %v1276 = vpack.c.bf16 %v1242, %v1240
        %v1277 = vpack.c.bf16 %v1247, %v1245
        %v1278 = vpack.c.bf16 %v1252, %v1250
        %v1279 = vpack.c.bf16 %v1257, %v1255
        %v1280 = vperm.slane %v1275, 0
        %v1297 = vunpack.c.l.b16 %v1259
        %v1298 = vunpack.c.l.b16 %v1260
        %v1299 = vunpack.c.l.b16 %v1261
        %v1300 = vunpack.c.l.b16 %v1262
        %v1301 = vunpack.c.l.b16 %v1263
        %v1302 = vunpack.c.l.b16 %v1264
        %v1303 = vunpack.c.l.b16 %v1265
        %v1304 = vunpack.c.l.b16 %v1266
        %v1305 = vunpack.c.l.b16 %v1267
        %v1306 = vunpack.c.l.b16 %v1268
        %v1307 = vunpack.c.l.b16 %v1269
        %v1308 = vunpack.c.l.b16 %v1270
        %v1309 = vunpack.c.l.b16 %v1271
        %v1310 = vunpack.c.l.b16 %v1272
        %v1311 = vunpack.c.l.b16 %v1273
        %v1312 = vunpack.c.l.b16 %v1274
        %v1313 = vpack.c.b16 %v1298, %v1297
        %v1314 = vpack.c.b16 %v1300, %v1299
        %v1315 = vpack.c.b16 %v1302, %v1301
        %v1316 = vpack.c.b16 %v1304, %v1303
        %v1317 = vpack.c.b16 %v1306, %v1305
        %v1318 = vpack.c.b16 %v1308, %v1307
        %v1319 = vpack.c.b16 %v1310, %v1309
        %v1320 = vpack.c.b16 %v1312, %v1311
        %1329 = vmatpush.bf16.msra.mxu0 %v1320
        %1330 = vmatpush.bf16.msra.mxu0 %v1319
        %1331 = vmatpush.bf16.msra.mxu0 %v1318
        %1332 = vmatpush.bf16.msra.mxu0 %v1317
        %1333 = vmatpush.bf16.msra.mxu0 %v1316
        %1334 = vmatpush.bf16.msra.mxu0 %v1315
        %1335 = vmatpush.bf16.msra.mxu0 %v1314
        %1336 = vmatpush.bf16.msra.mxu0 %v1313
        %1337 = vmatmul.bf16.gmra.mxu0 %v1276
        %v1338 = vpop.f32.mrf.mxu0
        %v1339 = vadd.f32 %v1280, %v1338
        %v1340 = vpop.f32.mrf.mxu0
        %v1341 = vadd.f32 %v1280, %v1340
        %1342 = vmatmul.bf16.gmra.mxu0 %v1277
        %v1343 = vpop.f32.mrf.mxu0
        %v1344 = vadd.f32 %v1280, %v1343
        %v1345 = vpop.f32.mrf.mxu0
        %v1346 = vadd.f32 %v1280, %v1345
        %1347 = vmatmul.bf16.gmra.mxu0 %v1278
        %v1348 = vpop.f32.mrf.mxu0
        %v1349 = vadd.f32 %v1280, %v1348
        %v1350 = vpop.f32.mrf.mxu0
        %v1351 = vadd.f32 %v1280, %v1350
        %1352 = vmatmul.bf16.gmra.mxu0 %v1279
        %v1353 = vpop.f32.mrf.mxu0
        %v1354 = vadd.f32 %v1280, %v1353
        %v1355 = vpop.f32.mrf.mxu0
        %v1356 = vadd.f32 %v1280, %v1355
        %1357 = vdwg.mxu0
        %v1358 = vmax.f32 %v1339, 0.0
        %v1359 = vmax.f32 %v1341, 0.0
        %v1360 = vmax.f32 %v1344, 0.0
        %v1361 = vmax.f32 %v1346, 0.0
        %v1362 = vmax.f32 %v1349, 0.0
        %v1363 = vmax.f32 %v1351, 0.0
        %v1364 = vmax.f32 %v1354, 0.0
        %v1365 = vmax.f32 %v1356, 0.0
        %v1366 = vld [vmem:[#allocation13] sm:$0xf]
        %v1367 = vld [vmem:[#allocation13 + $0x4] sm:$0xf]
        %v1368 = vld [vmem:[#allocation13 + $0x8] sm:$0xf]
        %v1369 = vld [vmem:[#allocation13 + $0xc] sm:$0xf]
        %v1370 = vld [vmem:[#allocation13 + $0x10] sm:$0xf]
        %v1371 = vld [vmem:[#allocation13 + $0x14] sm:$0xf]
        %v1372 = vld [vmem:[#allocation13 + $0x18] sm:$0xf]
        %v1373 = vld [vmem:[#allocation13 + $0x1c] sm:$0xf]
        %v1374 = vld [vmem:[#allocation13 + $0x20] sm:$0xf]
        %v1375 = vld [vmem:[#allocation13 + $0x24] sm:$0xf]
        %v1376 = vld [vmem:[#allocation13 + $0x28] sm:$0xf]
        %v1377 = vld [vmem:[#allocation13 + $0x2c] sm:$0xf]
        %v1378 = vld [vmem:[#allocation13 + $0x30] sm:$0xf]
        %v1379 = vld [vmem:[#allocation13 + $0x34] sm:$0xf]
        %v1380 = vld [vmem:[#allocation13 + $0x38] sm:$0xf]
        %v1381 = vld [vmem:[#allocation13 + $0x3c] sm:$0xf]
        %v1382 = vld [vmem:[#allocation26 + $0x5] sm:$0x1]
        %v1383 = vpack.c.bf16 %v1359, %v1358
        %v1384 = vpack.c.bf16 %v1361, %v1360
        %v1385 = vpack.c.bf16 %v1363, %v1362
        %v1386 = vpack.c.bf16 %v1365, %v1364
        %v1387 = vperm.slane %v1382, 0
        %v1404 = vunpack.c.l.b16 %v1366
        %v1405 = vunpack.c.l.b16 %v1367
        %v1406 = vunpack.c.l.b16 %v1368
        %v1407 = vunpack.c.l.b16 %v1369
        %v1408 = vunpack.c.l.b16 %v1370
        %v1409 = vunpack.c.l.b16 %v1371
        %v1410 = vunpack.c.l.b16 %v1372
        %v1411 = vunpack.c.l.b16 %v1373
        %v1412 = vunpack.c.l.b16 %v1374
        %v1413 = vunpack.c.l.b16 %v1375
        %v1414 = vunpack.c.l.b16 %v1376
        %v1415 = vunpack.c.l.b16 %v1377
        %v1416 = vunpack.c.l.b16 %v1378
        %v1417 = vunpack.c.l.b16 %v1379
        %v1418 = vunpack.c.l.b16 %v1380
        %v1419 = vunpack.c.l.b16 %v1381
        %v1420 = vpack.c.b16 %v1405, %v1404
        %v1421 = vpack.c.b16 %v1407, %v1406
        %v1422 = vpack.c.b16 %v1409, %v1408
        %v1423 = vpack.c.b16 %v1411, %v1410
        %v1424 = vpack.c.b16 %v1413, %v1412
        %v1425 = vpack.c.b16 %v1415, %v1414
        %v1426 = vpack.c.b16 %v1417, %v1416
        %v1427 = vpack.c.b16 %v1419, %v1418
        %1436 = vmatpush.bf16.msra.mxu0 %v1427
        %1437 = vmatpush.bf16.msra.mxu0 %v1426
        %1438 = vmatpush.bf16.msra.mxu0 %v1425
        %1439 = vmatpush.bf16.msra.mxu0 %v1424
        %1440 = vmatpush.bf16.msra.mxu0 %v1423
        %1441 = vmatpush.bf16.msra.mxu0 %v1422
        %1442 = vmatpush.bf16.msra.mxu0 %v1421
        %1443 = vmatpush.bf16.msra.mxu0 %v1420
        %1444 = vmatmul.bf16.gmra.mxu0 %v1383
        %v1445 = vpop.f32.mrf.mxu0
        %v1446 = vadd.f32 %v1387, %v1445
        %v1447 = vpop.f32.mrf.mxu0
        %v1448 = vadd.f32 %v1387, %v1447
        %1449 = vmatmul.bf16.gmra.mxu0 %v1384
        %v1450 = vpop.f32.mrf.mxu0
        %v1451 = vadd.f32 %v1387, %v1450
        %v1452 = vpop.f32.mrf.mxu0
        %v1453 = vadd.f32 %v1387, %v1452
        %1454 = vmatmul.bf16.gmra.mxu0 %v1385
        %v1455 = vpop.f32.mrf.mxu0
        %v1456 = vadd.f32 %v1387, %v1455
        %v1457 = vpop.f32.mrf.mxu0
        %v1458 = vadd.f32 %v1387, %v1457
        %1459 = vmatmul.bf16.gmra.mxu0 %v1386
        %v1460 = vpop.f32.mrf.mxu0
        %v1461 = vadd.f32 %v1387, %v1460
        %v1462 = vpop.f32.mrf.mxu0
        %v1463 = vadd.f32 %v1387, %v1462
        %1464 = vdwg.mxu0
        %v1465 = vadd.f32 %v1240, %v1446
        %v1466 = vadd.f32 %v1242, %v1448
        %v1467 = vadd.f32 %v1245, %v1451
        %v1468 = vadd.f32 %v1247, %v1453
        %v1469 = vadd.f32 %v1250, %v1456
        %v1470 = vadd.f32 %v1252, %v1458
        %v1471 = vadd.f32 %v1255, %v1461
        %v1472 = vadd.f32 %v1257, %v1463
        %v1473 = vmax.f32 %v1465, 0.0
        %v1474 = vmax.f32 %v1466, 0.0
        %v1475 = vmax.f32 %v1467, 0.0
        %v1476 = vmax.f32 %v1468, 0.0
        %v1477 = vmax.f32 %v1469, 0.0
        %v1478 = vmax.f32 %v1470, 0.0
        %v1479 = vmax.f32 %v1471, 0.0
        %v1480 = vmax.f32 %v1472, 0.0
        %v1481 = vld [vmem:[#allocation14] sm:$0xf]
        %v1482 = vld [vmem:[#allocation14 + $0x4] sm:$0xf]
        %v1483 = vld [vmem:[#allocation14 + $0x8] sm:$0xf]
        %v1484 = vld [vmem:[#allocation14 + $0xc] sm:$0xf]
        %v1485 = vld [vmem:[#allocation14 + $0x10] sm:$0xf]
        %v1486 = vld [vmem:[#allocation14 + $0x14] sm:$0xf]
        %v1487 = vld [vmem:[#allocation14 + $0x18] sm:$0xf]
        %v1488 = vld [vmem:[#allocation14 + $0x1c] sm:$0xf]
        %v1489 = vld [vmem:[#allocation14 + $0x20] sm:$0xf]
        %v1490 = vld [vmem:[#allocation14 + $0x24] sm:$0xf]
        %v1491 = vld [vmem:[#allocation14 + $0x28] sm:$0xf]
        %v1492 = vld [vmem:[#allocation14 + $0x2c] sm:$0xf]
        %v1493 = vld [vmem:[#allocation14 + $0x30] sm:$0xf]
        %v1494 = vld [vmem:[#allocation14 + $0x34] sm:$0xf]
        %v1495 = vld [vmem:[#allocation14 + $0x38] sm:$0xf]
        %v1496 = vld [vmem:[#allocation14 + $0x3c] sm:$0xf]
        %v1497 = vld [vmem:[#allocation26 + $0x6] sm:$0x1]
        %v1498 = vpack.c.bf16 %v1474, %v1473
        %v1499 = vpack.c.bf16 %v1476, %v1475
        %v1500 = vpack.c.bf16 %v1478, %v1477
        %v1501 = vpack.c.bf16 %v1480, %v1479
        %v1502 = vperm.slane %v1497, 0
        %v1519 = vunpack.c.l.b16 %v1481
        %v1520 = vunpack.c.l.b16 %v1482
        %v1521 = vunpack.c.l.b16 %v1483
        %v1522 = vunpack.c.l.b16 %v1484
        %v1523 = vunpack.c.l.b16 %v1485
        %v1524 = vunpack.c.l.b16 %v1486
        %v1525 = vunpack.c.l.b16 %v1487
        %v1526 = vunpack.c.l.b16 %v1488
        %v1527 = vunpack.c.l.b16 %v1489
        %v1528 = vunpack.c.l.b16 %v1490
        %v1529 = vunpack.c.l.b16 %v1491
        %v1530 = vunpack.c.l.b16 %v1492
        %v1531 = vunpack.c.l.b16 %v1493
        %v1532 = vunpack.c.l.b16 %v1494
        %v1533 = vunpack.c.l.b16 %v1495
        %v1534 = vunpack.c.l.b16 %v1496
        %v1535 = vpack.c.b16 %v1520, %v1519
        %v1536 = vpack.c.b16 %v1522, %v1521
        %v1537 = vpack.c.b16 %v1524, %v1523
        %v1538 = vpack.c.b16 %v1526, %v1525
        %v1539 = vpack.c.b16 %v1528, %v1527
        %v1540 = vpack.c.b16 %v1530, %v1529
        %v1541 = vpack.c.b16 %v1532, %v1531
        %v1542 = vpack.c.b16 %v1534, %v1533
        %1551 = vmatpush.bf16.msra.mxu0 %v1542
        %1552 = vmatpush.bf16.msra.mxu0 %v1541
        %1553 = vmatpush.bf16.msra.mxu0 %v1540
        %1554 = vmatpush.bf16.msra.mxu0 %v1539
        %1555 = vmatpush.bf16.msra.mxu0 %v1538
        %1556 = vmatpush.bf16.msra.mxu0 %v1537
        %1557 = vmatpush.bf16.msra.mxu0 %v1536
        %1558 = vmatpush.bf16.msra.mxu0 %v1535
        %1559 = vmatmul.bf16.gmra.mxu0 %v1498
        %v1560 = vpop.f32.mrf.mxu0
        %v1561 = vadd.f32 %v1502, %v1560
        %v1562 = vpop.f32.mrf.mxu0
        %v1563 = vadd.f32 %v1502, %v1562
        %1564 = vmatmul.bf16.gmra.mxu0 %v1499
        %v1565 = vpop.f32.mrf.mxu0
        %v1566 = vadd.f32 %v1502, %v1565
        %v1567 = vpop.f32.mrf.mxu0
        %v1568 = vadd.f32 %v1502, %v1567
        %1569 = vmatmul.bf16.gmra.mxu0 %v1500
        %v1570 = vpop.f32.mrf.mxu0
        %v1571 = vadd.f32 %v1502, %v1570
        %v1572 = vpop.f32.mrf.mxu0
        %v1573 = vadd.f32 %v1502, %v1572
        %1574 = vmatmul.bf16.gmra.mxu0 %v1501
        %v1575 = vpop.f32.mrf.mxu0
        %v1576 = vadd.f32 %v1502, %v1575
        %v1577 = vpop.f32.mrf.mxu0
        %v1578 = vadd.f32 %v1502, %v1577
        %1579 = vdwg.mxu0
        %1580 = vmax.xlane.f32.xlu0 %v1561
        %v1581 = vpop.xlane.xlu0 %1580
        %1582 = vmax.xlane.f32.xlu0 %v1563
        %v1583 = vpop.xlane.xlu0 %1582
        %1584 = vmax.xlane.f32.xlu0 %v1566
        %v1585 = vpop.xlane.xlu0 %1584
        %1586 = vmax.xlane.f32.xlu0 %v1568
        %v1587 = vpop.xlane.xlu0 %1586
        %1588 = vmax.xlane.f32.xlu0 %v1571
        %v1589 = vpop.xlane.xlu0 %1588
        %1590 = vmax.xlane.f32.xlu0 %v1573
        %v1591 = vpop.xlane.xlu0 %1590
        %1592 = vmax.xlane.f32.xlu0 %v1576
        %v1593 = vpop.xlane.xlu0 %1592
        %1594 = vmax.xlane.f32.xlu0 %v1578
        %v1595 = vpop.xlane.xlu0 %1594
        %v1596 = vsub.f32 %v1561, %v1581
        %v1597 = vsub.f32 %v1563, %v1583
        %v1598 = vsub.f32 %v1566, %v1585
        %v1599 = vsub.f32 %v1568, %v1587
        %v1600 = vsub.f32 %v1571, %v1589
        %v1601 = vsub.f32 %v1573, %v1591
        %v1602 = vsub.f32 %v1576, %v1593
        %v1603 = vsub.f32 %v1578, %v1595
        %v1604 = vmul.f32 %v1596, 1.442695
        %v1605 = vpow.pop %v1604
        %v1606 = vmul.f32 %v1597, 1.442695
        %v1607 = vpow.pop %v1606
        %v1608 = vmul.f32 %v1598, 1.442695
        %v1609 = vpow.pop %v1608
        %v1610 = vmul.f32 %v1599, 1.442695
        %v1611 = vpow.pop %v1610
        %v1612 = vmul.f32 %v1600, 1.442695
        %v1613 = vpow.pop %v1612
        %v1614 = vmul.f32 %v1601, 1.442695
        %v1615 = vpow.pop %v1614
        %v1616 = vmul.f32 %v1602, 1.442695
        %v1617 = vpow.pop %v1616
        %v1618 = vmul.f32 %v1603, 1.442695
        %v1619 = vpow.pop %v1618
        %1620 = vadd.xlane.f32.xlu0 %v1605
        %v1621 = vpop.xlane.xlu0 %1620
        %1622 = vadd.xlane.f32.xlu0 %v1607
        %v1623 = vpop.xlane.xlu0 %1622
        %1624 = vadd.xlane.f32.xlu0 %v1609
        %v1625 = vpop.xlane.xlu0 %1624
        %1626 = vadd.xlane.f32.xlu0 %v1611
        %v1627 = vpop.xlane.xlu0 %1626
        %1628 = vadd.xlane.f32.xlu0 %v1613
        %v1629 = vpop.xlane.xlu0 %1628
        %1630 = vadd.xlane.f32.xlu0 %v1615
        %v1631 = vpop.xlane.xlu0 %1630
        %1632 = vadd.xlane.f32.xlu0 %v1617
        %v1633 = vpop.xlane.xlu0 %1632
        %1634 = vadd.xlane.f32.xlu0 %v1619
        %v1635 = vpop.xlane.xlu0 %1634
        %v1636 = vrcp.pop %v1621
        %v1637 = vmul.f32 %v1621, %v1636
        %v1638 = vsub.f32 1.0, %v1637
        %v1639 = vmul.f32 %v1636, %v1638
        %v1640 = vadd.f32 %v1636, %v1639
        %vm1641 = vweird.f32 %v1621
        %vm1642 = vweird.f32 %v1636
        %vm1643 = vmor %vm1641, %vm1642
        %v1644 = vsel %vm1643, %v1636, %v1640
        %v1645 = vand.u32 2147483647, %v1621
        %vm1646 = vcmp.eq.f32.partialorder %v1645, 8.507059e+37
        %v1647 = vand.u32 %v1621, 2147483648
        %v1648 = vor.u32 1.1754944e-38, %v1647
        %v1649 = vsel %vm1646, %v1648, %v1644
        %v1650 = vmul.f32 %v1605, %v1649
        %v1651 = vrcp.pop %v1623
        %v1652 = vmul.f32 %v1623, %v1651
        %v1653 = vsub.f32 1.0, %v1652
        %v1654 = vmul.f32 %v1651, %v1653
        %v1655 = vadd.f32 %v1651, %v1654
        %vm1656 = vweird.f32 %v1623
        %vm1657 = vweird.f32 %v1651
        %vm1658 = vmor %vm1656, %vm1657
        %v1659 = vsel %vm1658, %v1651, %v1655
        %v1660 = vand.u32 2147483647, %v1623
        %vm1661 = vcmp.eq.f32.partialorder %v1660, 8.507059e+37
        %v1662 = vand.u32 %v1623, 2147483648
        %v1663 = vor.u32 1.1754944e-38, %v1662
        %v1664 = vsel %vm1661, %v1663, %v1659
        %v1665 = vmul.f32 %v1607, %v1664
        %v1666 = vrcp.pop %v1625
        %v1667 = vmul.f32 %v1625, %v1666
        %v1668 = vsub.f32 1.0, %v1667
        %v1669 = vmul.f32 %v1666, %v1668
        %v1670 = vadd.f32 %v1666, %v1669
        %vm1671 = vweird.f32 %v1625
        %vm1672 = vweird.f32 %v1666
        %vm1673 = vmor %vm1671, %vm1672
        %v1674 = vsel %vm1673, %v1666, %v1670
        %v1675 = vand.u32 2147483647, %v1625
        %vm1676 = vcmp.eq.f32.partialorder %v1675, 8.507059e+37
        %v1677 = vand.u32 %v1625, 2147483648
        %v1678 = vor.u32 1.1754944e-38, %v1677
        %v1679 = vsel %vm1676, %v1678, %v1674
        %v1680 = vmul.f32 %v1609, %v1679
        %v1681 = vrcp.pop %v1627
        %v1682 = vmul.f32 %v1627, %v1681
        %v1683 = vsub.f32 1.0, %v1682
        %v1684 = vmul.f32 %v1681, %v1683
        %v1685 = vadd.f32 %v1681, %v1684
        %vm1686 = vweird.f32 %v1627
        %vm1687 = vweird.f32 %v1681
        %vm1688 = vmor %vm1686, %vm1687
        %v1689 = vsel %vm1688, %v1681, %v1685
        %v1690 = vand.u32 2147483647, %v1627
        %vm1691 = vcmp.eq.f32.partialorder %v1690, 8.507059e+37
        %v1692 = vand.u32 %v1627, 2147483648
        %v1693 = vor.u32 1.1754944e-38, %v1692
        %v1694 = vsel %vm1691, %v1693, %v1689
        %v1695 = vmul.f32 %v1611, %v1694
        %v1696 = vrcp.pop %v1629
        %v1697 = vmul.f32 %v1629, %v1696
        %v1698 = vsub.f32 1.0, %v1697
        %v1699 = vmul.f32 %v1696, %v1698
        %v1700 = vadd.f32 %v1696, %v1699
        %vm1701 = vweird.f32 %v1629
        %vm1702 = vweird.f32 %v1696
        %vm1703 = vmor %vm1701, %vm1702
        %v1704 = vsel %vm1703, %v1696, %v1700
        %v1705 = vand.u32 2147483647, %v1629
        %vm1706 = vcmp.eq.f32.partialorder %v1705, 8.507059e+37
        %v1707 = vand.u32 %v1629, 2147483648
        %v1708 = vor.u32 1.1754944e-38, %v1707
        %v1709 = vsel %vm1706, %v1708, %v1704
        %v1710 = vmul.f32 %v1613, %v1709
        %v1711 = vrcp.pop %v1631
        %v1712 = vmul.f32 %v1631, %v1711
        %v1713 = vsub.f32 1.0, %v1712
        %v1714 = vmul.f32 %v1711, %v1713
        %v1715 = vadd.f32 %v1711, %v1714
        %vm1716 = vweird.f32 %v1631
        %vm1717 = vweird.f32 %v1711
        %vm1718 = vmor %vm1716, %vm1717
        %v1719 = vsel %vm1718, %v1711, %v1715
        %v1720 = vand.u32 2147483647, %v1631
        %vm1721 = vcmp.eq.f32.partialorder %v1720, 8.507059e+37
        %v1722 = vand.u32 %v1631, 2147483648
        %v1723 = vor.u32 1.1754944e-38, %v1722
        %v1724 = vsel %vm1721, %v1723, %v1719
        %v1725 = vmul.f32 %v1615, %v1724
        %v1726 = vrcp.pop %v1633
        %v1727 = vmul.f32 %v1633, %v1726
        %v1728 = vsub.f32 1.0, %v1727
        %v1729 = vmul.f32 %v1726, %v1728
        %v1730 = vadd.f32 %v1726, %v1729
        %vm1731 = vweird.f32 %v1633
        %vm1732 = vweird.f32 %v1726
        %vm1733 = vmor %vm1731, %vm1732
        %v1734 = vsel %vm1733, %v1726, %v1730
        %v1735 = vand.u32 2147483647, %v1633
        %vm1736 = vcmp.eq.f32.partialorder %v1735, 8.507059e+37
        %v1737 = vand.u32 %v1633, 2147483648
        %v1738 = vor.u32 1.1754944e-38, %v1737
        %v1739 = vsel %vm1736, %v1738, %v1734
        %v1740 = vmul.f32 %v1617, %v1739
        %v1741 = vrcp.pop %v1635
        %v1742 = vmul.f32 %v1635, %v1741
        %v1743 = vsub.f32 1.0, %v1742
        %v1744 = vmul.f32 %v1741, %v1743
        %v1745 = vadd.f32 %v1741, %v1744
        %vm1746 = vweird.f32 %v1635
        %vm1747 = vweird.f32 %v1741
        %vm1748 = vmor %vm1746, %vm1747
        %v1749 = vsel %vm1748, %v1741, %v1745
        %v1750 = vand.u32 2147483647, %v1635
        %vm1751 = vcmp.eq.f32.partialorder %v1750, 8.507059e+37
        %v1752 = vand.u32 %v1635, 2147483648
        %v1753 = vor.u32 1.1754944e-38, %v1752
        %v1754 = vsel %vm1751, %v1753, %v1749
        %v1755 = vmul.f32 %v1619, %v1754
        %v1756 = vld [vmem:[#allocation16] sm:$0xf]
        %v1757 = vld [vmem:[#allocation16 + $0x4] sm:$0xf]
        %v1758 = vld [vmem:[#allocation16 + $0x8] sm:$0xf]
        %v1759 = vld [vmem:[#allocation16 + $0xc] sm:$0xf]
        %v1760 = vld [vmem:[#allocation16 + $0x10] sm:$0xf]
        %v1761 = vld [vmem:[#allocation16 + $0x14] sm:$0xf]
        %v1762 = vld [vmem:[#allocation16 + $0x18] sm:$0xf]
        %v1763 = vld [vmem:[#allocation16 + $0x1c] sm:$0xf]
        %v1764 = vld [vmem:[#allocation16 + $0x20] sm:$0xf]
        %v1765 = vld [vmem:[#allocation16 + $0x24] sm:$0xf]
        %v1766 = vld [vmem:[#allocation16 + $0x28] sm:$0xf]
        %v1767 = vld [vmem:[#allocation16 + $0x2c] sm:$0xf]
        %v1768 = vld [vmem:[#allocation16 + $0x30] sm:$0xf]
        %v1769 = vld [vmem:[#allocation16 + $0x34] sm:$0xf]
        %v1770 = vld [vmem:[#allocation16 + $0x38] sm:$0xf]
        %v1771 = vld [vmem:[#allocation16 + $0x3c] sm:$0xf]
        %v1772 = vld [vmem:[#allocation26 + $0x7] sm:$0x1]
        %v1773 = vpack.c.bf16 %v1665, %v1650
        %v1774 = vpack.c.bf16 %v1695, %v1680
        %v1775 = vpack.c.bf16 %v1725, %v1710
        %v1776 = vpack.c.bf16 %v1755, %v1740
        %v1777 = vperm.slane %v1772, 0
        %v1794 = vunpack.c.l.b16 %v1756
        %v1795 = vunpack.c.l.b16 %v1757
        %v1796 = vunpack.c.l.b16 %v1758
        %v1797 = vunpack.c.l.b16 %v1759
        %v1798 = vunpack.c.l.b16 %v1760
        %v1799 = vunpack.c.l.b16 %v1761
        %v1800 = vunpack.c.l.b16 %v1762
        %v1801 = vunpack.c.l.b16 %v1763
        %v1802 = vunpack.c.l.b16 %v1764
        %v1803 = vunpack.c.l.b16 %v1765
        %v1804 = vunpack.c.l.b16 %v1766
        %v1805 = vunpack.c.l.b16 %v1767
        %v1806 = vunpack.c.l.b16 %v1768
        %v1807 = vunpack.c.l.b16 %v1769
        %v1808 = vunpack.c.l.b16 %v1770
        %v1809 = vunpack.c.l.b16 %v1771
        %v1810 = vpack.c.b16 %v1795, %v1794
        %v1811 = vpack.c.b16 %v1797, %v1796
        %v1812 = vpack.c.b16 %v1799, %v1798
        %v1813 = vpack.c.b16 %v1801, %v1800
        %v1814 = vpack.c.b16 %v1803, %v1802
        %v1815 = vpack.c.b16 %v1805, %v1804
        %v1816 = vpack.c.b16 %v1807, %v1806
        %v1817 = vpack.c.b16 %v1809, %v1808
        %1826 = vmatpush.bf16.msra.mxu0 %v1817
        %1827 = vmatpush.bf16.msra.mxu0 %v1816
        %1828 = vmatpush.bf16.msra.mxu0 %v1815
        %1829 = vmatpush.bf16.msra.mxu0 %v1814
        %1830 = vmatpush.bf16.msra.mxu0 %v1813
        %1831 = vmatpush.bf16.msra.mxu0 %v1812
        %1832 = vmatpush.bf16.msra.mxu0 %v1811
        %1833 = vmatpush.bf16.msra.mxu0 %v1810
        %1834 = vmatmul.bf16.gmra.mxu0 %v1773
        %v1835 = vpop.f32.mrf.mxu0
        %v1836 = vadd.f32 %v1777, %v1835
        %v1837 = vpop.f32.mrf.mxu0
        %v1838 = vadd.f32 %v1777, %v1837
        %1839 = vmatmul.bf16.gmra.mxu0 %v1774
        %v1840 = vpop.f32.mrf.mxu0
        %v1841 = vadd.f32 %v1777, %v1840
        %v1842 = vpop.f32.mrf.mxu0
        %v1843 = vadd.f32 %v1777, %v1842
        %1844 = vmatmul.bf16.gmra.mxu0 %v1775
        %v1845 = vpop.f32.mrf.mxu0
        %v1846 = vadd.f32 %v1777, %v1845
        %v1847 = vpop.f32.mrf.mxu0
        %v1848 = vadd.f32 %v1777, %v1847
        %1849 = vmatmul.bf16.gmra.mxu0 %v1776
        %v1850 = vpop.f32.mrf.mxu0
        %v1851 = vadd.f32 %v1777, %v1850
        %v1852 = vpop.f32.mrf.mxu0
        %v1853 = vadd.f32 %v1777, %v1852
        %1854 = vdwg.mxu0
        %v1855 = vld [vmem:[#allocation17] sm:$0xf]
        %v1856 = vld [vmem:[#allocation17 + $0x4] sm:$0xf]
        %v1857 = vld [vmem:[#allocation17 + $0x8] sm:$0xf]
        %v1858 = vld [vmem:[#allocation17 + $0xc] sm:$0xf]
        %v1859 = vld [vmem:[#allocation17 + $0x10] sm:$0xf]
        %v1860 = vld [vmem:[#allocation17 + $0x14] sm:$0xf]
        %v1861 = vld [vmem:[#allocation17 + $0x18] sm:$0xf]
        %v1862 = vld [vmem:[#allocation17 + $0x1c] sm:$0xf]
        %v1863 = vld [vmem:[#allocation17 + $0x20] sm:$0xf]
        %v1864 = vld [vmem:[#allocation17 + $0x24] sm:$0xf]
        %v1865 = vld [vmem:[#allocation17 + $0x28] sm:$0xf]
        %v1866 = vld [vmem:[#allocation17 + $0x2c] sm:$0xf]
        %v1867 = vld [vmem:[#allocation17 + $0x30] sm:$0xf]
        %v1868 = vld [vmem:[#allocation17 + $0x34] sm:$0xf]
        %v1869 = vld [vmem:[#allocation17 + $0x38] sm:$0xf]
        %v1870 = vld [vmem:[#allocation17 + $0x3c] sm:$0xf]
        %v1871 = vld [vmem:[#allocation26 + $0x8] sm:$0x1]
        %v1872 = vpack.c.bf16 %v1838, %v1836
        %v1873 = vpack.c.bf16 %v1843, %v1841
        %v1874 = vpack.c.bf16 %v1848, %v1846
        %v1875 = vpack.c.bf16 %v1853, %v1851
        %v1876 = vperm.slane %v1871, 0
        %v1893 = vunpack.c.l.b16 %v1855
        %v1894 = vunpack.c.l.b16 %v1856
        %v1895 = vunpack.c.l.b16 %v1857
        %v1896 = vunpack.c.l.b16 %v1858
        %v1897 = vunpack.c.l.b16 %v1859
        %v1898 = vunpack.c.l.b16 %v1860
        %v1899 = vunpack.c.l.b16 %v1861
        %v1900 = vunpack.c.l.b16 %v1862
        %v1901 = vunpack.c.l.b16 %v1863
        %v1902 = vunpack.c.l.b16 %v1864
        %v1903 = vunpack.c.l.b16 %v1865
        %v1904 = vunpack.c.l.b16 %v1866
        %v1905 = vunpack.c.l.b16 %v1867
        %v1906 = vunpack.c.l.b16 %v1868
        %v1907 = vunpack.c.l.b16 %v1869
        %v1908 = vunpack.c.l.b16 %v1870
        %v1909 = vpack.c.b16 %v1894, %v1893
        %v1910 = vpack.c.b16 %v1896, %v1895
        %v1911 = vpack.c.b16 %v1898, %v1897
        %v1912 = vpack.c.b16 %v1900, %v1899
        %v1913 = vpack.c.b16 %v1902, %v1901
        %v1914 = vpack.c.b16 %v1904, %v1903
        %v1915 = vpack.c.b16 %v1906, %v1905
        %v1916 = vpack.c.b16 %v1908, %v1907
        %1925 = vmatpush.bf16.msra.mxu0 %v1916
        %1926 = vmatpush.bf16.msra.mxu0 %v1915
        %1927 = vmatpush.bf16.msra.mxu0 %v1914
        %1928 = vmatpush.bf16.msra.mxu0 %v1913
        %1929 = vmatpush.bf16.msra.mxu0 %v1912
        %1930 = vmatpush.bf16.msra.mxu0 %v1911
        %1931 = vmatpush.bf16.msra.mxu0 %v1910
        %1932 = vmatpush.bf16.msra.mxu0 %v1909
        %1933 = vmatmul.bf16.gmra.mxu0 %v1872
        %v1934 = vpop.f32.mrf.mxu0
        %v1935 = vadd.f32 %v1876, %v1934
        %v1936 = vpop.f32.mrf.mxu0
        %v1937 = vadd.f32 %v1876, %v1936
        %1938 = vmatmul.bf16.gmra.mxu0 %v1873
        %v1939 = vpop.f32.mrf.mxu0
        %v1940 = vadd.f32 %v1876, %v1939
        %v1941 = vpop.f32.mrf.mxu0
        %v1942 = vadd.f32 %v1876, %v1941
        %1943 = vmatmul.bf16.gmra.mxu0 %v1874
        %v1944 = vpop.f32.mrf.mxu0
        %v1945 = vadd.f32 %v1876, %v1944
        %v1946 = vpop.f32.mrf.mxu0
        %v1947 = vadd.f32 %v1876, %v1946
        %1948 = vmatmul.bf16.gmra.mxu0 %v1875
        %v1949 = vpop.f32.mrf.mxu0
        %v1950 = vadd.f32 %v1876, %v1949
        %v1951 = vpop.f32.mrf.mxu0
        %v1952 = vadd.f32 %v1876, %v1951
        %1953 = vdwg.mxu0
        %v1954 = vmax.f32 %v1935, 0.0
        %v1955 = vmax.f32 %v1937, 0.0
        %v1956 = vmax.f32 %v1940, 0.0
        %v1957 = vmax.f32 %v1942, 0.0
        %v1958 = vmax.f32 %v1945, 0.0
        %v1959 = vmax.f32 %v1947, 0.0
        %v1960 = vmax.f32 %v1950, 0.0
        %v1961 = vmax.f32 %v1952, 0.0
        %v1962 = vld [vmem:[#allocation19] sm:$0xf]
        %v1963 = vld [vmem:[#allocation19 + $0x4] sm:$0xf]
        %v1964 = vld [vmem:[#allocation19 + $0x8] sm:$0xf]
        %v1965 = vld [vmem:[#allocation19 + $0xc] sm:$0xf]
        %v1966 = vld [vmem:[#allocation19 + $0x10] sm:$0xf]
        %v1967 = vld [vmem:[#allocation19 + $0x14] sm:$0xf]
        %v1968 = vld [vmem:[#allocation19 + $0x18] sm:$0xf]
        %v1969 = vld [vmem:[#allocation19 + $0x1c] sm:$0xf]
        %v1970 = vld [vmem:[#allocation19 + $0x20] sm:$0xf]
        %v1971 = vld [vmem:[#allocation19 + $0x24] sm:$0xf]
        %v1972 = vld [vmem:[#allocation19 + $0x28] sm:$0xf]
        %v1973 = vld [vmem:[#allocation19 + $0x2c] sm:$0xf]
        %v1974 = vld [vmem:[#allocation19 + $0x30] sm:$0xf]
        %v1975 = vld [vmem:[#allocation19 + $0x34] sm:$0xf]
        %v1976 = vld [vmem:[#allocation19 + $0x38] sm:$0xf]
        %v1977 = vld [vmem:[#allocation19 + $0x3c] sm:$0xf]
        %v1978 = vld [vmem:[#allocation26 + $0x9] sm:$0x1]
        %v1979 = vpack.c.bf16 %v1955, %v1954
        %v1980 = vpack.c.bf16 %v1957, %v1956
        %v1981 = vpack.c.bf16 %v1959, %v1958
        %v1982 = vpack.c.bf16 %v1961, %v1960
        %v1983 = vperm.slane %v1978, 0
        %v2000 = vunpack.c.l.b16 %v1962
        %v2001 = vunpack.c.l.b16 %v1963
        %v2002 = vunpack.c.l.b16 %v1964
        %v2003 = vunpack.c.l.b16 %v1965
        %v2004 = vunpack.c.l.b16 %v1966
        %v2005 = vunpack.c.l.b16 %v1967
        %v2006 = vunpack.c.l.b16 %v1968
        %v2007 = vunpack.c.l.b16 %v1969
        %v2008 = vunpack.c.l.b16 %v1970
        %v2009 = vunpack.c.l.b16 %v1971
        %v2010 = vunpack.c.l.b16 %v1972
        %v2011 = vunpack.c.l.b16 %v1973
        %v2012 = vunpack.c.l.b16 %v1974
        %v2013 = vunpack.c.l.b16 %v1975
        %v2014 = vunpack.c.l.b16 %v1976
        %v2015 = vunpack.c.l.b16 %v1977
        %v2016 = vpack.c.b16 %v2001, %v2000
        %v2017 = vpack.c.b16 %v2003, %v2002
        %v2018 = vpack.c.b16 %v2005, %v2004
        %v2019 = vpack.c.b16 %v2007, %v2006
        %v2020 = vpack.c.b16 %v2009, %v2008
        %v2021 = vpack.c.b16 %v2011, %v2010
        %v2022 = vpack.c.b16 %v2013, %v2012
        %v2023 = vpack.c.b16 %v2015, %v2014
        %2032 = vmatpush.bf16.msra.mxu0 %v2023
        %2033 = vmatpush.bf16.msra.mxu0 %v2022
        %2034 = vmatpush.bf16.msra.mxu0 %v2021
        %2035 = vmatpush.bf16.msra.mxu0 %v2020
        %2036 = vmatpush.bf16.msra.mxu0 %v2019
        %2037 = vmatpush.bf16.msra.mxu0 %v2018
        %2038 = vmatpush.bf16.msra.mxu0 %v2017
        %2039 = vmatpush.bf16.msra.mxu0 %v2016
        %2040 = vmatmul.bf16.gmra.mxu0 %v1979
        %v2041 = vpop.f32.mrf.mxu0
        %v2042 = vadd.f32 %v1983, %v2041
        %v2043 = vpop.f32.mrf.mxu0
        %v2044 = vadd.f32 %v1983, %v2043
        %2045 = vmatmul.bf16.gmra.mxu0 %v1980
        %v2046 = vpop.f32.mrf.mxu0
        %v2047 = vadd.f32 %v1983, %v2046
        %v2048 = vpop.f32.mrf.mxu0
        %v2049 = vadd.f32 %v1983, %v2048
        %2050 = vmatmul.bf16.gmra.mxu0 %v1981
        %v2051 = vpop.f32.mrf.mxu0
        %v2052 = vadd.f32 %v1983, %v2051
        %v2053 = vpop.f32.mrf.mxu0
        %v2054 = vadd.f32 %v1983, %v2053
        %2055 = vmatmul.bf16.gmra.mxu0 %v1982
        %v2056 = vpop.f32.mrf.mxu0
        %v2057 = vadd.f32 %v1983, %v2056
        %v2058 = vpop.f32.mrf.mxu0
        %v2059 = vadd.f32 %v1983, %v2058
        %2060 = vdwg.mxu0
        %v2061 = vadd.f32 %v1836, %v2042
        %v2062 = vadd.f32 %v1838, %v2044
        %v2063 = vadd.f32 %v1841, %v2047
        %v2064 = vadd.f32 %v1843, %v2049
        %v2065 = vadd.f32 %v1846, %v2052
        %v2066 = vadd.f32 %v1848, %v2054
        %v2067 = vadd.f32 %v1851, %v2057
        %v2068 = vadd.f32 %v1853, %v2059
        %v2069 = vmax.f32 %v2061, 0.0
        %v2070 = vmax.f32 %v2062, 0.0
        %v2071 = vmax.f32 %v2063, 0.0
        %v2072 = vmax.f32 %v2064, 0.0
        %v2073 = vmax.f32 %v2065, 0.0
        %v2074 = vmax.f32 %v2066, 0.0
        %v2075 = vmax.f32 %v2067, 0.0
        %v2076 = vmax.f32 %v2068, 0.0
        %v2077 = vld [vmem:[#allocation20] sm:$0xf]
        %v2078 = vld [vmem:[#allocation20 + $0x4] sm:$0xf]
        %v2079 = vld [vmem:[#allocation20 + $0x8] sm:$0xf]
        %v2080 = vld [vmem:[#allocation20 + $0xc] sm:$0xf]
        %v2081 = vld [vmem:[#allocation20 + $0x10] sm:$0xf]
        %v2082 = vld [vmem:[#allocation20 + $0x14] sm:$0xf]
        %v2083 = vld [vmem:[#allocation20 + $0x18] sm:$0xf]
        %v2084 = vld [vmem:[#allocation20 + $0x1c] sm:$0xf]
        %v2085 = vld [vmem:[#allocation20 + $0x20] sm:$0xf]
        %v2086 = vld [vmem:[#allocation20 + $0x24] sm:$0xf]
        %v2087 = vld [vmem:[#allocation20 + $0x28] sm:$0xf]
        %v2088 = vld [vmem:[#allocation20 + $0x2c] sm:$0xf]
        %v2089 = vld [vmem:[#allocation20 + $0x30] sm:$0xf]
        %v2090 = vld [vmem:[#allocation20 + $0x34] sm:$0xf]
        %v2091 = vld [vmem:[#allocation20 + $0x38] sm:$0xf]
        %v2092 = vld [vmem:[#allocation20 + $0x3c] sm:$0xf]
        %v2093 = vld [vmem:[#allocation26 + $0xa] sm:$0x1]
        %v2094 = vpack.c.bf16 %v2070, %v2069
        %v2095 = vpack.c.bf16 %v2072, %v2071
        %v2096 = vpack.c.bf16 %v2074, %v2073
        %v2097 = vpack.c.bf16 %v2076, %v2075
        %v2098 = vperm.slane %v2093, 0
        %v2115 = vunpack.c.l.b16 %v2077
        %v2116 = vunpack.c.l.b16 %v2078
        %v2117 = vunpack.c.l.b16 %v2079
        %v2118 = vunpack.c.l.b16 %v2080
        %v2119 = vunpack.c.l.b16 %v2081
        %v2120 = vunpack.c.l.b16 %v2082
        %v2121 = vunpack.c.l.b16 %v2083
        %v2122 = vunpack.c.l.b16 %v2084
        %v2123 = vunpack.c.l.b16 %v2085
        %v2124 = vunpack.c.l.b16 %v2086
        %v2125 = vunpack.c.l.b16 %v2087
        %v2126 = vunpack.c.l.b16 %v2088
        %v2127 = vunpack.c.l.b16 %v2089
        %v2128 = vunpack.c.l.b16 %v2090
        %v2129 = vunpack.c.l.b16 %v2091
        %v2130 = vunpack.c.l.b16 %v2092
        %v2131 = vpack.c.b16 %v2116, %v2115
        %v2132 = vpack.c.b16 %v2118, %v2117
        %v2133 = vpack.c.b16 %v2120, %v2119
        %v2134 = vpack.c.b16 %v2122, %v2121
        %v2135 = vpack.c.b16 %v2124, %v2123
        %v2136 = vpack.c.b16 %v2126, %v2125
        %v2137 = vpack.c.b16 %v2128, %v2127
        %v2138 = vpack.c.b16 %v2130, %v2129
        %2147 = vmatpush.bf16.msra.mxu0 %v2138
        %2148 = vmatpush.bf16.msra.mxu0 %v2137
        %2149 = vmatpush.bf16.msra.mxu0 %v2136
        %2150 = vmatpush.bf16.msra.mxu0 %v2135
        %2151 = vmatpush.bf16.msra.mxu0 %v2134
        %2152 = vmatpush.bf16.msra.mxu0 %v2133
        %2153 = vmatpush.bf16.msra.mxu0 %v2132
        %2154 = vmatpush.bf16.msra.mxu0 %v2131
        %2155 = vmatmul.bf16.gmra.mxu0 %v2094
        %v2156 = vpop.f32.mrf.mxu0
        %v2157 = vadd.f32 %v2098, %v2156
        %v2158 = vpop.f32.mrf.mxu0
        %v2159 = vadd.f32 %v2098, %v2158
        %2160 = vmatmul.bf16.gmra.mxu0 %v2095
        %v2161 = vpop.f32.mrf.mxu0
        %v2162 = vadd.f32 %v2098, %v2161
        %v2163 = vpop.f32.mrf.mxu0
        %v2164 = vadd.f32 %v2098, %v2163
        %2165 = vmatmul.bf16.gmra.mxu0 %v2096
        %v2166 = vpop.f32.mrf.mxu0
        %v2167 = vadd.f32 %v2098, %v2166
        %v2168 = vpop.f32.mrf.mxu0
        %v2169 = vadd.f32 %v2098, %v2168
        %2170 = vmatmul.bf16.gmra.mxu0 %v2097
        %v2171 = vpop.f32.mrf.mxu0
        %v2172 = vadd.f32 %v2098, %v2171
        %v2173 = vpop.f32.mrf.mxu0
        %v2174 = vadd.f32 %v2098, %v2173
        %2175 = vdwg.mxu0
        %v2176 = vld [vmem:[#allocation22] sm:$0xf]
        %v2177 = vld [vmem:[#allocation22 + $0x4] sm:$0xf]
        %v2178 = vld [vmem:[#allocation22 + $0x8] sm:$0xf]
        %v2179 = vld [vmem:[#allocation22 + $0xc] sm:$0xf]
        %v2180 = vld [vmem:[#allocation22 + $0x10] sm:$0xf]
        %v2181 = vld [vmem:[#allocation22 + $0x14] sm:$0xf]
        %v2182 = vld [vmem:[#allocation22 + $0x18] sm:$0xf]
        %v2183 = vld [vmem:[#allocation22 + $0x1c] sm:$0xf]
        %v2184 = vld [vmem:[#allocation22 + $0x20] sm:$0xf]
        %v2185 = vld [vmem:[#allocation22 + $0x24] sm:$0xf]
        %v2186 = vld [vmem:[#allocation22 + $0x28] sm:$0xf]
        %v2187 = vld [vmem:[#allocation22 + $0x2c] sm:$0xf]
        %v2188 = vld [vmem:[#allocation22 + $0x30] sm:$0xf]
        %v2189 = vld [vmem:[#allocation22 + $0x34] sm:$0xf]
        %v2190 = vld [vmem:[#allocation22 + $0x38] sm:$0xf]
        %v2191 = vld [vmem:[#allocation22 + $0x3c] sm:$0xf]
        %v2192 = vld [vmem:[#allocation26 + $0xb] sm:$0x1]
        %v2193 = vpack.c.bf16 %v2159, %v2157
        %v2194 = vpack.c.bf16 %v2164, %v2162
        %v2195 = vpack.c.bf16 %v2169, %v2167
        %v2196 = vpack.c.bf16 %v2174, %v2172
        %v2197 = vperm.slane %v2192, 0
        %v2214 = vunpack.c.l.b16 %v2176
        %v2215 = vunpack.c.l.b16 %v2177
        %v2216 = vunpack.c.l.b16 %v2178
        %v2217 = vunpack.c.l.b16 %v2179
        %v2218 = vunpack.c.l.b16 %v2180
        %v2219 = vunpack.c.l.b16 %v2181
        %v2220 = vunpack.c.l.b16 %v2182
        %v2221 = vunpack.c.l.b16 %v2183
        %v2222 = vunpack.c.l.b16 %v2184
        %v2223 = vunpack.c.l.b16 %v2185
        %v2224 = vunpack.c.l.b16 %v2186
        %v2225 = vunpack.c.l.b16 %v2187
        %v2226 = vunpack.c.l.b16 %v2188
        %v2227 = vunpack.c.l.b16 %v2189
        %v2228 = vunpack.c.l.b16 %v2190
        %v2229 = vunpack.c.l.b16 %v2191
        %v2230 = vpack.c.b16 %v2215, %v2214
        %v2231 = vpack.c.b16 %v2217, %v2216
        %v2232 = vpack.c.b16 %v2219, %v2218
        %v2233 = vpack.c.b16 %v2221, %v2220
        %v2234 = vpack.c.b16 %v2223, %v2222
        %v2235 = vpack.c.b16 %v2225, %v2224
        %v2236 = vpack.c.b16 %v2227, %v2226
        %v2237 = vpack.c.b16 %v2229, %v2228
        %2246 = vmatpush.bf16.msra.mxu0 %v2237
        %2247 = vmatpush.bf16.msra.mxu0 %v2236
        %2248 = vmatpush.bf16.msra.mxu0 %v2235
        %2249 = vmatpush.bf16.msra.mxu0 %v2234
        %2250 = vmatpush.bf16.msra.mxu0 %v2233
        %2251 = vmatpush.bf16.msra.mxu0 %v2232
        %2252 = vmatpush.bf16.msra.mxu0 %v2231
        %2253 = vmatpush.bf16.msra.mxu0 %v2230
        %2254 = vmatmul.bf16.gmra.mxu0 %v2193
        %v2255 = vpop.f32.mrf.mxu0
        %v2256 = vadd.f32 %v2197, %v2255
        %v2257 = vpop.f32.mrf.mxu0
        %v2258 = vadd.f32 %v2197, %v2257
        %2259 = vmatmul.bf16.gmra.mxu0 %v2194
        %v2260 = vpop.f32.mrf.mxu0
        %v2261 = vadd.f32 %v2197, %v2260
        %v2262 = vpop.f32.mrf.mxu0
        %v2263 = vadd.f32 %v2197, %v2262
        %2264 = vmatmul.bf16.gmra.mxu0 %v2195
        %v2265 = vpop.f32.mrf.mxu0
        %v2266 = vadd.f32 %v2197, %v2265
        %v2267 = vpop.f32.mrf.mxu0
        %v2268 = vadd.f32 %v2197, %v2267
        %2269 = vmatmul.bf16.gmra.mxu0 %v2196
        %v2270 = vpop.f32.mrf.mxu0
        %v2271 = vadd.f32 %v2197, %v2270
        %v2272 = vpop.f32.mrf.mxu0
        %v2273 = vadd.f32 %v2197, %v2272
        %2274 = vdwg.mxu0
        %v2275 = vmax.f32 %v2256, 0.0
        %v2276 = vmax.f32 %v2258, 0.0
        %v2277 = vmax.f32 %v2261, 0.0
        %v2278 = vmax.f32 %v2263, 0.0
        %v2279 = vmax.f32 %v2266, 0.0
        %v2280 = vmax.f32 %v2268, 0.0
        %v2281 = vmax.f32 %v2271, 0.0
        %v2282 = vmax.f32 %v2273, 0.0
        %v2283 = vld [vmem:[#allocation23] sm:$0xf]
        %v2284 = vld [vmem:[#allocation23 + $0x4] sm:$0xf]
        %v2285 = vld [vmem:[#allocation23 + $0x8] sm:$0xf]
        %v2286 = vld [vmem:[#allocation23 + $0xc] sm:$0xf]
        %v2287 = vld [vmem:[#allocation23 + $0x10] sm:$0xf]
        %v2288 = vld [vmem:[#allocation23 + $0x14] sm:$0xf]
        %v2289 = vld [vmem:[#allocation23 + $0x18] sm:$0xf]
        %v2290 = vld [vmem:[#allocation23 + $0x1c] sm:$0xf]
        %v2291 = vld [vmem:[#allocation23 + $0x20] sm:$0xf]
        %v2292 = vld [vmem:[#allocation23 + $0x24] sm:$0xf]
        %v2293 = vld [vmem:[#allocation23 + $0x28] sm:$0xf]
        %v2294 = vld [vmem:[#allocation23 + $0x2c] sm:$0xf]
        %v2295 = vld [vmem:[#allocation23 + $0x30] sm:$0xf]
        %v2296 = vld [vmem:[#allocation23 + $0x34] sm:$0xf]
        %v2297 = vld [vmem:[#allocation23 + $0x38] sm:$0xf]
        %v2298 = vld [vmem:[#allocation23 + $0x3c] sm:$0xf]
        %v2299 = vld [vmem:[#allocation26 + $0xc] sm:$0x1]
        %v2300 = vpack.c.bf16 %v2276, %v2275
        %v2301 = vpack.c.bf16 %v2278, %v2277
        %v2302 = vpack.c.bf16 %v2280, %v2279
        %v2303 = vpack.c.bf16 %v2282, %v2281
        %v2304 = vperm.slane %v2299, 0
        %v2321 = vunpack.c.l.b16 %v2283
        %v2322 = vunpack.c.l.b16 %v2284
        %v2323 = vunpack.c.l.b16 %v2285
        %v2324 = vunpack.c.l.b16 %v2286
        %v2325 = vunpack.c.l.b16 %v2287
        %v2326 = vunpack.c.l.b16 %v2288
        %v2327 = vunpack.c.l.b16 %v2289
        %v2328 = vunpack.c.l.b16 %v2290
        %v2329 = vunpack.c.l.b16 %v2291
        %v2330 = vunpack.c.l.b16 %v2292
        %v2331 = vunpack.c.l.b16 %v2293
        %v2332 = vunpack.c.l.b16 %v2294
        %v2333 = vunpack.c.l.b16 %v2295
        %v2334 = vunpack.c.l.b16 %v2296
        %v2335 = vunpack.c.l.b16 %v2297
        %v2336 = vunpack.c.l.b16 %v2298
        %v2337 = vpack.c.b16 %v2322, %v2321
        %v2338 = vpack.c.b16 %v2324, %v2323
        %v2339 = vpack.c.b16 %v2326, %v2325
        %v2340 = vpack.c.b16 %v2328, %v2327
        %v2341 = vpack.c.b16 %v2330, %v2329
        %v2342 = vpack.c.b16 %v2332, %v2331
        %v2343 = vpack.c.b16 %v2334, %v2333
        %v2344 = vpack.c.b16 %v2336, %v2335
        %2353 = vmatpush.bf16.msra.mxu0 %v2344
        %2354 = vmatpush.bf16.msra.mxu0 %v2343
        %2355 = vmatpush.bf16.msra.mxu0 %v2342
        %2356 = vmatpush.bf16.msra.mxu0 %v2341
        %2357 = vmatpush.bf16.msra.mxu0 %v2340
        %2358 = vmatpush.bf16.msra.mxu0 %v2339
        %2359 = vmatpush.bf16.msra.mxu0 %v2338
        %2360 = vmatpush.bf16.msra.mxu0 %v2337
        %2361 = vmatmul.bf16.gmra.mxu0 %v2300
        %v2362 = vpop.f32.mrf.mxu0
        %v2363 = vadd.f32 %v2304, %v2362
        %v2364 = vpop.f32.mrf.mxu0
        %v2365 = vadd.f32 %v2304, %v2364
        %2366 = vmatmul.bf16.gmra.mxu0 %v2301
        %v2367 = vpop.f32.mrf.mxu0
        %v2368 = vadd.f32 %v2304, %v2367
        %v2369 = vpop.f32.mrf.mxu0
        %v2370 = vadd.f32 %v2304, %v2369
        %2371 = vmatmul.bf16.gmra.mxu0 %v2302
        %v2372 = vpop.f32.mrf.mxu0
        %v2373 = vadd.f32 %v2304, %v2372
        %v2374 = vpop.f32.mrf.mxu0
        %v2375 = vadd.f32 %v2304, %v2374
        %2376 = vmatmul.bf16.gmra.mxu0 %v2303
        %v2377 = vpop.f32.mrf.mxu0
        %v2378 = vadd.f32 %v2304, %v2377
        %v2379 = vpop.f32.mrf.mxu0
        %v2380 = vadd.f32 %v2304, %v2379
        %2381 = vdwg.mxu0
        %v2382 = vadd.f32 %v2157, %v2363
        %v2383 = vadd.f32 %v2159, %v2365
        %v2384 = vadd.f32 %v2162, %v2368
        %v2385 = vadd.f32 %v2164, %v2370
        %v2386 = vadd.f32 %v2167, %v2373
        %v2387 = vadd.f32 %v2169, %v2375
        %v2388 = vadd.f32 %v2172, %v2378
        %v2389 = vadd.f32 %v2174, %v2380
        %v2390 = vmax.f32 %v2382, 0.0
        %v2391 = vmax.f32 %v2383, 0.0
        %v2392 = vmax.f32 %v2384, 0.0
        %v2393 = vmax.f32 %v2385, 0.0
        %v2394 = vmax.f32 %v2386, 0.0
        %v2395 = vmax.f32 %v2387, 0.0
        %v2396 = vmax.f32 %v2388, 0.0
        %v2397 = vmax.f32 %v2389, 0.0
        %v2398 = vld [vmem:[#allocation25] sm:$0xf]
        %v2399 = vld [vmem:[#allocation25 + $0x4] sm:$0xf]
        %v2400 = vld [vmem:[#allocation25 + $0x8] sm:$0xf]
        %v2401 = vld [vmem:[#allocation25 + $0xc] sm:$0xf]
        %v2402 = vld [vmem:[#allocation25 + $0x10] sm:$0xf]
        %v2403 = vld [vmem:[#allocation25 + $0x14] sm:$0xf]
        %v2404 = vld [vmem:[#allocation25 + $0x18] sm:$0xf]
        %v2405 = vld [vmem:[#allocation25 + $0x1c] sm:$0xf]
        %v2406 = vld [vmem:[#allocation25 + $0x20] sm:$0xf]
        %v2407 = vld [vmem:[#allocation25 + $0x24] sm:$0xf]
        %v2408 = vld [vmem:[#allocation25 + $0x28] sm:$0xf]
        %v2409 = vld [vmem:[#allocation25 + $0x2c] sm:$0xf]
        %v2410 = vld [vmem:[#allocation25 + $0x30] sm:$0xf]
        %v2411 = vld [vmem:[#allocation25 + $0x34] sm:$0xf]
        %v2412 = vld [vmem:[#allocation25 + $0x38] sm:$0xf]
        %v2413 = vld [vmem:[#allocation25 + $0x3c] sm:$0xf]
        %v2414 = vld [vmem:[#allocation26 + $0xd] sm:$0x1]
        %v2415 = vpack.c.bf16 %v2391, %v2390
        %v2416 = vpack.c.bf16 %v2393, %v2392
        %v2417 = vpack.c.bf16 %v2395, %v2394
        %v2418 = vpack.c.bf16 %v2397, %v2396
        %v2419 = vperm.slane %v2414, 0
        %v2436 = vunpack.c.l.b16 %v2398
        %v2437 = vunpack.c.l.b16 %v2399
        %v2438 = vunpack.c.l.b16 %v2400
        %v2439 = vunpack.c.l.b16 %v2401
        %v2440 = vunpack.c.l.b16 %v2402
        %v2441 = vunpack.c.l.b16 %v2403
        %v2442 = vunpack.c.l.b16 %v2404
        %v2443 = vunpack.c.l.b16 %v2405
        %v2444 = vunpack.c.l.b16 %v2406
        %v2445 = vunpack.c.l.b16 %v2407
        %v2446 = vunpack.c.l.b16 %v2408
        %v2447 = vunpack.c.l.b16 %v2409
        %v2448 = vunpack.c.l.b16 %v2410
        %v2449 = vunpack.c.l.b16 %v2411
        %v2450 = vunpack.c.l.b16 %v2412
        %v2451 = vunpack.c.l.b16 %v2413
        %v2452 = vpack.c.b16 %v2437, %v2436
        %v2453 = vpack.c.b16 %v2439, %v2438
        %v2454 = vpack.c.b16 %v2441, %v2440
        %v2455 = vpack.c.b16 %v2443, %v2442
        %v2456 = vpack.c.b16 %v2445, %v2444
        %v2457 = vpack.c.b16 %v2447, %v2446
        %v2458 = vpack.c.b16 %v2449, %v2448
        %v2459 = vpack.c.b16 %v2451, %v2450
        %2468 = vmatpush.bf16.msra.mxu0 %v2459
        %2469 = vmatpush.bf16.msra.mxu0 %v2458
        %2470 = vmatpush.bf16.msra.mxu0 %v2457
        %2471 = vmatpush.bf16.msra.mxu0 %v2456
        %2472 = vmatpush.bf16.msra.mxu0 %v2455
        %2473 = vmatpush.bf16.msra.mxu0 %v2454
        %2474 = vmatpush.bf16.msra.mxu0 %v2453
        %2475 = vmatpush.bf16.msra.mxu0 %v2452
        %2476 = vmatmul.bf16.gmra.mxu0 %v2415
        %v2477 = vpop.f32.mrf.mxu0
        %v2478 = vadd.f32 %v2419, %v2477
        %v2479 = vpop.f32.mrf.mxu0
        %v2480 = vadd.f32 %v2419, %v2479
        %2481 = vmatmul.bf16.gmra.mxu0 %v2416
        %v2482 = vpop.f32.mrf.mxu0
        %v2483 = vadd.f32 %v2419, %v2482
        %v2484 = vpop.f32.mrf.mxu0
        %v2485 = vadd.f32 %v2419, %v2484
        %2486 = vmatmul.bf16.gmra.mxu0 %v2417
        %v2487 = vpop.f32.mrf.mxu0
        %v2488 = vadd.f32 %v2419, %v2487
        %v2489 = vpop.f32.mrf.mxu0
        %v2490 = vadd.f32 %v2419, %v2489
        %2491 = vmatmul.bf16.gmra.mxu0 %v2418
        %v2492 = vpop.f32.mrf.mxu0
        %v2493 = vadd.f32 %v2419, %v2492
        %v2494 = vpop.f32.mrf.mxu0
        %v2495 = vadd.f32 %v2419, %v2494
        %2496 = vdwg.mxu0
        %2497 = vmax.xlane.f32.xlu0 %v2478
        %v2498 = vpop.xlane.xlu0 %2497
        %2499 = vmax.xlane.f32.xlu0 %v2480
        %v2500 = vpop.xlane.xlu0 %2499
        %2501 = vmax.xlane.f32.xlu0 %v2483
        %v2502 = vpop.xlane.xlu0 %2501
        %2503 = vmax.xlane.f32.xlu0 %v2485
        %v2504 = vpop.xlane.xlu0 %2503
        %2505 = vmax.xlane.f32.xlu0 %v2488
        %v2506 = vpop.xlane.xlu0 %2505
        %2507 = vmax.xlane.f32.xlu0 %v2490
        %v2508 = vpop.xlane.xlu0 %2507
        %2509 = vmax.xlane.f32.xlu0 %v2493
        %v2510 = vpop.xlane.xlu0 %2509
        %2511 = vmax.xlane.f32.xlu0 %v2495
        %v2512 = vpop.xlane.xlu0 %2511
        %v2513 = vsub.f32 %v2478, %v2498
        %v2514 = vsub.f32 %v2480, %v2500
        %v2515 = vsub.f32 %v2483, %v2502
        %v2516 = vsub.f32 %v2485, %v2504
        %v2517 = vsub.f32 %v2488, %v2506
        %v2518 = vsub.f32 %v2490, %v2508
        %v2519 = vsub.f32 %v2493, %v2510
        %v2520 = vsub.f32 %v2495, %v2512
        %v2521 = vmul.f32 %v2513, 1.442695
        %v2522 = vpow.pop %v2521
        %v2523 = vmul.f32 %v2514, 1.442695
        %v2524 = vpow.pop %v2523
        %v2525 = vmul.f32 %v2515, 1.442695
        %v2526 = vpow.pop %v2525
        %v2527 = vmul.f32 %v2516, 1.442695
        %v2528 = vpow.pop %v2527
        %v2529 = vmul.f32 %v2517, 1.442695
        %v2530 = vpow.pop %v2529
        %v2531 = vmul.f32 %v2518, 1.442695
        %v2532 = vpow.pop %v2531
        %v2533 = vmul.f32 %v2519, 1.442695
        %v2534 = vpow.pop %v2533
        %v2535 = vmul.f32 %v2520, 1.442695
        %v2536 = vpow.pop %v2535
        %2537 = vadd.xlane.f32.xlu0 %v2522
        %v2538 = vpop.xlane.xlu0 %2537
        %2539 = vadd.xlane.f32.xlu0 %v2524
        %v2540 = vpop.xlane.xlu0 %2539
        %2541 = vadd.xlane.f32.xlu0 %v2526
        %v2542 = vpop.xlane.xlu0 %2541
        %2543 = vadd.xlane.f32.xlu0 %v2528
        %v2544 = vpop.xlane.xlu0 %2543
        %2545 = vadd.xlane.f32.xlu0 %v2530
        %v2546 = vpop.xlane.xlu0 %2545
        %2547 = vadd.xlane.f32.xlu0 %v2532
        %v2548 = vpop.xlane.xlu0 %2547
        %2549 = vadd.xlane.f32.xlu0 %v2534
        %v2550 = vpop.xlane.xlu0 %2549
        %2551 = vadd.xlane.f32.xlu0 %v2536
        %v2552 = vpop.xlane.xlu0 %2551
        %v2553 = vrcp.pop %v2538
        %v2554 = vmul.f32 %v2538, %v2553
        %v2555 = vsub.f32 1.0, %v2554
        %v2556 = vmul.f32 %v2553, %v2555
        %v2557 = vadd.f32 %v2553, %v2556
        %vm2558 = vweird.f32 %v2538
        %vm2559 = vweird.f32 %v2553
        %vm2560 = vmor %vm2558, %vm2559
        %v2561 = vsel %vm2560, %v2553, %v2557
        %v2562 = vand.u32 2147483647, %v2538
        %vm2563 = vcmp.eq.f32.partialorder %v2562, 8.507059e+37
        %v2564 = vand.u32 %v2538, 2147483648
        %v2565 = vor.u32 1.1754944e-38, %v2564
        %v2566 = vsel %vm2563, %v2565, %v2561
        %v2567 = vmul.f32 %v2522, %v2566
        %v2568 = vrcp.pop %v2540
        %v2569 = vmul.f32 %v2540, %v2568
        %v2570 = vsub.f32 1.0, %v2569
        %v2571 = vmul.f32 %v2568, %v2570
        %v2572 = vadd.f32 %v2568, %v2571
        %vm2573 = vweird.f32 %v2540
        %vm2574 = vweird.f32 %v2568
        %vm2575 = vmor %vm2573, %vm2574
        %v2576 = vsel %vm2575, %v2568, %v2572
        %v2577 = vand.u32 2147483647, %v2540
        %vm2578 = vcmp.eq.f32.partialorder %v2577, 8.507059e+37
        %v2579 = vand.u32 %v2540, 2147483648
        %v2580 = vor.u32 1.1754944e-38, %v2579
        %v2581 = vsel %vm2578, %v2580, %v2576
        %v2582 = vmul.f32 %v2524, %v2581
        %v2583 = vrcp.pop %v2542
        %v2584 = vmul.f32 %v2542, %v2583
        %v2585 = vsub.f32 1.0, %v2584
        %v2586 = vmul.f32 %v2583, %v2585
        %v2587 = vadd.f32 %v2583, %v2586
        %vm2588 = vweird.f32 %v2542
        %vm2589 = vweird.f32 %v2583
        %vm2590 = vmor %vm2588, %vm2589
        %v2591 = vsel %vm2590, %v2583, %v2587
        %v2592 = vand.u32 2147483647, %v2542
        %vm2593 = vcmp.eq.f32.partialorder %v2592, 8.507059e+37
        %v2594 = vand.u32 %v2542, 2147483648
        %v2595 = vor.u32 1.1754944e-38, %v2594
        %v2596 = vsel %vm2593, %v2595, %v2591
        %v2597 = vmul.f32 %v2526, %v2596
        %v2598 = vrcp.pop %v2544
        %v2599 = vmul.f32 %v2544, %v2598
        %v2600 = vsub.f32 1.0, %v2599
        %v2601 = vmul.f32 %v2598, %v2600
        %v2602 = vadd.f32 %v2598, %v2601
        %vm2603 = vweird.f32 %v2544
        %vm2604 = vweird.f32 %v2598
        %vm2605 = vmor %vm2603, %vm2604
        %v2606 = vsel %vm2605, %v2598, %v2602
        %v2607 = vand.u32 2147483647, %v2544
        %vm2608 = vcmp.eq.f32.partialorder %v2607, 8.507059e+37
        %v2609 = vand.u32 %v2544, 2147483648
        %v2610 = vor.u32 1.1754944e-38, %v2609
        %v2611 = vsel %vm2608, %v2610, %v2606
        %v2612 = vmul.f32 %v2528, %v2611
        %v2613 = vrcp.pop %v2546
        %v2614 = vmul.f32 %v2546, %v2613
        %v2615 = vsub.f32 1.0, %v2614
        %v2616 = vmul.f32 %v2613, %v2615
        %v2617 = vadd.f32 %v2613, %v2616
        %vm2618 = vweird.f32 %v2546
        %vm2619 = vweird.f32 %v2613
        %vm2620 = vmor %vm2618, %vm2619
        %v2621 = vsel %vm2620, %v2613, %v2617
        %v2622 = vand.u32 2147483647, %v2546
        %vm2623 = vcmp.eq.f32.partialorder %v2622, 8.507059e+37
        %v2624 = vand.u32 %v2546, 2147483648
        %v2625 = vor.u32 1.1754944e-38, %v2624
        %v2626 = vsel %vm2623, %v2625, %v2621
        %v2627 = vmul.f32 %v2530, %v2626
        %v2628 = vrcp.pop %v2548
        %v2629 = vmul.f32 %v2548, %v2628
        %v2630 = vsub.f32 1.0, %v2629
        %v2631 = vmul.f32 %v2628, %v2630
        %v2632 = vadd.f32 %v2628, %v2631
        %vm2633 = vweird.f32 %v2548
        %vm2634 = vweird.f32 %v2628
        %vm2635 = vmor %vm2633, %vm2634
        %v2636 = vsel %vm2635, %v2628, %v2632
        %v2637 = vand.u32 2147483647, %v2548
        %vm2638 = vcmp.eq.f32.partialorder %v2637, 8.507059e+37
        %v2639 = vand.u32 %v2548, 2147483648
        %v2640 = vor.u32 1.1754944e-38, %v2639
        %v2641 = vsel %vm2638, %v2640, %v2636
        %v2642 = vmul.f32 %v2532, %v2641
        %v2643 = vrcp.pop %v2550
        %v2644 = vmul.f32 %v2550, %v2643
        %v2645 = vsub.f32 1.0, %v2644
        %v2646 = vmul.f32 %v2643, %v2645
        %v2647 = vadd.f32 %v2643, %v2646
        %vm2648 = vweird.f32 %v2550
        %vm2649 = vweird.f32 %v2643
        %vm2650 = vmor %vm2648, %vm2649
        %v2651 = vsel %vm2650, %v2643, %v2647
        %v2652 = vand.u32 2147483647, %v2550
        %vm2653 = vcmp.eq.f32.partialorder %v2652, 8.507059e+37
        %v2654 = vand.u32 %v2550, 2147483648
        %v2655 = vor.u32 1.1754944e-38, %v2654
        %v2656 = vsel %vm2653, %v2655, %v2651
        %v2657 = vmul.f32 %v2534, %v2656
        %v2658 = vrcp.pop %v2552
        %v2659 = vmul.f32 %v2552, %v2658
        %v2660 = vsub.f32 1.0, %v2659
        %v2661 = vmul.f32 %v2658, %v2660
        %v2662 = vadd.f32 %v2658, %v2661
        %vm2663 = vweird.f32 %v2552
        %vm2664 = vweird.f32 %v2658
        %vm2665 = vmor %vm2663, %vm2664
        %v2666 = vsel %vm2665, %v2658, %v2662
        %v2667 = vand.u32 2147483647, %v2552
        %vm2668 = vcmp.eq.f32.partialorder %v2667, 8.507059e+37
        %v2669 = vand.u32 %v2552, 2147483648
        %v2670 = vor.u32 1.1754944e-38, %v2669
        %v2671 = vsel %vm2668, %v2670, %v2666
        %v2672 = vmul.f32 %v2536, %v2671
        %2673 = vst [vmem:[%s820] sm:$0xff] %v1650
        %2674 = vst [vmem:[%s820 + $0x8] sm:$0xff] %v1665
        %2675 = vst [vmem:[%s820 + $0x10] sm:$0xff] %v1680
        %2676 = vst [vmem:[%s820 + $0x18] sm:$0xff] %v1695
        %2677 = vst [vmem:[%s820 + $0x20] sm:$0xff] %v1710
        %2678 = vst [vmem:[%s820 + $0x28] sm:$0xff] %v1725
        %2679 = vst [vmem:[%s820 + $0x30] sm:$0xff] %v1740
        %2680 = vst [vmem:[%s820 + $0x38] sm:$0xff] %v1755
        %2681 = vst [vmem:[%s827] sm:$0xff] %v2567
        %2682 = vst [vmem:[%s827 + $0x8] sm:$0xff] %v2582
        %2683 = vst [vmem:[%s827 + $0x10] sm:$0xff] %v2597
        %2684 = vst [vmem:[%s827 + $0x18] sm:$0xff] %v2612
        %2685 = vst [vmem:[%s827 + $0x20] sm:$0xff] %v2627
        %2686 = vst [vmem:[%s827 + $0x28] sm:$0xff] %v2642
        %2687 = vst [vmem:[%s827 + $0x30] sm:$0xff] %v2657
        %2688 = vst [vmem:[%s827 + $0x38] sm:$0xff] %v2672
        %s2689 = sand.u32 %s395, 1
        %s2690 = scalar_lea.sflag [#allocation4], %s2689
        %s2691 = sand.u32 %s395, 1
        %s2692 = smul.addr %s2691, 64
        %s2693 = scalar_lea.vmem [#allocation28], %s2692
        %s2694 = sand.u32 %s421, 1
        %s2695 = scalar_lea.sflag [#allocation30], %s2694
        %s2696 = sand.u32 %s421, 1
        %s2697 = smul.addr %s2696, 64
        %s2698 = scalar_lea.vmem [#allocation29], %s2697
        // Predicated region
        $region149: #{tpu_custom_call.1} parent=83 // pred_check
          %p2699 = pneg %p405
        $region150: #{tpu_custom_call.1} parent=83 // pred_check_branch
          %2701 = sbr.rel (%p2699) target = $region152
        $region151: #{tpu_custom_call.1} parent=83 // pred_region
          %s2702 = smul.u32 8, %s46
          %2704 = vsyncadd %s2690, 0
          %s2705 = smul.addr %s2702, 8
          %s2706 = scalar_lea.hbm %s16, %s2705
          %s2707 = sshll.u32 %s2693, 4
          %s2708 = int_to_ptr.vmem [resolvable:$true] %s2707
          %s2709 = sshll.u32 %s2706, 4
          %s2710 = int_to_ptr.hbm [resolvable:$true] %s2709
          %2715 = dma.vmem_to_hbm [thread:$0]  %s2708, 1024, %s2710, %s2690, 128, 128, 8
        $region152: #{tpu_custom_call.1} parent=83 // pred_fallthru
          _
        // Predicated region
        $region153: #{tpu_custom_call.1} parent=83 // pred_check
          %p2716 = pneg %p431
        $region154: #{tpu_custom_call.1} parent=83 // pred_check_branch
          %2718 = sbr.rel (%p2716) target = $region156
        $region155: #{tpu_custom_call.1} parent=83 // pred_region
          %s2719 = smul.u32 8, %s46
          %2721 = vsyncadd %s2695, 0
          %s2722 = smul.addr %s2719, 8
          %s2723 = scalar_lea.hbm %s17, %s2722
          %s2724 = sshll.u32 %s2698, 4
          %s2725 = int_to_ptr.vmem [resolvable:$true] %s2724
          %s2726 = sshll.u32 %s2723, 4
          %s2727 = int_to_ptr.hbm [resolvable:$true] %s2726
          %2732 = dma.vmem_to_hbm [thread:$0]  %s2725, 1024, %s2727, %s2695, 128, 128, 8
        $region156: #{tpu_custom_call.1} parent=83 // pred_fallthru
          _
      $region84: #{tpu_custom_call.1} parent=5 // pred_fallthru
        _
      %p2733 = scmp.le.s32.totalorder 2, %s41
      // Predicated region
      $region157: #{tpu_custom_call.1} parent=5 // pred_check
        %p2734 = pneg %p2733
      $region158: #{tpu_custom_call.1} parent=5 // pred_check_branch
        %2736 = sbr.rel (%p2734) target = $region160
      $region159: #{tpu_custom_call.1} parent=5 // pred_region
        %s2737 = ssub.s32 %s41, 2
        // Predicated region
        $region161: #{tpu_custom_call.1} parent=159 // pred_check
          %p2738 = pneg %p411
        $region162: #{tpu_custom_call.1} parent=159 // pred_check_branch
          %2740 = sbr.rel (%p2738) target = $region164
        $region163: #{tpu_custom_call.1} parent=159 // pred_region
          %s2741 = sand.u32 %s396, 1
          %s2742 = scalar_lea.sflag [#allocation4], %s2741
          %s2743 = sand.u32 %s396, 1
          %s2744 = smul.addr %s2743, 64
          %s2745 = scalar_lea.vmem [#allocation28], %s2744
          %2747 = dma.done %s2742, 1024
        $region164: #{tpu_custom_call.1} parent=159 // pred_fallthru
          _
        // Predicated region
        $region165: #{tpu_custom_call.1} parent=159 // pred_check
          %p2748 = pneg %p437
        $region166: #{tpu_custom_call.1} parent=159 // pred_check_branch
          %2750 = sbr.rel (%p2748) target = $region168
        $region167: #{tpu_custom_call.1} parent=159 // pred_region
          %s2751 = sand.u32 %s422, 1
          %s2752 = scalar_lea.sflag [#allocation30], %s2751
          %s2753 = sand.u32 %s422, 1
          %s2754 = smul.addr %s2753, 64
          %s2755 = scalar_lea.vmem [#allocation29], %s2754
          %2757 = dma.done %s2752, 1024
        $region168: #{tpu_custom_call.1} parent=159 // pred_fallthru
          _
      $region160: #{tpu_custom_call.1} parent=5 // pred_fallthru
        _
    $region6: #{tpu_custom_call.1} parent=1 // loop_footer
      %s45 = sadd.s32 1, %s41
    $region7: #{tpu_custom_call.1} parent=1 // loop_footer_branch
      %40 = sbr.rel target = $region3
    $region8: #{tpu_custom_call.1} parent=1 // loop_exit
      _
    %2758 = vsyncpa [#allocation3], 1
    %s2759 = scalar_lea.sflag [#allocation3], 1
    %2760 = vsyncpa %s2759, 1
    %2761 = vsyncpa [#allocation6], 1
    %2762 = vsyncpa [#allocation9], 1
    %2763 = vsyncpa [#allocation12], 1
    %2764 = vsyncpa [#allocation15], 1
    %2765 = vsyncpa [#allocation18], 1
    %2766 = vsyncpa [#allocation21], 1
    %2767 = vsyncpa [#allocation24], 1
    %2768 = vsyncpa [#allocation27], 1
    %2769 = vsyncpa [#allocation4], 1
    %s2770 = scalar_lea.sflag [#allocation4], 1
    %2771 = vsyncpa %s2770, 1
    %2772 = vsyncpa [#allocation30], 1
    %s2773 = scalar_lea.sflag [#allocation30], 1
    %2774 = vsyncpa %s2773, 1

</llo_original>
